<compile_context>
chip_gen: v7x
topology: tpu7x:2x2x1
jax: 0.10.0
libtpu: 0.0.40
codegen_flags: <defaults>
</compile_context>

<pallas_src>
import functools

import jax
import jax.numpy as jnp
import numpy as np
from jax.experimental import pallas as pl
from jax.experimental.pallas import tpu as pltpu

n_embd = 384
num_heads = 6
head_size = n_embd // num_heads  # 64


def mha_kernel(x_ref, wqkv_ref, wp_ref, bp_ref, o_ref, qkv_ref, cat_ref,
               *, heads, hs):
    # x_ref:    (Bb, T, C)         block of batch elements
    # wqkv_ref: (C, 3C)  bf16      [Wq*scale | Wk | Wv], contraction-major (K leading)
    # wp_ref:   (C, C)   bf16      output projection weight, (in, out) layout
    # bp_ref:   (1, C)   f32       output projection bias
    # o_ref:    (Bb, T, C)
    # qkv_ref:  (Bb, T, 3C) bf16   VMEM scratch holding fused QKV result
    # cat_ref:  (Bb, T, C)  bf16   VMEM scratch holding concat of head outputs
    Bb, T, C = x_ref.shape

    # ---- fused QKV projection: one (Bb*T, C) @ (C, 3C) GEMM on the MXU ----
    x2d = x_ref[...].reshape(Bb * T, C).astype(jnp.bfloat16)
    qkv = jnp.dot(x2d, wqkv_ref[...], preferred_element_type=jnp.float32)
    qkv_ref[...] = qkv.reshape(Bb, T, 3 * C).astype(jnp.bfloat16)

    # ---- additive causal bias: built & broadcast ONCE (hoisted out of loop) ----
    row = jax.lax.broadcasted_iota(jnp.int32, (T, T), 0)
    col = jax.lax.broadcasted_iota(jnp.int32, (T, T), 1)
    bias = jnp.where(col <= row, jnp.float32(0.0), jnp.float32(-1e30))   # (T, T)
    bias = jnp.broadcast_to(bias[None], (Bb, T, T))                      # (Bb, T, T)

    def attend(q, k, v):
        # q, k, v: (Bb, T, hs) bf16 (scale already folded into Wq).
        s = jnp.einsum('bqd,bkd->bqk', q, k,
                       preferred_element_type=jnp.float32)               # (Bb, T, T)
        s = s + bias
        m = jnp.max(s, axis=-1, keepdims=True)
        # bf16 exponentials (v6e/v7x EUP bf16 path); denominator summed in f32.
        e = jnp.exp((s - m).astype(jnp.bfloat16))
        denom = jnp.sum(e, axis=-1, keepdims=True, dtype=jnp.float32)
        # Deferred normalization: un-normalized e feeds the PV matmul, then the
        # (Bb,T,hs) result is scaled (T*hs instead of T*T multiplies).
        # TODO(synk): dropout on attention weights omitted (eval-mode identity).
        o = jnp.einsum('bqk,bkd->bqd', e, v,
                       preferred_element_type=jnp.float32)               # (Bb, T, hs)
        return o * pl.reciprocal(denom, approx=True)

    # ---- heads processed in 128-lane-aligned pairs ----
    n_pairs = heads // 2
    for p in range(n_pairs):                 # static unroll (3 pairs for 6 heads)
        lo = p * 2 * hs                      # 0, 128, 256, ... (lane-aligned)
        q2 = qkv_ref[:, :, lo:lo + 2 * hs]                   # (Bb, T, 2hs) bf16
        k2 = qkv_ref[:, :, C + lo:C + lo + 2 * hs]
        v2 = qkv_ref[:, :, 2 * C + lo:2 * C + lo + 2 * hs]
        oa = attend(q2[:, :, :hs], k2[:, :, :hs], v2[:, :, :hs])
        ob = attend(q2[:, :, hs:], k2[:, :, hs:], v2[:, :, hs:])
        # One lane-dense 2*hs-wide store per pair ("concat" over heads).
        cat_ref[:, :, lo:lo + 2 * hs] = (
            jnp.concatenate([oa, ob], axis=-1).astype(jnp.bfloat16))

    if heads % 2:                            # leftover head (not hit for 6 heads)
        lo = n_pairs * 2 * hs
        q1 = qkv_ref[:, :, lo:lo + hs]
        k1 = qkv_ref[:, :, C + lo:C + lo + hs]
        v1 = qkv_ref[:, :, 2 * C + lo:2 * C + lo + hs]
        cat_ref[:, :, lo:lo + hs] = attend(q1, k1, v1).astype(jnp.bfloat16)

    # ---- concat + single (Bb*T, C) @ (C, C) output projection ----
    cat2d = cat_ref[...].reshape(Bb * T, C)
    out = jnp.dot(cat2d, wp_ref[...], preferred_element_type=jnp.float32)
    out = out + bp_ref[...].astype(jnp.float32)
    # TODO(synk): final dropout omitted (eval-mode identity).
    o_ref[...] = out.reshape(Bb, T, C).astype(o_ref.dtype)


def _pick_batch_block(B, T, target_rows=1024):
    """Batch-block size Bb with Bb*T ~ target_rows and >= 2 grid steps."""
    cap = max(1, min(B, max(1, target_rows // max(T, 1))))
    if B >= 2:
        cap = min(cap, max(1, B // 2))   # keep >= 2 grid steps (megacore / v7x)
    best_div = 1
    for d in range(1, cap + 1):
        if B % d == 0:
            best_div = d
    # Prefer an exact divisor; fall back to a padded (cdiv) grid only when the
    # best divisor would leave most of the target block unused.
    return best_div if best_div * 2 > cap else cap


def multi_head_attention(x, wq, wk, wv, w_proj, b_proj):
    B, T, C = x.shape
    H, hs, _ = wq.shape
    scale = jnp.float32(C) ** -0.5   # PyTorch module scales by C**-0.5 (C = n_embd)

    # Fold the softmax scale into Wq (attention is linear in it), stack Q/K/V
    # along the output axis, and pre-transpose to contraction-major (K leading)
    # layouts so both in-kernel GEMMs are plain A @ B; cast operands to bf16
    # (f32 MXU accumulation via preferred_element_type inside the kernel).
    wqkv = jnp.concatenate(
        [(wq * scale).reshape(H * hs, C).T,
         wk.reshape(H * hs, C).T,
         wv.reshape(H * hs, C).T], axis=1).astype(jnp.bfloat16)   # (C, 3C)
    wp = w_proj.T.astype(jnp.bfloat16)                            # (C, C) (in, out)
    bp = b_proj.reshape(1, C).astype(jnp.float32)

    Bb = _pick_batch_block(B, T)
    grid = (pl.cdiv(B, Bb),)

    kernel = functools.partial(mha_kernel, heads=H, hs=hs)

    return pl.pallas_call(
        kernel,
        out_shape=jax.ShapeDtypeStruct((B, T, C), x.dtype),
        grid_spec=pltpu.PrefetchScalarGridSpec(
            num_scalar_prefetch=0,
            grid=grid,
            in_specs=[
                pl.BlockSpec((Bb, T, C), lambda b: (b, 0, 0)),
                pl.BlockSpec((C, 3 * C), lambda b: (0, 0)),
                pl.BlockSpec((C, C), lambda b: (0, 0)),
                pl.BlockSpec((1, C), lambda b: (0, 0)),
            ],
            out_specs=pl.BlockSpec((Bb, T, C), lambda b: (b, 0, 0)),
            scratch_shapes=[
                pltpu.VMEM((Bb, T, 3 * C), jnp.bfloat16),   # fused QKV result
                pltpu.VMEM((Bb, T, C), jnp.bfloat16),       # concat of head outputs
            ],
        ),
        compiler_params=pltpu.CompilerParams(
            dimension_semantics=("parallel",),
            # Footprint at Bb*T=1024, T=256 is ~20-25 MiB (x/out double-buffers,
            # weights, QKV/concat scratch, (Bb,T,T) softmax temps); 64 MiB gives
            # headroom and stays within v7x per-TC physical VMEM while lifting
            # v5e's 16 MiB / v6e's 32 MiB default scoped limits.
            vmem_limit_bytes=64 * 1024 * 1024),
    )(x, wqkv, wp, bp)


def reference(x, wq, wk, wv, w_proj, b_proj):
    """Pure-JAX f32 port of the PyTorch forward (dropout = identity)."""
    B, T, C = x.shape
    tril = jnp.tril(jnp.ones((T, T)))
    outs = []
    for h in range(wq.shape[0]):
        q = x @ wq[h].T
        k = x @ wk[h].T
        v = x @ wv[h].T
        wei = (q @ jnp.swapaxes(k, -1, -2)) * (C ** -0.5)
        wei = jnp.where(tril == 0, -jnp.inf, wei)
        wei = jax.nn.softmax(wei, axis=-1)
        outs.append(wei @ v)
    cat = jnp.concatenate(outs, axis=-1)
    return cat @ w_proj.T + b_proj


if __name__ == "__main__":
    B, T = 2, 8   # T <= block_size (256)
    key = jax.random.PRNGKey(0)
    kx, kq, kk, kv, kp, kb = jax.random.split(key, 6)

    bound = 1.0 / np.sqrt(n_embd)
    x = jax.random.normal(kx, (B, T, n_embd), dtype=jnp.float32)
    wq = jax.random.uniform(kq, (num_heads, head_size, n_embd),
                            minval=-bound, maxval=bound, dtype=jnp.float32)
    wk = jax.random.uniform(kk, (num_heads, head_size, n_embd),
                            minval=-bound, maxval=bound, dtype=jnp.float32)
    wv = jax.random.uniform(kv, (num_heads, head_size, n_embd),
                            minval=-bound, maxval=bound, dtype=jnp.float32)
    w_proj = jax.random.uniform(kp, (n_embd, n_embd),
                                minval=-bound, maxval=bound, dtype=jnp.float32)
    b_proj = jax.random.uniform(kb, (n_embd,),
                                minval=-bound, maxval=bound, dtype=jnp.float32)

    out = multi_head_attention(x, wq, wk, wv, w_proj, b_proj)
    out = jax.block_until_ready(out)

    ref = reference(x, wq, wk, wv, w_proj, b_proj)
    # bf16 matmul operands / bf16 exponentials (f32 accumulation) -> 1e-2-class tol.
    if not np.allclose(np.asarray(out), np.asarray(ref), atol=3e-2, rtol=3e-2):
        err = np.max(np.abs(np.asarray(out) - np.asarray(ref)))
        raise AssertionError(f"Pallas kernel output mismatch, max abs err {err}")

    print("KERNEL_OK")
</pallas_src>

<mosaic_0001>
module attributes {stable_mosaic.version = 11 : i64} {
  func.func @mha_kernel(%arg0: i32, %arg1: memref<1x8x384xf32, #tpu.memory_space<vmem>>, %arg2: memref<384x1152xbf16, #tpu.memory_space<vmem>>, %arg3: memref<384x384xbf16, #tpu.memory_space<vmem>>, %arg4: memref<1x384xf32, #tpu.memory_space<vmem>>, %arg5: memref<1x8x384xf32, #tpu.memory_space<vmem>>, %arg6: memref<1x8x1152xbf16, #tpu.memory_space<vmem>>, %arg7: memref<1x8x384xbf16, #tpu.memory_space<vmem>>) attributes {dimension_semantics = [#tpu.dimension_semantics<parallel>], iteration_bounds = array<i64: 2>, scalar_prefetch = 0 : i64, scratch_operands = 2 : i64, tpu.core_type = #tpu.core_type<tc>, window_params = [{transform_indices = @transform_0, window_bounds = array<i64: 1, 8, 384>}, {pipeline_mode = #tpu.pipeline_mode<synchronous>, transform_indices = @transform_1, window_bounds = array<i64: 384, 1152>}, {pipeline_mode = #tpu.pipeline_mode<synchronous>, transform_indices = @transform_2, window_bounds = array<i64: 384, 384>}, {pipeline_mode = #tpu.pipeline_mode<synchronous>, transform_indices = @transform_3, window_bounds = array<i64: 1, 384>}, {transform_indices = @transform_4, window_bounds = array<i64: 1, 8, 384>}]} {
    %c0 = arith.constant 0 : index
    %c0_0 = arith.constant 0 : index
    %c0_1 = arith.constant 0 : index
    %0 = vector.load %arg1[%c0, %c0_0, %c0_1] : memref<1x8x384xf32, #tpu.memory_space<vmem>>, vector<1x8x384xf32>
    %1 = vector.shape_cast %0 : vector<1x8x384xf32> to vector<8x384xf32>
    %2 = arith.truncf %1 : vector<8x384xf32> to vector<8x384xbf16>
    %c0_2 = arith.constant 0 : index
    %c0_3 = arith.constant 0 : index
    %3 = vector.load %arg2[%c0_2, %c0_3] : memref<384x1152xbf16, #tpu.memory_space<vmem>>, vector<384x1152xbf16>
    %cst = arith.constant dense<0.000000e+00> : vector<8x1152xf32>
    %4 = tpu.matmul %2, %3, %cst {dimension_numbers = #tpu.dot_dimension_numbers<[1], [0], [0], [1], [0, 0, 1, 1], [], []>} : vector<8x384xbf16>, vector<384x1152xbf16>, vector<8x1152xf32> -> vector<8x1152xf32>
    %5 = vector.shape_cast %4 : vector<8x1152xf32> to vector<1x8x1152xf32>
    %6 = arith.truncf %5 : vector<1x8x1152xf32> to vector<1x8x1152xbf16>
    %c0_4 = arith.constant 0 : index
    %c0_5 = arith.constant 0 : index
    %c0_6 = arith.constant 0 : index
    %7 = vector.load %arg6[%c0_4, %c0_5, %c0_6] : memref<1x8x1152xbf16, #tpu.memory_space<vmem>>, vector<1x8x1152xbf16>
    tpu.vector_store %arg6[%c0_4, %c0_5, %c0_6], %6 {strides = array<i32>} : memref<1x8x1152xbf16, #tpu.memory_space<vmem>>, vector<1x8x1152xbf16>,
    %8 = tpu.iota {dimensions = array<i32: 0>} : vector<8x8xi32>
    %9 = tpu.iota {dimensions = array<i32: 1>} : vector<8x8xi32>
    %10 = arith.cmpi sle, %9, %8 : vector<8x8xi32>
    %cst_7 = arith.constant 0.000000e+00 : f32
    %cst_8 = arith.constant -1.000000e+30 : f32
    %11 = vector.broadcast %cst_7 : f32 to vector<8x8xf32>
    %12 = vector.broadcast %cst_8 : f32 to vector<8x8xf32>
    %13 = arith.select %10, %11, %12 : vector<8x8xi1>, vector<8x8xf32>
    %14 = vector.shape_cast %13 : vector<8x8xf32> to vector<1x8x8xf32>
    %c0_9 = arith.constant 0 : index
    %c0_10 = arith.constant 0 : index
    %c0_11 = arith.constant 0 : index
    %15 = vector.load %arg6[%c0_9, %c0_10, %c0_11] : memref<1x8x1152xbf16, #tpu.memory_space<vmem>>, vector<1x8x128xbf16>
    %c0_12 = arith.constant 0 : index
    %c0_13 = arith.constant 0 : index
    %c384 = arith.constant 384 : index
    %16 = vector.load %arg6[%c0_12, %c0_13, %c384] : memref<1x8x1152xbf16, #tpu.memory_space<vmem>>, vector<1x8x128xbf16>
    %c0_14 = arith.constant 0 : index
    %c0_15 = arith.constant 0 : index
    %c768 = arith.constant 768 : index
    %17 = vector.load %arg6[%c0_14, %c0_15, %c768] : memref<1x8x1152xbf16, #tpu.memory_space<vmem>>, vector<1x8x128xbf16>
    %18 = vector.extract_strided_slice %15 {offsets = [0, 0, 0], sizes = [1, 8, 64], strides = [1, 1, 1]} : vector<1x8x128xbf16> to vector<1x8x64xbf16>
    %19 = vector.extract_strided_slice %16 {offsets = [0, 0, 0], sizes = [1, 8, 64], strides = [1, 1, 1]} : vector<1x8x128xbf16> to vector<1x8x64xbf16>
    %20 = vector.extract_strided_slice %17 {offsets = [0, 0, 0], sizes = [1, 8, 64], strides = [1, 1, 1]} : vector<1x8x128xbf16> to vector<1x8x64xbf16>
    "tpu.trace_start"() <{level = 10 : i32, message = "bqd,bkd->bqk"}> : () -> ()
    %cst_16 = arith.constant dense<0.000000e+00> : vector<1x8x8xf32>
    %21 = tpu.matmul %18, %19, %cst_16 {dimension_numbers = #tpu.dot_dimension_numbers<[2], [2], [1], [1], [0, 0, 0, 1, 1, 1], [0], [0]>} : vector<1x8x64xbf16>, vector<1x8x64xbf16>, vector<1x8x8xf32> -> vector<1x8x8xf32>
    "tpu.trace_stop"() : () -> ()
    %22 = arith.addf %21, %14 : vector<1x8x8xf32>
    %cst_17 = arith.constant dense<0xFF800000> : vector<1x8xf32>
    %23 = vector.multi_reduction <maximumf>, %22, %cst_17 [2] : vector<1x8x8xf32> to vector<1x8xf32>
    %24 = vector.shape_cast %23 : vector<1x8xf32> to vector<1x8x1xf32>
    %25 = vector.broadcast %24 : vector<1x8x1xf32> to vector<1x8x8xf32>
    %26 = arith.subf %22, %25 : vector<1x8x8xf32>
    %27 = arith.truncf %26 : vector<1x8x8xf32> to vector<1x8x8xbf16>
    %28 = math.exp %27 : vector<1x8x8xbf16>
    %29 = arith.extf %28 : vector<1x8x8xbf16> to vector<1x8x8xf32>
    %cst_18 = arith.constant dense<0.000000e+00> : vector<1x8xf32>
    %30 = vector.multi_reduction <add>, %29, %cst_18 [2] : vector<1x8x8xf32> to vector<1x8xf32>
    %31 = vector.shape_cast %30 : vector<1x8xf32> to vector<1x8x1xf32>
    "tpu.trace_start"() <{level = 10 : i32, message = "bqk,bkd->bqd"}> : () -> ()
    %cst_19 = arith.constant dense<0.000000e+00> : vector<1x8x64xf32>
    %32 = tpu.matmul %28, %20, %cst_19 {dimension_numbers = #tpu.dot_dimension_numbers<[2], [1], [1], [2], [0, 0, 0, 1, 1, 2], [0], [0]>} : vector<1x8x8xbf16>, vector<1x8x64xbf16>, vector<1x8x64xf32> -> vector<1x8x64xf32>
    "tpu.trace_stop"() : () -> ()
    %33 = tpu.reciprocal %31 {approx = true} : vector<1x8x1xf32> -> vector<1x8x1xf32>
    %34 = vector.broadcast %33 : vector<1x8x1xf32> to vector<1x8x64xf32>
    %35 = arith.mulf %32, %34 : vector<1x8x64xf32>
    %36 = vector.extract_strided_slice %15 {offsets = [0, 0, 64], sizes = [1, 8, 64], strides = [1, 1, 1]} : vector<1x8x128xbf16> to vector<1x8x64xbf16>
    %37 = vector.extract_strided_slice %16 {offsets = [0, 0, 64], sizes = [1, 8, 64], strides = [1, 1, 1]} : vector<1x8x128xbf16> to vector<1x8x64xbf16>
    %38 = vector.extract_strided_slice %17 {offsets = [0, 0, 64], sizes = [1, 8, 64], strides = [1, 1, 1]} : vector<1x8x128xbf16> to vector<1x8x64xbf16>
    "tpu.trace_start"() <{level = 10 : i32, message = "bqd,bkd->bqk"}> : () -> ()
    %cst_20 = arith.constant dense<0.000000e+00> : vector<1x8x8xf32>
    %39 = tpu.matmul %36, %37, %cst_20 {dimension_numbers = #tpu.dot_dimension_numbers<[2], [2], [1], [1], [0, 0, 0, 1, 1, 1], [0], [0]>} : vector<1x8x64xbf16>, vector<1x8x64xbf16>, vector<1x8x8xf32> -> vector<1x8x8xf32>
    "tpu.trace_stop"() : () -> ()
    %40 = arith.addf %39, %14 : vector<1x8x8xf32>
    %cst_21 = arith.constant dense<0xFF800000> : vector<1x8xf32>
    %41 = vector.multi_reduction <maximumf>, %40, %cst_21 [2] : vector<1x8x8xf32> to vector<1x8xf32>
    %42 = vector.shape_cast %41 : vector<1x8xf32> to vector<1x8x1xf32>
    %43 = vector.broadcast %42 : vector<1x8x1xf32> to vector<1x8x8xf32>
    %44 = arith.subf %40, %43 : vector<1x8x8xf32>
    %45 = arith.truncf %44 : vector<1x8x8xf32> to vector<1x8x8xbf16>
    %46 = math.exp %45 : vector<1x8x8xbf16>
    %47 = arith.extf %46 : vector<1x8x8xbf16> to vector<1x8x8xf32>
    %cst_22 = arith.constant dense<0.000000e+00> : vector<1x8xf32>
    %48 = vector.multi_reduction <add>, %47, %cst_22 [2] : vector<1x8x8xf32> to vector<1x8xf32>
    %49 = vector.shape_cast %48 : vector<1x8xf32> to vector<1x8x1xf32>
    "tpu.trace_start"() <{level = 10 : i32, message = "bqk,bkd->bqd"}> : () -> ()
    %cst_23 = arith.constant dense<0.000000e+00> : vector<1x8x64xf32>
    %50 = tpu.matmul %46, %38, %cst_23 {dimension_numbers = #tpu.dot_dimension_numbers<[2], [1], [1], [2], [0, 0, 0, 1, 1, 2], [0], [0]>} : vector<1x8x8xbf16>, vector<1x8x64xbf16>, vector<1x8x64xf32> -> vector<1x8x64xf32>
    "tpu.trace_stop"() : () -> ()
    %51 = tpu.reciprocal %49 {approx = true} : vector<1x8x1xf32> -> vector<1x8x1xf32>
    %52 = vector.broadcast %51 : vector<1x8x1xf32> to vector<1x8x64xf32>
    %53 = arith.mulf %50, %52 : vector<1x8x64xf32>
    %54 = tpu.concatenate %35, %53 in 2 : vector<1x8x64xf32>, vector<1x8x64xf32> -> vector<1x8x128xf32>
    %55 = arith.truncf %54 : vector<1x8x128xf32> to vector<1x8x128xbf16>
    %c0_24 = arith.constant 0 : index
    %c0_25 = arith.constant 0 : index
    %c0_26 = arith.constant 0 : index
    %56 = vector.load %arg7[%c0_24, %c0_25, %c0_26] : memref<1x8x384xbf16, #tpu.memory_space<vmem>>, vector<1x8x128xbf16>
    tpu.vector_store %arg7[%c0_24, %c0_25, %c0_26], %55 {strides = array<i32>} : memref<1x8x384xbf16, #tpu.memory_space<vmem>>, vector<1x8x128xbf16>,
    %c0_27 = arith.constant 0 : index
    %c0_28 = arith.constant 0 : index
    %c128 = arith.constant 128 : index
    %57 = vector.load %arg6[%c0_27, %c0_28, %c128] : memref<1x8x1152xbf16, #tpu.memory_space<vmem>>, vector<1x8x128xbf16>
    %c0_29 = arith.constant 0 : index
    %c0_30 = arith.constant 0 : index
    %c512 = arith.constant 512 : index
    %58 = vector.load %arg6[%c0_29, %c0_30, %c512] : memref<1x8x1152xbf16, #tpu.memory_space<vmem>>, vector<1x8x128xbf16>
    %c0_31 = arith.constant 0 : index
    %c0_32 = arith.constant 0 : index
    %c896 = arith.constant 896 : index
    %59 = vector.load %arg6[%c0_31, %c0_32, %c896] : memref<1x8x1152xbf16, #tpu.memory_space<vmem>>, vector<1x8x128xbf16>
    %60 = vector.extract_strided_slice %57 {offsets = [0, 0, 0], sizes = [1, 8, 64], strides = [1, 1, 1]} : vector<1x8x128xbf16> to vector<1x8x64xbf16>
    %61 = vector.extract_strided_slice %58 {offsets = [0, 0, 0], sizes = [1, 8, 64], strides = [1, 1, 1]} : vector<1x8x128xbf16> to vector<1x8x64xbf16>
    %62 = vector.extract_strided_slice %59 {offsets = [0, 0, 0], sizes = [1, 8, 64], strides = [1, 1, 1]} : vector<1x8x128xbf16> to vector<1x8x64xbf16>
    "tpu.trace_start"() <{level = 10 : i32, message = "bqd,bkd->bqk"}> : () -> ()
    %cst_33 = arith.constant dense<0.000000e+00> : vector<1x8x8xf32>
    %63 = tpu.matmul %60, %61, %cst_33 {dimension_numbers = #tpu.dot_dimension_numbers<[2], [2], [1], [1], [0, 0, 0, 1, 1, 1], [0], [0]>} : vector<1x8x64xbf16>, vector<1x8x64xbf16>, vector<1x8x8xf32> -> vector<1x8x8xf32>
    "tpu.trace_stop"() : () -> ()
    %64 = arith.addf %63, %14 : vector<1x8x8xf32>
    %cst_34 = arith.constant dense<0xFF800000> : vector<1x8xf32>
    %65 = vector.multi_reduction <maximumf>, %64, %cst_34 [2] : vector<1x8x8xf32> to vector<1x8xf32>
    %66 = vector.shape_cast %65 : vector<1x8xf32> to vector<1x8x1xf32>
    %67 = vector.broadcast %66 : vector<1x8x1xf32> to vector<1x8x8xf32>
    %68 = arith.subf %64, %67 : vector<1x8x8xf32>
    %69 = arith.truncf %68 : vector<1x8x8xf32> to vector<1x8x8xbf16>
    %70 = math.exp %69 : vector<1x8x8xbf16>
    %71 = arith.extf %70 : vector<1x8x8xbf16> to vector<1x8x8xf32>
    %cst_35 = arith.constant dense<0.000000e+00> : vector<1x8xf32>
    %72 = vector.multi_reduction <add>, %71, %cst_35 [2] : vector<1x8x8xf32> to vector<1x8xf32>
    %73 = vector.shape_cast %72 : vector<1x8xf32> to vector<1x8x1xf32>
    "tpu.trace_start"() <{level = 10 : i32, message = "bqk,bkd->bqd"}> : () -> ()
    %cst_36 = arith.constant dense<0.000000e+00> : vector<1x8x64xf32>
    %74 = tpu.matmul %70, %62, %cst_36 {dimension_numbers = #tpu.dot_dimension_numbers<[2], [1], [1], [2], [0, 0, 0, 1, 1, 2], [0], [0]>} : vector<1x8x8xbf16>, vector<1x8x64xbf16>, vector<1x8x64xf32> -> vector<1x8x64xf32>
    "tpu.trace_stop"() : () -> ()
    %75 = tpu.reciprocal %73 {approx = true} : vector<1x8x1xf32> -> vector<1x8x1xf32>
    %76 = vector.broadcast %75 : vector<1x8x1xf32> to vector<1x8x64xf32>
    %77 = arith.mulf %74, %76 : vector<1x8x64xf32>
    %78 = vector.extract_strided_slice %57 {offsets = [0, 0, 64], sizes = [1, 8, 64], strides = [1, 1, 1]} : vector<1x8x128xbf16> to vector<1x8x64xbf16>
    %79 = vector.extract_strided_slice %58 {offsets = [0, 0, 64], sizes = [1, 8, 64], strides = [1, 1, 1]} : vector<1x8x128xbf16> to vector<1x8x64xbf16>
    %80 = vector.extract_strided_slice %59 {offsets = [0, 0, 64], sizes = [1, 8, 64], strides = [1, 1, 1]} : vector<1x8x128xbf16> to vector<1x8x64xbf16>
    "tpu.trace_start"() <{level = 10 : i32, message = "bqd,bkd->bqk"}> : () -> ()
    %cst_37 = arith.constant dense<0.000000e+00> : vector<1x8x8xf32>
    %81 = tpu.matmul %78, %79, %cst_37 {dimension_numbers = #tpu.dot_dimension_numbers<[2], [2], [1], [1], [0, 0, 0, 1, 1, 1], [0], [0]>} : vector<1x8x64xbf16>, vector<1x8x64xbf16>, vector<1x8x8xf32> -> vector<1x8x8xf32>
    "tpu.trace_stop"() : () -> ()
    %82 = arith.addf %81, %14 : vector<1x8x8xf32>
    %cst_38 = arith.constant dense<0xFF800000> : vector<1x8xf32>
    %83 = vector.multi_reduction <maximumf>, %82, %cst_38 [2] : vector<1x8x8xf32> to vector<1x8xf32>
    %84 = vector.shape_cast %83 : vector<1x8xf32> to vector<1x8x1xf32>
    %85 = vector.broadcast %84 : vector<1x8x1xf32> to vector<1x8x8xf32>
    %86 = arith.subf %82, %85 : vector<1x8x8xf32>
    %87 = arith.truncf %86 : vector<1x8x8xf32> to vector<1x8x8xbf16>
    %88 = math.exp %87 : vector<1x8x8xbf16>
    %89 = arith.extf %88 : vector<1x8x8xbf16> to vector<1x8x8xf32>
    %cst_39 = arith.constant dense<0.000000e+00> : vector<1x8xf32>
    %90 = vector.multi_reduction <add>, %89, %cst_39 [2] : vector<1x8x8xf32> to vector<1x8xf32>
    %91 = vector.shape_cast %90 : vector<1x8xf32> to vector<1x8x1xf32>
    "tpu.trace_start"() <{level = 10 : i32, message = "bqk,bkd->bqd"}> : () -> ()
    %cst_40 = arith.constant dense<0.000000e+00> : vector<1x8x64xf32>
    %92 = tpu.matmul %88, %80, %cst_40 {dimension_numbers = #tpu.dot_dimension_numbers<[2], [1], [1], [2], [0, 0, 0, 1, 1, 2], [0], [0]>} : vector<1x8x8xbf16>, vector<1x8x64xbf16>, vector<1x8x64xf32> -> vector<1x8x64xf32>
    "tpu.trace_stop"() : () -> ()
    %93 = tpu.reciprocal %91 {approx = true} : vector<1x8x1xf32> -> vector<1x8x1xf32>
    %94 = vector.broadcast %93 : vector<1x8x1xf32> to vector<1x8x64xf32>
    %95 = arith.mulf %92, %94 : vector<1x8x64xf32>
    %96 = tpu.concatenate %77, %95 in 2 : vector<1x8x64xf32>, vector<1x8x64xf32> -> vector<1x8x128xf32>
    %97 = arith.truncf %96 : vector<1x8x128xf32> to vector<1x8x128xbf16>
    %c0_41 = arith.constant 0 : index
    %c0_42 = arith.constant 0 : index
    %c128_43 = arith.constant 128 : index
    %98 = vector.load %arg7[%c0_41, %c0_42, %c128_43] : memref<1x8x384xbf16, #tpu.memory_space<vmem>>, vector<1x8x128xbf16>
    tpu.vector_store %arg7[%c0_41, %c0_42, %c128_43], %97 {strides = array<i32>} : memref<1x8x384xbf16, #tpu.memory_space<vmem>>, vector<1x8x128xbf16>,
    %c0_44 = arith.constant 0 : index
    %c0_45 = arith.constant 0 : index
    %c256 = arith.constant 256 : index
    %99 = vector.load %arg6[%c0_44, %c0_45, %c256] : memref<1x8x1152xbf16, #tpu.memory_space<vmem>>, vector<1x8x128xbf16>
    %c0_46 = arith.constant 0 : index
    %c0_47 = arith.constant 0 : index
    %c640 = arith.constant 640 : index
    %100 = vector.load %arg6[%c0_46, %c0_47, %c640] : memref<1x8x1152xbf16, #tpu.memory_space<vmem>>, vector<1x8x128xbf16>
    %c0_48 = arith.constant 0 : index
    %c0_49 = arith.constant 0 : index
    %c1024 = arith.constant 1024 : index
    %101 = vector.load %arg6[%c0_48, %c0_49, %c1024] : memref<1x8x1152xbf16, #tpu.memory_space<vmem>>, vector<1x8x128xbf16>
    %102 = vector.extract_strided_slice %99 {offsets = [0, 0, 0], sizes = [1, 8, 64], strides = [1, 1, 1]} : vector<1x8x128xbf16> to vector<1x8x64xbf16>
    %103 = vector.extract_strided_slice %100 {offsets = [0, 0, 0], sizes = [1, 8, 64], strides = [1, 1, 1]} : vector<1x8x128xbf16> to vector<1x8x64xbf16>
    %104 = vector.extract_strided_slice %101 {offsets = [0, 0, 0], sizes = [1, 8, 64], strides = [1, 1, 1]} : vector<1x8x128xbf16> to vector<1x8x64xbf16>
    "tpu.trace_start"() <{level = 10 : i32, message = "bqd,bkd->bqk"}> : () -> ()
    %cst_50 = arith.constant dense<0.000000e+00> : vector<1x8x8xf32>
    %105 = tpu.matmul %102, %103, %cst_50 {dimension_numbers = #tpu.dot_dimension_numbers<[2], [2], [1], [1], [0, 0, 0, 1, 1, 1], [0], [0]>} : vector<1x8x64xbf16>, vector<1x8x64xbf16>, vector<1x8x8xf32> -> vector<1x8x8xf32>
    "tpu.trace_stop"() : () -> ()
    %106 = arith.addf %105, %14 : vector<1x8x8xf32>
    %cst_51 = arith.constant dense<0xFF800000> : vector<1x8xf32>
    %107 = vector.multi_reduction <maximumf>, %106, %cst_51 [2] : vector<1x8x8xf32> to vector<1x8xf32>
    %108 = vector.shape_cast %107 : vector<1x8xf32> to vector<1x8x1xf32>
    %109 = vector.broadcast %108 : vector<1x8x1xf32> to vector<1x8x8xf32>
    %110 = arith.subf %106, %109 : vector<1x8x8xf32>
    %111 = arith.truncf %110 : vector<1x8x8xf32> to vector<1x8x8xbf16>
    %112 = math.exp %111 : vector<1x8x8xbf16>
    %113 = arith.extf %112 : vector<1x8x8xbf16> to vector<1x8x8xf32>
    %cst_52 = arith.constant dense<0.000000e+00> : vector<1x8xf32>
    %114 = vector.multi_reduction <add>, %113, %cst_52 [2] : vector<1x8x8xf32> to vector<1x8xf32>
    %115 = vector.shape_cast %114 : vector<1x8xf32> to vector<1x8x1xf32>
    "tpu.trace_start"() <{level = 10 : i32, message = "bqk,bkd->bqd"}> : () -> ()
    %cst_53 = arith.constant dense<0.000000e+00> : vector<1x8x64xf32>
    %116 = tpu.matmul %112, %104, %cst_53 {dimension_numbers = #tpu.dot_dimension_numbers<[2], [1], [1], [2], [0, 0, 0, 1, 1, 2], [0], [0]>} : vector<1x8x8xbf16>, vector<1x8x64xbf16>, vector<1x8x64xf32> -> vector<1x8x64xf32>
    "tpu.trace_stop"() : () -> ()
    %117 = tpu.reciprocal %115 {approx = true} : vector<1x8x1xf32> -> vector<1x8x1xf32>
    %118 = vector.broadcast %117 : vector<1x8x1xf32> to vector<1x8x64xf32>
    %119 = arith.mulf %116, %118 : vector<1x8x64xf32>
    %120 = vector.extract_strided_slice %99 {offsets = [0, 0, 64], sizes = [1, 8, 64], strides = [1, 1, 1]} : vector<1x8x128xbf16> to vector<1x8x64xbf16>
    %121 = vector.extract_strided_slice %100 {offsets = [0, 0, 64], sizes = [1, 8, 64], strides = [1, 1, 1]} : vector<1x8x128xbf16> to vector<1x8x64xbf16>
    %122 = vector.extract_strided_slice %101 {offsets = [0, 0, 64], sizes = [1, 8, 64], strides = [1, 1, 1]} : vector<1x8x128xbf16> to vector<1x8x64xbf16>
    "tpu.trace_start"() <{level = 10 : i32, message = "bqd,bkd->bqk"}> : () -> ()
    %cst_54 = arith.constant dense<0.000000e+00> : vector<1x8x8xf32>
    %123 = tpu.matmul %120, %121, %cst_54 {dimension_numbers = #tpu.dot_dimension_numbers<[2], [2], [1], [1], [0, 0, 0, 1, 1, 1], [0], [0]>} : vector<1x8x64xbf16>, vector<1x8x64xbf16>, vector<1x8x8xf32> -> vector<1x8x8xf32>
    "tpu.trace_stop"() : () -> ()
    %124 = arith.addf %123, %14 : vector<1x8x8xf32>
    %cst_55 = arith.constant dense<0xFF800000> : vector<1x8xf32>
    %125 = vector.multi_reduction <maximumf>, %124, %cst_55 [2] : vector<1x8x8xf32> to vector<1x8xf32>
    %126 = vector.shape_cast %125 : vector<1x8xf32> to vector<1x8x1xf32>
    %127 = vector.broadcast %126 : vector<1x8x1xf32> to vector<1x8x8xf32>
    %128 = arith.subf %124, %127 : vector<1x8x8xf32>
    %129 = arith.truncf %128 : vector<1x8x8xf32> to vector<1x8x8xbf16>
    %130 = math.exp %129 : vector<1x8x8xbf16>
    %131 = arith.extf %130 : vector<1x8x8xbf16> to vector<1x8x8xf32>
    %cst_56 = arith.constant dense<0.000000e+00> : vector<1x8xf32>
    %132 = vector.multi_reduction <add>, %131, %cst_56 [2] : vector<1x8x8xf32> to vector<1x8xf32>
    %133 = vector.shape_cast %132 : vector<1x8xf32> to vector<1x8x1xf32>
    "tpu.trace_start"() <{level = 10 : i32, message = "bqk,bkd->bqd"}> : () -> ()
    %cst_57 = arith.constant dense<0.000000e+00> : vector<1x8x64xf32>
    %134 = tpu.matmul %130, %122, %cst_57 {dimension_numbers = #tpu.dot_dimension_numbers<[2], [1], [1], [2], [0, 0, 0, 1, 1, 2], [0], [0]>} : vector<1x8x8xbf16>, vector<1x8x64xbf16>, vector<1x8x64xf32> -> vector<1x8x64xf32>
    "tpu.trace_stop"() : () -> ()
    %135 = tpu.reciprocal %133 {approx = true} : vector<1x8x1xf32> -> vector<1x8x1xf32>
    %136 = vector.broadcast %135 : vector<1x8x1xf32> to vector<1x8x64xf32>
    %137 = arith.mulf %134, %136 : vector<1x8x64xf32>
    %138 = tpu.concatenate %119, %137 in 2 : vector<1x8x64xf32>, vector<1x8x64xf32> -> vector<1x8x128xf32>
    %139 = arith.truncf %138 : vector<1x8x128xf32> to vector<1x8x128xbf16>
    %c0_58 = arith.constant 0 : index
    %c0_59 = arith.constant 0 : index
    %c256_60 = arith.constant 256 : index
    %140 = vector.load %arg7[%c0_58, %c0_59, %c256_60] : memref<1x8x384xbf16, #tpu.memory_space<vmem>>, vector<1x8x128xbf16>
    tpu.vector_store %arg7[%c0_58, %c0_59, %c256_60], %139 {strides = array<i32>} : memref<1x8x384xbf16, #tpu.memory_space<vmem>>, vector<1x8x128xbf16>,
    %c0_61 = arith.constant 0 : index
    %c0_62 = arith.constant 0 : index
    %c0_63 = arith.constant 0 : index
    %141 = vector.load %arg7[%c0_61, %c0_62, %c0_63] : memref<1x8x384xbf16, #tpu.memory_space<vmem>>, vector<1x8x384xbf16>
    %142 = vector.shape_cast %141 : vector<1x8x384xbf16> to vector<8x384xbf16>
    %c0_64 = arith.constant 0 : index
    %c0_65 = arith.constant 0 : index
    %143 = vector.load %arg3[%c0_64, %c0_65] : memref<384x384xbf16, #tpu.memory_space<vmem>>, vector<384x384xbf16>
    %cst_66 = arith.constant dense<0.000000e+00> : vector<8x384xf32>
    %144 = tpu.matmul %142, %143, %cst_66 {dimension_numbers = #tpu.dot_dimension_numbers<[1], [0], [0], [1], [0, 0, 1, 1], [], []>} : vector<8x384xbf16>, vector<384x384xbf16>, vector<8x384xf32> -> vector<8x384xf32>
    %c0_67 = arith.constant 0 : index
    %c0_68 = arith.constant 0 : index
    %145 = vector.load %arg4[%c0_67, %c0_68] : memref<1x384xf32, #tpu.memory_space<vmem>>, vector<1x384xf32>
    %146 = vector.broadcast %145 : vector<1x384xf32> to vector<8x384xf32>
    %147 = arith.addf %144, %146 : vector<8x384xf32>
    %148 = vector.shape_cast %147 : vector<8x384xf32> to vector<1x8x384xf32>
    %c0_69 = arith.constant 0 : index
    %c0_70 = arith.constant 0 : index
    %c0_71 = arith.constant 0 : index
    %149 = vector.load %arg5[%c0_69, %c0_70, %c0_71] : memref<1x8x384xf32, #tpu.memory_space<vmem>>, vector<1x8x384xf32>
    tpu.vector_store %arg5[%c0_69, %c0_70, %c0_71], %148 {strides = array<i32>} : memref<1x8x384xf32, #tpu.memory_space<vmem>>, vector<1x8x384xf32>,
    return
  }
  func.func @transform_0(%arg0: i32) -> (i32, i32, i32) {
    %c0_i32 = arith.constant 0 : i32
    %c0_i32_0 = arith.constant 0 : i32
    %c0_i32_1 = arith.constant 0 : i32
    return %arg0, %c0_i32, %c0_i32_0 : i32, i32, i32
  }
  func.func @transform_1(%arg0: i32) -> (i32, i32) {
    %c0_i32 = arith.constant 0 : i32
    %c0_i32_0 = arith.constant 0 : i32
    %c0_i32_1 = arith.constant 0 : i32
    return %c0_i32, %c0_i32_0 : i32, i32
  }
  func.func @transform_2(%arg0: i32) -> (i32, i32) {
    %c0_i32 = arith.constant 0 : i32
    %c0_i32_0 = arith.constant 0 : i32
    %c0_i32_1 = arith.constant 0 : i32
    return %c0_i32, %c0_i32_0 : i32, i32
  }
  func.func @transform_3(%arg0: i32) -> (i32, i32) {
    %c0_i32 = arith.constant 0 : i32
    %c0_i32_0 = arith.constant 0 : i32
    %c0_i32_1 = arith.constant 0 : i32
    return %c0_i32, %c0_i32_0 : i32, i32
  }
  func.func @transform_4(%arg0: i32) -> (i32, i32, i32) {
    %c0_i32 = arith.constant 0 : i32
    %c0_i32_0 = arith.constant 0 : i32
    %c0_i32_1 = arith.constant 0 : i32
    return %arg0, %c0_i32, %c0_i32_0 : i32, i32, i32
  }
}

</mosaic_0001>

<llo_original>
// kernel: tpu_custom_call.1
$region0: #{tpu_custom_call.1}
  #allocation0 [shape = 'u32[]', space=smem, size = 0x4, offset = 0x4, fixed_abs, tag = 'smem constant byte address 0x4 - core index']
  #allocation1 [shape = 'u32[144,128]{1,0:T(1,128)}', space=vmem, size = 0x12000, scoped, tag = 'internal scratch']
  #allocation2 [shape = 'bf16[1,8,1152]{2,1,0:T(8,128)(2,1)}', space=vmem, size = 0x4800, scoped, tag = 'scratch operand']
  #allocation3 [shape = 'bf16[1,8,384]{2,1,0:T(8,128)(2,1)}', space=vmem, size = 0x1800, scoped, tag = 'scratch operand']
  %s0 = inlined_call_operand.hbm [shape: f32[2,8,384], index: 0, kind: input, shape index: {}]
  %s1 = inlined_call_operand.hbm [shape: bf16[384,1152], index: 1, kind: input, shape index: {}]
  %s2 = inlined_call_operand.hbm [shape: bf16[384,384], index: 2, kind: input, shape index: {}]
  %s3 = inlined_call_operand.hbm [shape: f32[1,384], index: 3, kind: input, shape index: {}]
  %s4 = inlined_call_operand.hbm [shape: f32[2,8,384], index: 4, kind: output, shape index: {}]
  %s5 = sld [smem:[#allocation0]]
  $region65: #{tpu_custom_call.1} parent=0
    _
  %s7 = ssub.s32 1, %s5
  %s8 = scalar_select 0, %s7, %s5
  $region1: #{tpu_custom_call.1} parent=0
    #allocation4 [shape = 'u8[24576]{0}', space=vmem, size = 0x6000, scoped, tag = 'input window, operand 0']
    #allocation5 [shape = 's32[2]{0}', space=sflag, size = 0x8, scoped, tag = 'scoped memory for tpu_custom_call.1']
    #allocation6 [shape = 's32[2]{0}', space=sflag, size = 0x8, scoped, tag = 'scoped memory for tpu_custom_call.1']
    #allocation7 [shape = 'u8[884736]{0}', space=vmem, size = 0xd8000, scoped, tag = 'input window, operand 1, single buffered']
    #allocation8 [shape = 's32[1]{0}', space=sflag, size = 0x4, scoped, tag = 'scoped memory for tpu_custom_call.1']
    #allocation9 [shape = 'u8[294912]{0}', space=vmem, size = 0x48000, scoped, tag = 'input window, operand 2, single buffered']
    #allocation10 [shape = 'u8[1536]{0}', space=vmem, size = 0x800, scoped, tag = 'input window, operand 3, single buffered']
    #allocation11 [shape = 's32[1]{0}', space=sflag, size = 0x4, scoped, tag = 'scoped memory for tpu_custom_call.1']
    #allocation12 [shape = 'u8[24576]{0}', space=vmem, size = 0x6000, scoped, tag = 'output window, operand 0']
    %9 = vsyncpa [#allocation5], 0
    %s10 = scalar_lea.sflag [#allocation5], 1
    %11 = vsyncpa %s10, 0
    %12 = vsyncpa [#allocation8], 0
    %13 = vsyncpa [#allocation11], 0
    %14 = vsyncpa [#allocation6], 0
    %s15 = scalar_lea.sflag [#allocation6], 1
    %16 = vsyncpa %s15, 0
    loop: start=0, step=1, limit=4
    $region2: #{tpu_custom_call.1} parent=1 // loop_pre_header
      _
    $region3: #{tpu_custom_call.1} parent=1 // loop_header
      %s18 = sphi 0, %s22
      %p19 = scmp.ge.s32.totalorder %s18, 4
      %s28 = sphi 0, %s30
      %s31 = sphi 0, %s28
      %s32 = sphi 0, %s31
      %s48 = sphi 0, %s32
      %s52 = sphi 0, %s52
      %s54 = sphi 0, %s52
      %s55 = sphi 0, %s54
      %s69 = sphi 0, %s55
      %s73 = sphi 0, %s73
      %s75 = sphi 0, %s73
      %s76 = sphi 0, %s75
      %s90 = sphi 0, %s76
      %s94 = sphi 0, %s94
      %s96 = sphi 0, %s94
      %s97 = sphi 0, %s96
      %s111 = sphi 0, %s97
      %s117 = sphi 0, %s119
      %s120 = sphi 0, %s117
      %s121 = sphi 0, %s120
      %s137 = sphi 0, %s121
    $region4: #{tpu_custom_call.1} parent=1 // loop_header_branch
      %21 = sbr.rel (%p19) target = $region8
    $region5: #{tpu_custom_call.1} parent=1 // loop_body
      %s23 = ssub.s32 %s18, 1
      %s24 = ssub.s32 %s18, 2
      %s25 = sadd.s32 %s18, 1
      %s26 = ssub.s32 %s18, %s25
      %p27 = scmp.eq.s32.totalorder %s26, 0
      %s29 = sadd.s32 %s28, 1
      %s30 = scalar_select %p27, %s28, %s29
      %p33 = pneg %p27
      %p34 = scmp.eq.s32.totalorder %s18, 1
      %p35 = por %p33, %p34
      %p36 = scmp.ne.s32.totalorder %s28, %s31
      %p37 = scmp.eq.s32.totalorder %s18, 0
      %p38 = por %p36, %p37
      %p39 = scmp.ne.s32.totalorder %s28, %s31
      %p40 = scmp.eq.s32.totalorder %s23, 1
      %p41 = por %p39, %p40
      %p42 = scmp.ne.s32.totalorder %s31, %s32
      %p43 = scmp.eq.s32.totalorder %s23, 0
      %p44 = por %p42, %p43
      %p45 = scmp.ne.s32.totalorder %s31, %s32
      %p46 = scmp.eq.s32.totalorder %s24, 1
      %p47 = por %p45, %p46
      %p49 = scmp.ne.s32.totalorder %s32, %s48
      %p50 = scmp.eq.s32.totalorder %s24, 0
      %p51 = por %p49, %p50
      %s53 = sadd.s32 %s52, 1
      %p56 = scmp.eq.s32.totalorder %s18, 1
      %p57 = scmp.ne.s32.totalorder %s52, %s54
      %p58 = scmp.eq.s32.totalorder %s18, 0
      %p59 = por %p57, %p58
      %p60 = scmp.ne.s32.totalorder %s52, %s54
      %p61 = scmp.eq.s32.totalorder %s23, 1
      %p62 = por %p60, %p61
      %p63 = scmp.ne.s32.totalorder %s54, %s55
      %p64 = scmp.eq.s32.totalorder %s23, 0
      %p65 = por %p63, %p64
      %p66 = scmp.ne.s32.totalorder %s54, %s55
      %p67 = scmp.eq.s32.totalorder %s24, 1
      %p68 = por %p66, %p67
      %p70 = scmp.ne.s32.totalorder %s55, %s69
      %p71 = scmp.eq.s32.totalorder %s24, 0
      %p72 = por %p70, %p71
      %s74 = sadd.s32 %s73, 1
      %p77 = scmp.eq.s32.totalorder %s18, 1
      %p78 = scmp.ne.s32.totalorder %s73, %s75
      %p79 = scmp.eq.s32.totalorder %s18, 0
      %p80 = por %p78, %p79
      %p81 = scmp.ne.s32.totalorder %s73, %s75
      %p82 = scmp.eq.s32.totalorder %s23, 1
      %p83 = por %p81, %p82
      %p84 = scmp.ne.s32.totalorder %s75, %s76
      %p85 = scmp.eq.s32.totalorder %s23, 0
      %p86 = por %p84, %p85
      %p87 = scmp.ne.s32.totalorder %s75, %s76
      %p88 = scmp.eq.s32.totalorder %s24, 1
      %p89 = por %p87, %p88
      %p91 = scmp.ne.s32.totalorder %s76, %s90
      %p92 = scmp.eq.s32.totalorder %s24, 0
      %p93 = por %p91, %p92
      %s95 = sadd.s32 %s94, 1
      %p98 = scmp.eq.s32.totalorder %s18, 1
      %p99 = scmp.ne.s32.totalorder %s94, %s96
      %p100 = scmp.eq.s32.totalorder %s18, 0
      %p101 = por %p99, %p100
      %p102 = scmp.ne.s32.totalorder %s94, %s96
      %p103 = scmp.eq.s32.totalorder %s23, 1
      %p104 = por %p102, %p103
      %p105 = scmp.ne.s32.totalorder %s96, %s97
      %p106 = scmp.eq.s32.totalorder %s23, 0
      %p107 = por %p105, %p106
      %p108 = scmp.ne.s32.totalorder %s96, %s97
      %p109 = scmp.eq.s32.totalorder %s24, 1
      %p110 = por %p108, %p109
      %p112 = scmp.ne.s32.totalorder %s97, %s111
      %p113 = scmp.eq.s32.totalorder %s24, 0
      %p114 = por %p112, %p113
      %s115 = ssub.s32 %s18, %s25
      %p116 = scmp.eq.s32.totalorder %s115, 0
      %s118 = sadd.s32 %s117, 1
      %s119 = scalar_select %p116, %s117, %s118
      %p122 = pneg %p116
      %p123 = scmp.eq.s32.totalorder %s18, 1
      %p124 = por %p122, %p123
      %p125 = scmp.ne.s32.totalorder %s117, %s120
      %p126 = scmp.eq.s32.totalorder %s18, 0
      %p127 = por %p125, %p126
      %p128 = scmp.ne.s32.totalorder %s117, %s120
      %p129 = scmp.eq.s32.totalorder %s23, 1
      %p130 = por %p128, %p129
      %p131 = scmp.ne.s32.totalorder %s120, %s121
      %p132 = scmp.eq.s32.totalorder %s23, 0
      %p133 = por %p131, %p132
      %p134 = scmp.ne.s32.totalorder %s120, %s121
      %p135 = scmp.eq.s32.totalorder %s24, 1
      %p136 = por %p134, %p135
      %p138 = scmp.ne.s32.totalorder %s121, %s137
      %p139 = scmp.eq.s32.totalorder %s24, 0
      %p140 = por %p138, %p139
      %p141 = scmp.le.s32.totalorder 1, %s18
      %p142 = scmp.lt.s32.totalorder %s18, 3
      %p143 = pnand %p141, %p142
      %p144 = pneg %p143
      // Predicated region
      $region9: #{tpu_custom_call.1} parent=5 // pred_check
        _
      $region10: #{tpu_custom_call.1} parent=5 // pred_check_branch
        %146 = sbr.rel (%p143) target = $region12
      $region11: #{tpu_custom_call.1} parent=5 // pred_region
        %s147 = ssub.s32 %s18, 1
        // Predicated region
        $region13: #{tpu_custom_call.1} parent=11 // pred_check
          %p148 = pneg %p65
        $region14: #{tpu_custom_call.1} parent=11 // pred_check_branch
          %150 = sbr.rel (%p148) target = $region16
        $region15: #{tpu_custom_call.1} parent=11 // pred_region
          %s152 = ssub.s32 27648, 27648
          %153 = vsyncadd [#allocation8], %s152
          %s154 = sshll.u32 [#allocation7], 4
          %s155 = int_to_ptr.vmem [resolvable:$true] %s154
          %160 = dma.hbm_to_vmem [thread:$0]  %s1, 27648, %s155, [#allocation8], 576, 576, 36
        $region16: #{tpu_custom_call.1} parent=11 // pred_fallthru
          _
        // Predicated region
        $region17: #{tpu_custom_call.1} parent=11 // pred_check
          %p161 = pneg %p86
        $region18: #{tpu_custom_call.1} parent=11 // pred_check_branch
          %163 = sbr.rel (%p161) target = $region20
        $region19: #{tpu_custom_call.1} parent=11 // pred_region
          %s165 = ssub.s32 9216, 9216
          %166 = vsyncadd [#allocation8], %s165
          %s167 = sshll.u32 [#allocation9], 4
          %s168 = int_to_ptr.vmem [resolvable:$true] %s167
          %173 = dma.hbm_to_vmem [thread:$0]  %s2, 9216, %s168, [#allocation8], 192, 192, 12
        $region20: #{tpu_custom_call.1} parent=11 // pred_fallthru
          _
        // Predicated region
        $region21: #{tpu_custom_call.1} parent=11 // pred_check
          %p174 = pneg %p107
        $region22: #{tpu_custom_call.1} parent=11 // pred_check_branch
          %176 = sbr.rel (%p174) target = $region24
        $region23: #{tpu_custom_call.1} parent=11 // pred_region
          %s178 = ssub.s32 48, 48
          %179 = vsyncadd [#allocation11], %s178
          %s181 = sshll.u32 [#allocation10], 4
          %s182 = int_to_ptr.vmem [resolvable:$true] %s181
          %184 = dma.hbm_to_vmem [thread:$0]  %s3, 48, %s182, [#allocation11]
        $region24: #{tpu_custom_call.1} parent=11 // pred_fallthru
          _
      $region12: #{tpu_custom_call.1} parent=5 // pred_fallthru
        _
      %p185 = scmp.lt.s32.totalorder %s18, 2
      // Predicated region
      $region25: #{tpu_custom_call.1} parent=5 // pred_check
        %p186 = pneg %p185
      $region26: #{tpu_custom_call.1} parent=5 // pred_check_branch
        %188 = sbr.rel (%p186) target = $region28
      $region27: #{tpu_custom_call.1} parent=5 // pred_region
        // Predicated region
        $region29: #{tpu_custom_call.1} parent=27 // pred_check
          %p189 = pneg %p38
        $region30: #{tpu_custom_call.1} parent=27 // pred_check_branch
          %191 = sbr.rel (%p189) target = $region32
        $region31: #{tpu_custom_call.1} parent=27 // pred_region
          %s192 = sand.u32 %s28, 1
          %s193 = scalar_lea.sflag [#allocation5], %s192
          %s194 = sand.u32 %s28, 1
          %s195 = smul.addr %s194, 24
          %s196 = scalar_lea.vmem [#allocation4], %s195
          %s198 = ssub.s32 384, 384
          %199 = vsyncadd %s193, %s198
          %s200 = smul.addr %s18, 3
          %s201 = smul.addr %s200, 128
          %s202 = scalar_lea.hbm %s0, %s201
          %s204 = sshll.u32 %s196, 4
          %s205 = int_to_ptr.vmem [resolvable:$true] %s204
          %207 = dma.hbm_to_vmem [thread:$0]  %s202, 384, %s205, %s193
        $region32: #{tpu_custom_call.1} parent=27 // pred_fallthru
          _
      $region28: #{tpu_custom_call.1} parent=5 // pred_fallthru
        _
      %p208 = scmp.le.s32.totalorder 1, %s18
      %p209 = scmp.lt.s32.totalorder %s18, 3
      %p210 = pnand %p208, %p209
      %p211 = pneg %p210
      // Predicated region
      $region33: #{tpu_custom_call.1} parent=5 // pred_check
        _
      $region34: #{tpu_custom_call.1} parent=5 // pred_check_branch
        %213 = sbr.rel (%p210) target = $region36
      $region35: #{tpu_custom_call.1} parent=5 // pred_region
        %s214 = ssub.s32 %s18, 1
        %s215 = sand.u32 %s31, 1
        %s216 = scalar_lea.sflag [#allocation5], %s215
        %s217 = sand.u32 %s31, 1
        %s218 = smul.addr %s217, 24
        %s219 = scalar_lea.vmem [#allocation4], %s218
        // Predicated region
        $region37: #{tpu_custom_call.1} parent=35 // pred_check
          %p220 = pneg %p44
        $region38: #{tpu_custom_call.1} parent=35 // pred_check_branch
          %222 = sbr.rel (%p220) target = $region40
        $region39: #{tpu_custom_call.1} parent=35 // pred_region
          %223 = dma.done %s216, 384
        $region40: #{tpu_custom_call.1} parent=35 // pred_fallthru
          _
        // Predicated region
        $region41: #{tpu_custom_call.1} parent=35 // pred_check
          %p224 = pneg %p65
        $region42: #{tpu_custom_call.1} parent=35 // pred_check_branch
          %226 = sbr.rel (%p224) target = $region44
        $region43: #{tpu_custom_call.1} parent=35 // pred_region
          %227 = dma.done [#allocation8], 27648
        $region44: #{tpu_custom_call.1} parent=35 // pred_fallthru
          _
        // Predicated region
        $region45: #{tpu_custom_call.1} parent=35 // pred_check
          %p228 = pneg %p86
        $region46: #{tpu_custom_call.1} parent=35 // pred_check_branch
          %230 = sbr.rel (%p228) target = $region48
        $region47: #{tpu_custom_call.1} parent=35 // pred_region
          %231 = dma.done [#allocation8], 9216
        $region48: #{tpu_custom_call.1} parent=35 // pred_fallthru
          _
        // Predicated region
        $region49: #{tpu_custom_call.1} parent=35 // pred_check
          %p232 = pneg %p107
        $region50: #{tpu_custom_call.1} parent=35 // pred_check_branch
          %234 = sbr.rel (%p232) target = $region52
        $region51: #{tpu_custom_call.1} parent=35 // pred_region
          %235 = dma.done [#allocation11], 48
        $region52: #{tpu_custom_call.1} parent=35 // pred_fallthru
          _
        %s236 = sand.u32 %s31, 1
        %s237 = scalar_lea.sflag [#allocation5], %s236
        %s238 = sand.u32 %s31, 1
        %s239 = smul.addr %s238, 24
        %s240 = scalar_lea.vmem [#allocation4], %s239
        %p241 = pneg %p44
        %p242 = pneg %p41
        %p243 = pneg %p65
        %p244 = pneg %p62
        %p245 = pneg %p86
        %p246 = pneg %p83
        %p247 = pneg %p107
        %p248 = pneg %p104
        %p249 = pneg %p133
        %p250 = pneg %p130
        %s251 = sand.u32 %s120, 1
        %s252 = scalar_lea.sflag [#allocation6], %s251
        %s253 = sand.u32 %s120, 1
        %s254 = smul.addr %s253, 24
        %s255 = scalar_lea.vmem [#allocation12], %s254
        %v257 = vld [vmem:[%s219] sm:$0xff]
        %v258 = vld [vmem:[%s219 + $0x8] sm:$0xff]
        %v259 = vld [vmem:[%s219 + $0x10] sm:$0xff]
        %v260 = vpack.c.bf16 %v257, %v257
        %v261 = vpack.c.bf16 %v258, %v258
        %v262 = vpack.c.bf16 %v259, %v259
        %v263 = vld [vmem:[#allocation7] sm:$0xff]
        %v264 = vld [vmem:[#allocation7 + $0x8] sm:$0xff]
        %v265 = vld [vmem:[#allocation7 + $0x10] sm:$0xff]
        %v266 = vld [vmem:[#allocation7 + $0x18] sm:$0xff]
        %v267 = vld [vmem:[#allocation7 + $0x20] sm:$0xf]
        %v268 = vld [vmem:[#allocation7 + $0x24] sm:$0xff]
        %v269 = vld [vmem:[#allocation7 + $0x2c] sm:$0xff]
        %v270 = vld [vmem:[#allocation7 + $0x34] sm:$0xff]
        %v271 = vld [vmem:[#allocation7 + $0x3c] sm:$0xff]
        %v272 = vld [vmem:[#allocation7 + $0x44] sm:$0xf]
        %v273 = vld [vmem:[#allocation7 + $0x48] sm:$0xff]
        %v274 = vld [vmem:[#allocation7 + $0x50] sm:$0xff]
        %v275 = vld [vmem:[#allocation7 + $0x58] sm:$0xff]
        %v276 = vld [vmem:[#allocation7 + $0x60] sm:$0xff]
        %v277 = vld [vmem:[#allocation7 + $0x68] sm:$0xf]
        %v278 = vld [vmem:[#allocation7 + $0x6c] sm:$0xff]
        %v279 = vld [vmem:[#allocation7 + $0x74] sm:$0xff]
        %v280 = vld [vmem:[#allocation7 + $0x7c] sm:$0xff]
        %v281 = vld [vmem:[#allocation7 + $0x84] sm:$0xff]
        %v282 = vld [vmem:[#allocation7 + $0x8c] sm:$0xf]
        %v283 = vld [vmem:[#allocation7 + $0x90] sm:$0xff]
        %v284 = vld [vmem:[#allocation7 + $0x98] sm:$0xff]
        %v285 = vld [vmem:[#allocation7 + $0xa0] sm:$0xff]
        %v286 = vld [vmem:[#allocation7 + $0xa8] sm:$0xff]
        %v287 = vld [vmem:[#allocation7 + $0xb0] sm:$0xf]
        %v288 = vld [vmem:[#allocation7 + $0xb4] sm:$0xff]
        %v289 = vld [vmem:[#allocation7 + $0xbc] sm:$0xff]
        %v290 = vld [vmem:[#allocation7 + $0xc4] sm:$0xff]
        %v291 = vld [vmem:[#allocation7 + $0xcc] sm:$0xff]
        %v292 = vld [vmem:[#allocation7 + $0xd4] sm:$0xf]
        %v293 = vld [vmem:[#allocation7 + $0xd8] sm:$0xff]
        %v294 = vld [vmem:[#allocation7 + $0xe0] sm:$0xff]
        %v295 = vld [vmem:[#allocation7 + $0xe8] sm:$0xff]
        %v296 = vld [vmem:[#allocation7 + $0xf0] sm:$0xff]
        %v297 = vld [vmem:[#allocation7 + $0xf8] sm:$0xf]
        %v298 = vld [vmem:[#allocation7 + $0xfc] sm:$0xff]
        %v299 = vld [vmem:[#allocation7 + $0x104] sm:$0xff]
        %v300 = vld [vmem:[#allocation7 + $0x10c] sm:$0xff]
        %v301 = vld [vmem:[#allocation7 + $0x114] sm:$0xff]
        %v302 = vld [vmem:[#allocation7 + $0x11c] sm:$0xf]
        %v303 = vld [vmem:[#allocation7 + $0x120] sm:$0xff]
        %v304 = vld [vmem:[#allocation7 + $0x128] sm:$0xff]
        %v305 = vld [vmem:[#allocation7 + $0x130] sm:$0xff]
        %v306 = vld [vmem:[#allocation7 + $0x138] sm:$0xff]
        %v307 = vld [vmem:[#allocation7 + $0x140] sm:$0xf]
        %v308 = vld [vmem:[#allocation7 + $0x144] sm:$0xff]
        %v309 = vld [vmem:[#allocation7 + $0x14c] sm:$0xff]
        %v310 = vld [vmem:[#allocation7 + $0x154] sm:$0xff]
        %v311 = vld [vmem:[#allocation7 + $0x15c] sm:$0xff]
        %v312 = vld [vmem:[#allocation7 + $0x164] sm:$0xf]
        %v313 = vld [vmem:[#allocation7 + $0x168] sm:$0xff]
        %v314 = vld [vmem:[#allocation7 + $0x170] sm:$0xff]
        %v315 = vld [vmem:[#allocation7 + $0x178] sm:$0xff]
        %v316 = vld [vmem:[#allocation7 + $0x180] sm:$0xff]
        %v317 = vld [vmem:[#allocation7 + $0x188] sm:$0xf]
        %v318 = vld [vmem:[#allocation7 + $0x18c] sm:$0xff]
        %v319 = vld [vmem:[#allocation7 + $0x194] sm:$0xff]
        %v320 = vld [vmem:[#allocation7 + $0x19c] sm:$0xff]
        %v321 = vld [vmem:[#allocation7 + $0x1a4] sm:$0xff]
        %v322 = vld [vmem:[#allocation7 + $0x1ac] sm:$0xf]
        %v323 = vld [vmem:[#allocation7 + $0x1b0] sm:$0xff]
        %v324 = vld [vmem:[#allocation7 + $0x1b8] sm:$0xff]
        %v325 = vld [vmem:[#allocation7 + $0x1c0] sm:$0xff]
        %v326 = vld [vmem:[#allocation7 + $0x1c8] sm:$0xff]
        %v327 = vld [vmem:[#allocation7 + $0x1d0] sm:$0xf]
        %v328 = vld [vmem:[#allocation7 + $0x1d4] sm:$0xff]
        %v329 = vld [vmem:[#allocation7 + $0x1dc] sm:$0xff]
        %v330 = vld [vmem:[#allocation7 + $0x1e4] sm:$0xff]
        %v331 = vld [vmem:[#allocation7 + $0x1ec] sm:$0xff]
        %v332 = vld [vmem:[#allocation7 + $0x1f4] sm:$0xf]
        %v333 = vld [vmem:[#allocation7 + $0x1f8] sm:$0xff]
        %v334 = vld [vmem:[#allocation7 + $0x200] sm:$0xff]
        %v335 = vld [vmem:[#allocation7 + $0x208] sm:$0xff]
        %v336 = vld [vmem:[#allocation7 + $0x210] sm:$0xff]
        %v337 = vld [vmem:[#allocation7 + $0x218] sm:$0xf]
        %v338 = vld [vmem:[#allocation7 + $0x21c] sm:$0xff]
        %v339 = vld [vmem:[#allocation7 + $0x224] sm:$0xff]
        %v340 = vld [vmem:[#allocation7 + $0x22c] sm:$0xff]
        %v341 = vld [vmem:[#allocation7 + $0x234] sm:$0xff]
        %v342 = vld [vmem:[#allocation7 + $0x23c] sm:$0xf]
        %v343 = vld [vmem:[#allocation7 + $0x240] sm:$0xff]
        %v344 = vld [vmem:[#allocation7 + $0x248] sm:$0xff]
        %v345 = vld [vmem:[#allocation7 + $0x250] sm:$0xff]
        %v346 = vld [vmem:[#allocation7 + $0x258] sm:$0xff]
        %v347 = vld [vmem:[#allocation7 + $0x260] sm:$0xf]
        %v348 = vld [vmem:[#allocation7 + $0x264] sm:$0xff]
        %v349 = vld [vmem:[#allocation7 + $0x26c] sm:$0xff]
        %v350 = vld [vmem:[#allocation7 + $0x274] sm:$0xff]
        %v351 = vld [vmem:[#allocation7 + $0x27c] sm:$0xff]
        %v352 = vld [vmem:[#allocation7 + $0x284] sm:$0xf]
        %v353 = vld [vmem:[#allocation7 + $0x288] sm:$0xff]
        %v354 = vld [vmem:[#allocation7 + $0x290] sm:$0xff]
        %v355 = vld [vmem:[#allocation7 + $0x298] sm:$0xff]
        %v356 = vld [vmem:[#allocation7 + $0x2a0] sm:$0xff]
        %v357 = vld [vmem:[#allocation7 + $0x2a8] sm:$0xf]
        %v358 = vld [vmem:[#allocation7 + $0x2ac] sm:$0xff]
        %v359 = vld [vmem:[#allocation7 + $0x2b4] sm:$0xff]
        %v360 = vld [vmem:[#allocation7 + $0x2bc] sm:$0xff]
        %v361 = vld [vmem:[#allocation7 + $0x2c4] sm:$0xff]
        %v362 = vld [vmem:[#allocation7 + $0x2cc] sm:$0xf]
        %v363 = vld [vmem:[#allocation7 + $0x2d0] sm:$0xff]
        %v364 = vld [vmem:[#allocation7 + $0x2d8] sm:$0xff]
        %v365 = vld [vmem:[#allocation7 + $0x2e0] sm:$0xff]
        %v366 = vld [vmem:[#allocation7 + $0x2e8] sm:$0xff]
        %v367 = vld [vmem:[#allocation7 + $0x2f0] sm:$0xf]
        %v368 = vld [vmem:[#allocation7 + $0x2f4] sm:$0xff]
        %v369 = vld [vmem:[#allocation7 + $0x2fc] sm:$0xff]
        %v370 = vld [vmem:[#allocation7 + $0x304] sm:$0xff]
        %v371 = vld [vmem:[#allocation7 + $0x30c] sm:$0xff]
        %v372 = vld [vmem:[#allocation7 + $0x314] sm:$0xf]
        %v373 = vld [vmem:[#allocation7 + $0x318] sm:$0xff]
        %v374 = vld [vmem:[#allocation7 + $0x320] sm:$0xff]
        %v375 = vld [vmem:[#allocation7 + $0x328] sm:$0xff]
        %v376 = vld [vmem:[#allocation7 + $0x330] sm:$0xff]
        %v377 = vld [vmem:[#allocation7 + $0x338] sm:$0xf]
        %v378 = vld [vmem:[#allocation7 + $0x33c] sm:$0xff]
        %v379 = vld [vmem:[#allocation7 + $0x344] sm:$0xff]
        %v380 = vld [vmem:[#allocation7 + $0x34c] sm:$0xff]
        %v381 = vld [vmem:[#allocation7 + $0x354] sm:$0xff]
        %v382 = vld [vmem:[#allocation7 + $0x35c] sm:$0xf]
        %v383 = vld [vmem:[#allocation7 + $0x360] sm:$0xff]
        %v384 = vld [vmem:[#allocation7 + $0x368] sm:$0xff]
        %v385 = vld [vmem:[#allocation7 + $0x370] sm:$0xff]
        %v386 = vld [vmem:[#allocation7 + $0x378] sm:$0xff]
        %v387 = vld [vmem:[#allocation7 + $0x380] sm:$0xf]
        %v388 = vld [vmem:[#allocation7 + $0x384] sm:$0xff]
        %v389 = vld [vmem:[#allocation7 + $0x38c] sm:$0xff]
        %v390 = vld [vmem:[#allocation7 + $0x394] sm:$0xff]
        %v391 = vld [vmem:[#allocation7 + $0x39c] sm:$0xff]
        %v392 = vld [vmem:[#allocation7 + $0x3a4] sm:$0xf]
        %v393 = vld [vmem:[#allocation7 + $0x3a8] sm:$0xff]
        %v394 = vld [vmem:[#allocation7 + $0x3b0] sm:$0xff]
        %v395 = vld [vmem:[#allocation7 + $0x3b8] sm:$0xff]
        %v396 = vld [vmem:[#allocation7 + $0x3c0] sm:$0xff]
        %v397 = vld [vmem:[#allocation7 + $0x3c8] sm:$0xf]
        %v398 = vld [vmem:[#allocation7 + $0x3cc] sm:$0xff]
        %v399 = vld [vmem:[#allocation7 + $0x3d4] sm:$0xff]
        %v400 = vld [vmem:[#allocation7 + $0x3dc] sm:$0xff]
        %v401 = vld [vmem:[#allocation7 + $0x3e4] sm:$0xff]
        %v402 = vld [vmem:[#allocation7 + $0x3ec] sm:$0xf]
        %v403 = vld [vmem:[#allocation7 + $0x3f0] sm:$0xff]
        %v404 = vld [vmem:[#allocation7 + $0x3f8] sm:$0xff]
        %v405 = vld [vmem:[#allocation7 + $0x400] sm:$0xff]
        %v406 = vld [vmem:[#allocation7 + $0x408] sm:$0xff]
        %v407 = vld [vmem:[#allocation7 + $0x410] sm:$0xf]
        %v408 = vld [vmem:[#allocation7 + $0x414] sm:$0xff]
        %v409 = vld [vmem:[#allocation7 + $0x41c] sm:$0xff]
        %v410 = vld [vmem:[#allocation7 + $0x424] sm:$0xff]
        %v411 = vld [vmem:[#allocation7 + $0x42c] sm:$0xff]
        %v412 = vld [vmem:[#allocation7 + $0x434] sm:$0xf]
        %v413 = vld [vmem:[#allocation7 + $0x438] sm:$0xff]
        %v414 = vld [vmem:[#allocation7 + $0x440] sm:$0xff]
        %v415 = vld [vmem:[#allocation7 + $0x448] sm:$0xff]
        %v416 = vld [vmem:[#allocation7 + $0x450] sm:$0xff]
        %v417 = vld [vmem:[#allocation7 + $0x458] sm:$0xf]
        %v418 = vld [vmem:[#allocation7 + $0x45c] sm:$0xff]
        %v419 = vld [vmem:[#allocation7 + $0x464] sm:$0xff]
        %v420 = vld [vmem:[#allocation7 + $0x46c] sm:$0xff]
        %v421 = vld [vmem:[#allocation7 + $0x474] sm:$0xff]
        %v422 = vld [vmem:[#allocation7 + $0x47c] sm:$0xf]
        %v423 = vld [vmem:[#allocation7 + $0x480] sm:$0xff]
        %v424 = vld [vmem:[#allocation7 + $0x488] sm:$0xff]
        %v425 = vld [vmem:[#allocation7 + $0x490] sm:$0xff]
        %v426 = vld [vmem:[#allocation7 + $0x498] sm:$0xff]
        %v427 = vld [vmem:[#allocation7 + $0x4a0] sm:$0xf]
        %v428 = vld [vmem:[#allocation7 + $0x4a4] sm:$0xff]
        %v429 = vld [vmem:[#allocation7 + $0x4ac] sm:$0xff]
        %v430 = vld [vmem:[#allocation7 + $0x4b4] sm:$0xff]
        %v431 = vld [vmem:[#allocation7 + $0x4bc] sm:$0xff]
        %v432 = vld [vmem:[#allocation7 + $0x4c4] sm:$0xf]
        %v433 = vld [vmem:[#allocation7 + $0x4c8] sm:$0xff]
        %v434 = vld [vmem:[#allocation7 + $0x4d0] sm:$0xff]
        %v435 = vld [vmem:[#allocation7 + $0x4d8] sm:$0xff]
        %v436 = vld [vmem:[#allocation7 + $0x4e0] sm:$0xff]
        %v437 = vld [vmem:[#allocation7 + $0x4e8] sm:$0xf]
        %v438 = vld [vmem:[#allocation7 + $0x4ec] sm:$0xff]
        %v439 = vld [vmem:[#allocation7 + $0x4f4] sm:$0xff]
        %v440 = vld [vmem:[#allocation7 + $0x4fc] sm:$0xff]
        %v441 = vld [vmem:[#allocation7 + $0x504] sm:$0xff]
        %v442 = vld [vmem:[#allocation7 + $0x50c] sm:$0xf]
        %v443 = vld [vmem:[#allocation7 + $0x510] sm:$0xff]
        %v444 = vld [vmem:[#allocation7 + $0x518] sm:$0xff]
        %v445 = vld [vmem:[#allocation7 + $0x520] sm:$0xff]
        %v446 = vld [vmem:[#allocation7 + $0x528] sm:$0xff]
        %v447 = vld [vmem:[#allocation7 + $0x530] sm:$0xf]
        %v448 = vld [vmem:[#allocation7 + $0x534] sm:$0xff]
        %v449 = vld [vmem:[#allocation7 + $0x53c] sm:$0xff]
        %v450 = vld [vmem:[#allocation7 + $0x544] sm:$0xff]
        %v451 = vld [vmem:[#allocation7 + $0x54c] sm:$0xff]
        %v452 = vld [vmem:[#allocation7 + $0x554] sm:$0xf]
        %v453 = vld [vmem:[#allocation7 + $0x558] sm:$0xff]
        %v454 = vld [vmem:[#allocation7 + $0x560] sm:$0xff]
        %v455 = vld [vmem:[#allocation7 + $0x568] sm:$0xff]
        %v456 = vld [vmem:[#allocation7 + $0x570] sm:$0xff]
        %v457 = vld [vmem:[#allocation7 + $0x578] sm:$0xf]
        %v458 = vld [vmem:[#allocation7 + $0x57c] sm:$0xff]
        %v459 = vld [vmem:[#allocation7 + $0x584] sm:$0xff]
        %v460 = vld [vmem:[#allocation7 + $0x58c] sm:$0xff]
        %v461 = vld [vmem:[#allocation7 + $0x594] sm:$0xff]
        %v462 = vld [vmem:[#allocation7 + $0x59c] sm:$0xf]
        %v463 = vld [vmem:[#allocation7 + $0x5a0] sm:$0xff]
        %v464 = vld [vmem:[#allocation7 + $0x5a8] sm:$0xff]
        %v465 = vld [vmem:[#allocation7 + $0x5b0] sm:$0xff]
        %v466 = vld [vmem:[#allocation7 + $0x5b8] sm:$0xff]
        %v467 = vld [vmem:[#allocation7 + $0x5c0] sm:$0xf]
        %v468 = vld [vmem:[#allocation7 + $0x5c4] sm:$0xff]
        %v469 = vld [vmem:[#allocation7 + $0x5cc] sm:$0xff]
        %v470 = vld [vmem:[#allocation7 + $0x5d4] sm:$0xff]
        %v471 = vld [vmem:[#allocation7 + $0x5dc] sm:$0xff]
        %v472 = vld [vmem:[#allocation7 + $0x5e4] sm:$0xf]
        %v473 = vld [vmem:[#allocation7 + $0x5e8] sm:$0xff]
        %v474 = vld [vmem:[#allocation7 + $0x5f0] sm:$0xff]
        %v475 = vld [vmem:[#allocation7 + $0x5f8] sm:$0xff]
        %v476 = vld [vmem:[#allocation7 + $0x600] sm:$0xff]
        %v477 = vld [vmem:[#allocation7 + $0x608] sm:$0xf]
        %v478 = vld [vmem:[#allocation7 + $0x60c] sm:$0xff]
        %v479 = vld [vmem:[#allocation7 + $0x614] sm:$0xff]
        %v480 = vld [vmem:[#allocation7 + $0x61c] sm:$0xff]
        %v481 = vld [vmem:[#allocation7 + $0x624] sm:$0xff]
        %v482 = vld [vmem:[#allocation7 + $0x62c] sm:$0xf]
        %v483 = vld [vmem:[#allocation7 + $0x630] sm:$0xff]
        %v484 = vld [vmem:[#allocation7 + $0x638] sm:$0xff]
        %v485 = vld [vmem:[#allocation7 + $0x640] sm:$0xff]
        %v486 = vld [vmem:[#allocation7 + $0x648] sm:$0xff]
        %v487 = vld [vmem:[#allocation7 + $0x650] sm:$0xf]
        %v488 = vld [vmem:[#allocation7 + $0x654] sm:$0xff]
        %v489 = vld [vmem:[#allocation7 + $0x65c] sm:$0xff]
        %v490 = vld [vmem:[#allocation7 + $0x664] sm:$0xff]
        %v491 = vld [vmem:[#allocation7 + $0x66c] sm:$0xff]
        %v492 = vld [vmem:[#allocation7 + $0x674] sm:$0xf]
        %v493 = vld [vmem:[#allocation7 + $0x678] sm:$0xff]
        %v494 = vld [vmem:[#allocation7 + $0x680] sm:$0xff]
        %v495 = vld [vmem:[#allocation7 + $0x688] sm:$0xff]
        %v496 = vld [vmem:[#allocation7 + $0x690] sm:$0xff]
        %v497 = vld [vmem:[#allocation7 + $0x698] sm:$0xf]
        %v498 = vld [vmem:[#allocation7 + $0x69c] sm:$0xff]
        %v499 = vld [vmem:[#allocation7 + $0x6a4] sm:$0xff]
        %v500 = vld [vmem:[#allocation7 + $0x6ac] sm:$0xff]
        %v501 = vld [vmem:[#allocation7 + $0x6b4] sm:$0xff]
        %v502 = vld [vmem:[#allocation7 + $0x6bc] sm:$0xf]
        %v743 = vunpack.c.l.b16 %v263
        %v744 = vunpack.c.h.b16 %v263
        %v745 = vunpack.c.l.b16 %v264
        %v746 = vunpack.c.h.b16 %v264
        %v747 = vunpack.c.l.b16 %v265
        %v748 = vunpack.c.h.b16 %v265
        %v749 = vunpack.c.l.b16 %v266
        %v750 = vunpack.c.h.b16 %v266
        %v751 = vunpack.c.l.b16 %v267
        %v752 = vunpack.c.l.b16 %v268
        %v753 = vunpack.c.h.b16 %v268
        %v754 = vunpack.c.l.b16 %v269
        %v755 = vunpack.c.h.b16 %v269
        %v756 = vunpack.c.l.b16 %v270
        %v757 = vunpack.c.h.b16 %v270
        %v758 = vunpack.c.l.b16 %v271
        %v759 = vunpack.c.h.b16 %v271
        %v760 = vunpack.c.l.b16 %v272
        %v761 = vunpack.c.l.b16 %v273
        %v762 = vunpack.c.h.b16 %v273
        %v763 = vunpack.c.l.b16 %v274
        %v764 = vunpack.c.h.b16 %v274
        %v765 = vunpack.c.l.b16 %v275
        %v766 = vunpack.c.h.b16 %v275
        %v767 = vunpack.c.l.b16 %v276
        %v768 = vunpack.c.h.b16 %v276
        %v769 = vunpack.c.l.b16 %v277
        %v770 = vunpack.c.l.b16 %v278
        %v771 = vunpack.c.h.b16 %v278
        %v772 = vunpack.c.l.b16 %v279
        %v773 = vunpack.c.h.b16 %v279
        %v774 = vunpack.c.l.b16 %v280
        %v775 = vunpack.c.h.b16 %v280
        %v776 = vunpack.c.l.b16 %v281
        %v777 = vunpack.c.h.b16 %v281
        %v778 = vunpack.c.l.b16 %v282
        %v779 = vunpack.c.l.b16 %v283
        %v780 = vunpack.c.h.b16 %v283
        %v781 = vunpack.c.l.b16 %v284
        %v782 = vunpack.c.h.b16 %v284
        %v783 = vunpack.c.l.b16 %v285
        %v784 = vunpack.c.h.b16 %v285
        %v785 = vunpack.c.l.b16 %v286
        %v786 = vunpack.c.h.b16 %v286
        %v787 = vunpack.c.l.b16 %v287
        %v788 = vunpack.c.l.b16 %v288
        %v789 = vunpack.c.h.b16 %v288
        %v790 = vunpack.c.l.b16 %v289
        %v791 = vunpack.c.h.b16 %v289
        %v792 = vunpack.c.l.b16 %v290
        %v793 = vunpack.c.h.b16 %v290
        %v794 = vunpack.c.l.b16 %v291
        %v795 = vunpack.c.h.b16 %v291
        %v796 = vunpack.c.l.b16 %v292
        %v797 = vunpack.c.l.b16 %v293
        %v798 = vunpack.c.h.b16 %v293
        %v799 = vunpack.c.l.b16 %v294
        %v800 = vunpack.c.h.b16 %v294
        %v801 = vunpack.c.l.b16 %v295
        %v802 = vunpack.c.h.b16 %v295
        %v803 = vunpack.c.l.b16 %v296
        %v804 = vunpack.c.h.b16 %v296
        %v805 = vunpack.c.l.b16 %v297
        %v806 = vunpack.c.l.b16 %v298
        %v807 = vunpack.c.h.b16 %v298
        %v808 = vunpack.c.l.b16 %v299
        %v809 = vunpack.c.h.b16 %v299
        %v810 = vunpack.c.l.b16 %v300
        %v811 = vunpack.c.h.b16 %v300
        %v812 = vunpack.c.l.b16 %v301
        %v813 = vunpack.c.h.b16 %v301
        %v814 = vunpack.c.l.b16 %v302
        %v815 = vunpack.c.l.b16 %v303
        %v816 = vunpack.c.h.b16 %v303
        %v817 = vunpack.c.l.b16 %v304
        %v818 = vunpack.c.h.b16 %v304
        %v819 = vunpack.c.l.b16 %v305
        %v820 = vunpack.c.h.b16 %v305
        %v821 = vunpack.c.l.b16 %v306
        %v822 = vunpack.c.h.b16 %v306
        %v823 = vunpack.c.l.b16 %v307
        %v824 = vunpack.c.l.b16 %v308
        %v825 = vunpack.c.h.b16 %v308
        %v826 = vunpack.c.l.b16 %v309
        %v827 = vunpack.c.h.b16 %v309
        %v828 = vunpack.c.l.b16 %v310
        %v829 = vunpack.c.h.b16 %v310
        %v830 = vunpack.c.l.b16 %v311
        %v831 = vunpack.c.h.b16 %v311
        %v832 = vunpack.c.l.b16 %v312
        %v833 = vunpack.c.l.b16 %v313
        %v834 = vunpack.c.h.b16 %v313
        %v835 = vunpack.c.l.b16 %v314
        %v836 = vunpack.c.h.b16 %v314
        %v837 = vunpack.c.l.b16 %v315
        %v838 = vunpack.c.h.b16 %v315
        %v839 = vunpack.c.l.b16 %v316
        %v840 = vunpack.c.h.b16 %v316
        %v841 = vunpack.c.l.b16 %v317
        %v842 = vunpack.c.l.b16 %v318
        %v843 = vunpack.c.h.b16 %v318
        %v844 = vunpack.c.l.b16 %v319
        %v845 = vunpack.c.h.b16 %v319
        %v846 = vunpack.c.l.b16 %v320
        %v847 = vunpack.c.h.b16 %v320
        %v848 = vunpack.c.l.b16 %v321
        %v849 = vunpack.c.h.b16 %v321
        %v850 = vunpack.c.l.b16 %v322
        %v851 = vunpack.c.l.b16 %v323
        %v852 = vunpack.c.h.b16 %v323
        %v853 = vunpack.c.l.b16 %v324
        %v854 = vunpack.c.h.b16 %v324
        %v855 = vunpack.c.l.b16 %v325
        %v856 = vunpack.c.h.b16 %v325
        %v857 = vunpack.c.l.b16 %v326
        %v858 = vunpack.c.h.b16 %v326
        %v859 = vunpack.c.l.b16 %v327
        %v860 = vunpack.c.l.b16 %v328
        %v861 = vunpack.c.h.b16 %v328
        %v862 = vunpack.c.l.b16 %v329
        %v863 = vunpack.c.h.b16 %v329
        %v864 = vunpack.c.l.b16 %v330
        %v865 = vunpack.c.h.b16 %v330
        %v866 = vunpack.c.l.b16 %v331
        %v867 = vunpack.c.h.b16 %v331
        %v868 = vunpack.c.l.b16 %v332
        %v869 = vunpack.c.l.b16 %v333
        %v870 = vunpack.c.h.b16 %v333
        %v871 = vunpack.c.l.b16 %v334
        %v872 = vunpack.c.h.b16 %v334
        %v873 = vunpack.c.l.b16 %v335
        %v874 = vunpack.c.h.b16 %v335
        %v875 = vunpack.c.l.b16 %v336
        %v876 = vunpack.c.h.b16 %v336
        %v877 = vunpack.c.l.b16 %v337
        %v878 = vunpack.c.l.b16 %v338
        %v879 = vunpack.c.h.b16 %v338
        %v880 = vunpack.c.l.b16 %v339
        %v881 = vunpack.c.h.b16 %v339
        %v882 = vunpack.c.l.b16 %v340
        %v883 = vunpack.c.h.b16 %v340
        %v884 = vunpack.c.l.b16 %v341
        %v885 = vunpack.c.h.b16 %v341
        %v886 = vunpack.c.l.b16 %v342
        %v887 = vunpack.c.l.b16 %v343
        %v888 = vunpack.c.h.b16 %v343
        %v889 = vunpack.c.l.b16 %v344
        %v890 = vunpack.c.h.b16 %v344
        %v891 = vunpack.c.l.b16 %v345
        %v892 = vunpack.c.h.b16 %v345
        %v893 = vunpack.c.l.b16 %v346
        %v894 = vunpack.c.h.b16 %v346
        %v895 = vunpack.c.l.b16 %v347
        %v896 = vunpack.c.l.b16 %v348
        %v897 = vunpack.c.h.b16 %v348
        %v898 = vunpack.c.l.b16 %v349
        %v899 = vunpack.c.h.b16 %v349
        %v900 = vunpack.c.l.b16 %v350
        %v901 = vunpack.c.h.b16 %v350
        %v902 = vunpack.c.l.b16 %v351
        %v903 = vunpack.c.h.b16 %v351
        %v904 = vunpack.c.l.b16 %v352
        %v905 = vunpack.c.l.b16 %v353
        %v906 = vunpack.c.h.b16 %v353
        %v907 = vunpack.c.l.b16 %v354
        %v908 = vunpack.c.h.b16 %v354
        %v909 = vunpack.c.l.b16 %v355
        %v910 = vunpack.c.h.b16 %v355
        %v911 = vunpack.c.l.b16 %v356
        %v912 = vunpack.c.h.b16 %v356
        %v913 = vunpack.c.l.b16 %v357
        %v914 = vunpack.c.l.b16 %v358
        %v915 = vunpack.c.h.b16 %v358
        %v916 = vunpack.c.l.b16 %v359
        %v917 = vunpack.c.h.b16 %v359
        %v918 = vunpack.c.l.b16 %v360
        %v919 = vunpack.c.h.b16 %v360
        %v920 = vunpack.c.l.b16 %v361
        %v921 = vunpack.c.h.b16 %v361
        %v922 = vunpack.c.l.b16 %v362
        %v923 = vunpack.c.l.b16 %v363
        %v924 = vunpack.c.h.b16 %v363
        %v925 = vunpack.c.l.b16 %v364
        %v926 = vunpack.c.h.b16 %v364
        %v927 = vunpack.c.l.b16 %v365
        %v928 = vunpack.c.h.b16 %v365
        %v929 = vunpack.c.l.b16 %v366
        %v930 = vunpack.c.h.b16 %v366
        %v931 = vunpack.c.l.b16 %v367
        %v932 = vunpack.c.l.b16 %v368
        %v933 = vunpack.c.h.b16 %v368
        %v934 = vunpack.c.l.b16 %v369
        %v935 = vunpack.c.h.b16 %v369
        %v936 = vunpack.c.l.b16 %v370
        %v937 = vunpack.c.h.b16 %v370
        %v938 = vunpack.c.l.b16 %v371
        %v939 = vunpack.c.h.b16 %v371
        %v940 = vunpack.c.l.b16 %v372
        %v941 = vunpack.c.l.b16 %v373
        %v942 = vunpack.c.h.b16 %v373
        %v943 = vunpack.c.l.b16 %v374
        %v944 = vunpack.c.h.b16 %v374
        %v945 = vunpack.c.l.b16 %v375
        %v946 = vunpack.c.h.b16 %v375
        %v947 = vunpack.c.l.b16 %v376
        %v948 = vunpack.c.h.b16 %v376
        %v949 = vunpack.c.l.b16 %v377
        %v950 = vunpack.c.l.b16 %v378
        %v951 = vunpack.c.h.b16 %v378
        %v952 = vunpack.c.l.b16 %v379
        %v953 = vunpack.c.h.b16 %v379
        %v954 = vunpack.c.l.b16 %v380
        %v955 = vunpack.c.h.b16 %v380
        %v956 = vunpack.c.l.b16 %v381
        %v957 = vunpack.c.h.b16 %v381
        %v958 = vunpack.c.l.b16 %v382
        %v959 = vunpack.c.l.b16 %v383
        %v960 = vunpack.c.h.b16 %v383
        %v961 = vunpack.c.l.b16 %v384
        %v962 = vunpack.c.h.b16 %v384
        %v963 = vunpack.c.l.b16 %v385
        %v964 = vunpack.c.h.b16 %v385
        %v965 = vunpack.c.l.b16 %v386
        %v966 = vunpack.c.h.b16 %v386
        %v967 = vunpack.c.l.b16 %v387
        %v968 = vunpack.c.l.b16 %v388
        %v969 = vunpack.c.h.b16 %v388
        %v970 = vunpack.c.l.b16 %v389
        %v971 = vunpack.c.h.b16 %v389
        %v972 = vunpack.c.l.b16 %v390
        %v973 = vunpack.c.h.b16 %v390
        %v974 = vunpack.c.l.b16 %v391
        %v975 = vunpack.c.h.b16 %v391
        %v976 = vunpack.c.l.b16 %v392
        %v977 = vunpack.c.l.b16 %v393
        %v978 = vunpack.c.h.b16 %v393
        %v979 = vunpack.c.l.b16 %v394
        %v980 = vunpack.c.h.b16 %v394
        %v981 = vunpack.c.l.b16 %v395
        %v982 = vunpack.c.h.b16 %v395
        %v983 = vunpack.c.l.b16 %v396
        %v984 = vunpack.c.h.b16 %v396
        %v985 = vunpack.c.l.b16 %v397
        %v986 = vunpack.c.l.b16 %v398
        %v987 = vunpack.c.h.b16 %v398
        %v988 = vunpack.c.l.b16 %v399
        %v989 = vunpack.c.h.b16 %v399
        %v990 = vunpack.c.l.b16 %v400
        %v991 = vunpack.c.h.b16 %v400
        %v992 = vunpack.c.l.b16 %v401
        %v993 = vunpack.c.h.b16 %v401
        %v994 = vunpack.c.l.b16 %v402
        %v995 = vunpack.c.l.b16 %v403
        %v996 = vunpack.c.h.b16 %v403
        %v997 = vunpack.c.l.b16 %v404
        %v998 = vunpack.c.h.b16 %v404
        %v999 = vunpack.c.l.b16 %v405
        %v1000 = vunpack.c.h.b16 %v405
        %v1001 = vunpack.c.l.b16 %v406
        %v1002 = vunpack.c.h.b16 %v406
        %v1003 = vunpack.c.l.b16 %v407
        %v1004 = vunpack.c.l.b16 %v408
        %v1005 = vunpack.c.h.b16 %v408
        %v1006 = vunpack.c.l.b16 %v409
        %v1007 = vunpack.c.h.b16 %v409
        %v1008 = vunpack.c.l.b16 %v410
        %v1009 = vunpack.c.h.b16 %v410
        %v1010 = vunpack.c.l.b16 %v411
        %v1011 = vunpack.c.h.b16 %v411
        %v1012 = vunpack.c.l.b16 %v412
        %v1013 = vunpack.c.l.b16 %v413
        %v1014 = vunpack.c.h.b16 %v413
        %v1015 = vunpack.c.l.b16 %v414
        %v1016 = vunpack.c.h.b16 %v414
        %v1017 = vunpack.c.l.b16 %v415
        %v1018 = vunpack.c.h.b16 %v415
        %v1019 = vunpack.c.l.b16 %v416
        %v1020 = vunpack.c.h.b16 %v416
        %v1021 = vunpack.c.l.b16 %v417
        %v1022 = vunpack.c.l.b16 %v418
        %v1023 = vunpack.c.h.b16 %v418
        %v1024 = vunpack.c.l.b16 %v419
        %v1025 = vunpack.c.h.b16 %v419
        %v1026 = vunpack.c.l.b16 %v420
        %v1027 = vunpack.c.h.b16 %v420
        %v1028 = vunpack.c.l.b16 %v421
        %v1029 = vunpack.c.h.b16 %v421
        %v1030 = vunpack.c.l.b16 %v422
        %v1031 = vunpack.c.l.b16 %v423
        %v1032 = vunpack.c.h.b16 %v423
        %v1033 = vunpack.c.l.b16 %v424
        %v1034 = vunpack.c.h.b16 %v424
        %v1035 = vunpack.c.l.b16 %v425
        %v1036 = vunpack.c.h.b16 %v425
        %v1037 = vunpack.c.l.b16 %v426
        %v1038 = vunpack.c.h.b16 %v426
        %v1039 = vunpack.c.l.b16 %v427
        %v1040 = vunpack.c.l.b16 %v428
        %v1041 = vunpack.c.h.b16 %v428
        %v1042 = vunpack.c.l.b16 %v429
        %v1043 = vunpack.c.h.b16 %v429
        %v1044 = vunpack.c.l.b16 %v430
        %v1045 = vunpack.c.h.b16 %v430
        %v1046 = vunpack.c.l.b16 %v431
        %v1047 = vunpack.c.h.b16 %v431
        %v1048 = vunpack.c.l.b16 %v432
        %v1049 = vunpack.c.l.b16 %v433
        %v1050 = vunpack.c.h.b16 %v433
        %v1051 = vunpack.c.l.b16 %v434
        %v1052 = vunpack.c.h.b16 %v434
        %v1053 = vunpack.c.l.b16 %v435
        %v1054 = vunpack.c.h.b16 %v435
        %v1055 = vunpack.c.l.b16 %v436
        %v1056 = vunpack.c.h.b16 %v436
        %v1057 = vunpack.c.l.b16 %v437
        %v1058 = vunpack.c.l.b16 %v438
        %v1059 = vunpack.c.h.b16 %v438
        %v1060 = vunpack.c.l.b16 %v439
        %v1061 = vunpack.c.h.b16 %v439
        %v1062 = vunpack.c.l.b16 %v440
        %v1063 = vunpack.c.h.b16 %v440
        %v1064 = vunpack.c.l.b16 %v441
        %v1065 = vunpack.c.h.b16 %v441
        %v1066 = vunpack.c.l.b16 %v442
        %v1067 = vunpack.c.l.b16 %v443
        %v1068 = vunpack.c.h.b16 %v443
        %v1069 = vunpack.c.l.b16 %v444
        %v1070 = vunpack.c.h.b16 %v444
        %v1071 = vunpack.c.l.b16 %v445
        %v1072 = vunpack.c.h.b16 %v445
        %v1073 = vunpack.c.l.b16 %v446
        %v1074 = vunpack.c.h.b16 %v446
        %v1075 = vunpack.c.l.b16 %v447
        %v1076 = vunpack.c.l.b16 %v448
        %v1077 = vunpack.c.h.b16 %v448
        %v1078 = vunpack.c.l.b16 %v449
        %v1079 = vunpack.c.h.b16 %v449
        %v1080 = vunpack.c.l.b16 %v450
        %v1081 = vunpack.c.h.b16 %v450
        %v1082 = vunpack.c.l.b16 %v451
        %v1083 = vunpack.c.h.b16 %v451
        %v1084 = vunpack.c.l.b16 %v452
        %v1085 = vunpack.c.l.b16 %v453
        %v1086 = vunpack.c.h.b16 %v453
        %v1087 = vunpack.c.l.b16 %v454
        %v1088 = vunpack.c.h.b16 %v454
        %v1089 = vunpack.c.l.b16 %v455
        %v1090 = vunpack.c.h.b16 %v455
        %v1091 = vunpack.c.l.b16 %v456
        %v1092 = vunpack.c.h.b16 %v456
        %v1093 = vunpack.c.l.b16 %v457
        %v1094 = vunpack.c.l.b16 %v458
        %v1095 = vunpack.c.h.b16 %v458
        %v1096 = vunpack.c.l.b16 %v459
        %v1097 = vunpack.c.h.b16 %v459
        %v1098 = vunpack.c.l.b16 %v460
        %v1099 = vunpack.c.h.b16 %v460
        %v1100 = vunpack.c.l.b16 %v461
        %v1101 = vunpack.c.h.b16 %v461
        %v1102 = vunpack.c.l.b16 %v462
        %v1103 = vunpack.c.l.b16 %v463
        %v1104 = vunpack.c.h.b16 %v463
        %v1105 = vunpack.c.l.b16 %v464
        %v1106 = vunpack.c.h.b16 %v464
        %v1107 = vunpack.c.l.b16 %v465
        %v1108 = vunpack.c.h.b16 %v465
        %v1109 = vunpack.c.l.b16 %v466
        %v1110 = vunpack.c.h.b16 %v466
        %v1111 = vunpack.c.l.b16 %v467
        %v1112 = vunpack.c.l.b16 %v468
        %v1113 = vunpack.c.h.b16 %v468
        %v1114 = vunpack.c.l.b16 %v469
        %v1115 = vunpack.c.h.b16 %v469
        %v1116 = vunpack.c.l.b16 %v470
        %v1117 = vunpack.c.h.b16 %v470
        %v1118 = vunpack.c.l.b16 %v471
        %v1119 = vunpack.c.h.b16 %v471
        %v1120 = vunpack.c.l.b16 %v472
        %v1121 = vunpack.c.l.b16 %v473
        %v1122 = vunpack.c.h.b16 %v473
        %v1123 = vunpack.c.l.b16 %v474
        %v1124 = vunpack.c.h.b16 %v474
        %v1125 = vunpack.c.l.b16 %v475
        %v1126 = vunpack.c.h.b16 %v475
        %v1127 = vunpack.c.l.b16 %v476
        %v1128 = vunpack.c.h.b16 %v476
        %v1129 = vunpack.c.l.b16 %v477
        %v1130 = vunpack.c.l.b16 %v478
        %v1131 = vunpack.c.h.b16 %v478
        %v1132 = vunpack.c.l.b16 %v479
        %v1133 = vunpack.c.h.b16 %v479
        %v1134 = vunpack.c.l.b16 %v480
        %v1135 = vunpack.c.h.b16 %v480
        %v1136 = vunpack.c.l.b16 %v481
        %v1137 = vunpack.c.h.b16 %v481
        %v1138 = vunpack.c.l.b16 %v482
        %v1139 = vunpack.c.l.b16 %v483
        %v1140 = vunpack.c.h.b16 %v483
        %v1141 = vunpack.c.l.b16 %v484
        %v1142 = vunpack.c.h.b16 %v484
        %v1143 = vunpack.c.l.b16 %v485
        %v1144 = vunpack.c.h.b16 %v485
        %v1145 = vunpack.c.l.b16 %v486
        %v1146 = vunpack.c.h.b16 %v486
        %v1147 = vunpack.c.l.b16 %v487
        %v1148 = vunpack.c.l.b16 %v488
        %v1149 = vunpack.c.h.b16 %v488
        %v1150 = vunpack.c.l.b16 %v489
        %v1151 = vunpack.c.h.b16 %v489
        %v1152 = vunpack.c.l.b16 %v490
        %v1153 = vunpack.c.h.b16 %v490
        %v1154 = vunpack.c.l.b16 %v491
        %v1155 = vunpack.c.h.b16 %v491
        %v1156 = vunpack.c.l.b16 %v492
        %v1157 = vunpack.c.l.b16 %v493
        %v1158 = vunpack.c.h.b16 %v493
        %v1159 = vunpack.c.l.b16 %v494
        %v1160 = vunpack.c.h.b16 %v494
        %v1161 = vunpack.c.l.b16 %v495
        %v1162 = vunpack.c.h.b16 %v495
        %v1163 = vunpack.c.l.b16 %v496
        %v1164 = vunpack.c.h.b16 %v496
        %v1165 = vunpack.c.l.b16 %v497
        %v1166 = vunpack.c.l.b16 %v498
        %v1167 = vunpack.c.h.b16 %v498
        %v1168 = vunpack.c.l.b16 %v499
        %v1169 = vunpack.c.h.b16 %v499
        %v1170 = vunpack.c.l.b16 %v500
        %v1171 = vunpack.c.h.b16 %v500
        %v1172 = vunpack.c.l.b16 %v501
        %v1173 = vunpack.c.h.b16 %v501
        %v1174 = vunpack.c.l.b16 %v502
        %v1175 = vpack.c.b16 %v752, %v743
        %v1176 = vpack.c.b16 %v753, %v744
        %v1177 = vpack.c.b16 %v754, %v745
        %v1178 = vpack.c.b16 %v755, %v746
        %v1179 = vpack.c.b16 %v756, %v747
        %v1180 = vpack.c.b16 %v757, %v748
        %v1181 = vpack.c.b16 %v758, %v749
        %v1182 = vpack.c.b16 %v759, %v750
        %v1183 = vpack.c.b16 %v760, %v751
        %v1184 = vpack.c.b16 %v770, %v761
        %v1185 = vpack.c.b16 %v771, %v762
        %v1186 = vpack.c.b16 %v772, %v763
        %v1187 = vpack.c.b16 %v773, %v764
        %v1188 = vpack.c.b16 %v774, %v765
        %v1189 = vpack.c.b16 %v775, %v766
        %v1190 = vpack.c.b16 %v776, %v767
        %v1191 = vpack.c.b16 %v777, %v768
        %v1192 = vpack.c.b16 %v778, %v769
        %v1193 = vpack.c.b16 %v788, %v779
        %v1194 = vpack.c.b16 %v789, %v780
        %v1195 = vpack.c.b16 %v790, %v781
        %v1196 = vpack.c.b16 %v791, %v782
        %v1197 = vpack.c.b16 %v792, %v783
        %v1198 = vpack.c.b16 %v793, %v784
        %v1199 = vpack.c.b16 %v794, %v785
        %v1200 = vpack.c.b16 %v795, %v786
        %v1201 = vpack.c.b16 %v796, %v787
        %v1202 = vpack.c.b16 %v806, %v797
        %v1203 = vpack.c.b16 %v807, %v798
        %v1204 = vpack.c.b16 %v808, %v799
        %v1205 = vpack.c.b16 %v809, %v800
        %v1206 = vpack.c.b16 %v810, %v801
        %v1207 = vpack.c.b16 %v811, %v802
        %v1208 = vpack.c.b16 %v812, %v803
        %v1209 = vpack.c.b16 %v813, %v804
        %v1210 = vpack.c.b16 %v814, %v805
        %v1211 = vpack.c.b16 %v824, %v815
        %v1212 = vpack.c.b16 %v825, %v816
        %v1213 = vpack.c.b16 %v826, %v817
        %v1214 = vpack.c.b16 %v827, %v818
        %v1215 = vpack.c.b16 %v828, %v819
        %v1216 = vpack.c.b16 %v829, %v820
        %v1217 = vpack.c.b16 %v830, %v821
        %v1218 = vpack.c.b16 %v831, %v822
        %v1219 = vpack.c.b16 %v832, %v823
        %v1220 = vpack.c.b16 %v842, %v833
        %v1221 = vpack.c.b16 %v843, %v834
        %v1222 = vpack.c.b16 %v844, %v835
        %v1223 = vpack.c.b16 %v845, %v836
        %v1224 = vpack.c.b16 %v846, %v837
        %v1225 = vpack.c.b16 %v847, %v838
        %v1226 = vpack.c.b16 %v848, %v839
        %v1227 = vpack.c.b16 %v849, %v840
        %v1228 = vpack.c.b16 %v850, %v841
        %v1229 = vpack.c.b16 %v860, %v851
        %v1230 = vpack.c.b16 %v861, %v852
        %v1231 = vpack.c.b16 %v862, %v853
        %v1232 = vpack.c.b16 %v863, %v854
        %v1233 = vpack.c.b16 %v864, %v855
        %v1234 = vpack.c.b16 %v865, %v856
        %v1235 = vpack.c.b16 %v866, %v857
        %v1236 = vpack.c.b16 %v867, %v858
        %v1237 = vpack.c.b16 %v868, %v859
        %v1238 = vpack.c.b16 %v878, %v869
        %v1239 = vpack.c.b16 %v879, %v870
        %v1240 = vpack.c.b16 %v880, %v871
        %v1241 = vpack.c.b16 %v881, %v872
        %v1242 = vpack.c.b16 %v882, %v873
        %v1243 = vpack.c.b16 %v883, %v874
        %v1244 = vpack.c.b16 %v884, %v875
        %v1245 = vpack.c.b16 %v885, %v876
        %v1246 = vpack.c.b16 %v886, %v877
        %v1247 = vpack.c.b16 %v896, %v887
        %v1248 = vpack.c.b16 %v897, %v888
        %v1249 = vpack.c.b16 %v898, %v889
        %v1250 = vpack.c.b16 %v899, %v890
        %v1251 = vpack.c.b16 %v900, %v891
        %v1252 = vpack.c.b16 %v901, %v892
        %v1253 = vpack.c.b16 %v902, %v893
        %v1254 = vpack.c.b16 %v903, %v894
        %v1255 = vpack.c.b16 %v904, %v895
        %v1256 = vpack.c.b16 %v914, %v905
        %v1257 = vpack.c.b16 %v915, %v906
        %v1258 = vpack.c.b16 %v916, %v907
        %v1259 = vpack.c.b16 %v917, %v908
        %v1260 = vpack.c.b16 %v918, %v909
        %v1261 = vpack.c.b16 %v919, %v910
        %v1262 = vpack.c.b16 %v920, %v911
        %v1263 = vpack.c.b16 %v921, %v912
        %v1264 = vpack.c.b16 %v922, %v913
        %v1265 = vpack.c.b16 %v932, %v923
        %v1266 = vpack.c.b16 %v933, %v924
        %v1267 = vpack.c.b16 %v934, %v925
        %v1268 = vpack.c.b16 %v935, %v926
        %v1269 = vpack.c.b16 %v936, %v927
        %v1270 = vpack.c.b16 %v937, %v928
        %v1271 = vpack.c.b16 %v938, %v929
        %v1272 = vpack.c.b16 %v939, %v930
        %v1273 = vpack.c.b16 %v940, %v931
        %v1274 = vpack.c.b16 %v950, %v941
        %v1275 = vpack.c.b16 %v951, %v942
        %v1276 = vpack.c.b16 %v952, %v943
        %v1277 = vpack.c.b16 %v953, %v944
        %v1278 = vpack.c.b16 %v954, %v945
        %v1279 = vpack.c.b16 %v955, %v946
        %v1280 = vpack.c.b16 %v956, %v947
        %v1281 = vpack.c.b16 %v957, %v948
        %v1282 = vpack.c.b16 %v958, %v949
        %v1283 = vpack.c.b16 %v968, %v959
        %v1284 = vpack.c.b16 %v969, %v960
        %v1285 = vpack.c.b16 %v970, %v961
        %v1286 = vpack.c.b16 %v971, %v962
        %v1287 = vpack.c.b16 %v972, %v963
        %v1288 = vpack.c.b16 %v973, %v964
        %v1289 = vpack.c.b16 %v974, %v965
        %v1290 = vpack.c.b16 %v975, %v966
        %v1291 = vpack.c.b16 %v976, %v967
        %v1292 = vpack.c.b16 %v986, %v977
        %v1293 = vpack.c.b16 %v987, %v978
        %v1294 = vpack.c.b16 %v988, %v979
        %v1295 = vpack.c.b16 %v989, %v980
        %v1296 = vpack.c.b16 %v990, %v981
        %v1297 = vpack.c.b16 %v991, %v982
        %v1298 = vpack.c.b16 %v992, %v983
        %v1299 = vpack.c.b16 %v993, %v984
        %v1300 = vpack.c.b16 %v994, %v985
        %v1301 = vpack.c.b16 %v1004, %v995
        %v1302 = vpack.c.b16 %v1005, %v996
        %v1303 = vpack.c.b16 %v1006, %v997
        %v1304 = vpack.c.b16 %v1007, %v998
        %v1305 = vpack.c.b16 %v1008, %v999
        %v1306 = vpack.c.b16 %v1009, %v1000
        %v1307 = vpack.c.b16 %v1010, %v1001
        %v1308 = vpack.c.b16 %v1011, %v1002
        %v1309 = vpack.c.b16 %v1012, %v1003
        %v1310 = vpack.c.b16 %v1022, %v1013
        %v1311 = vpack.c.b16 %v1023, %v1014
        %v1312 = vpack.c.b16 %v1024, %v1015
        %v1313 = vpack.c.b16 %v1025, %v1016
        %v1314 = vpack.c.b16 %v1026, %v1017
        %v1315 = vpack.c.b16 %v1027, %v1018
        %v1316 = vpack.c.b16 %v1028, %v1019
        %v1317 = vpack.c.b16 %v1029, %v1020
        %v1318 = vpack.c.b16 %v1030, %v1021
        %v1319 = vpack.c.b16 %v1040, %v1031
        %v1320 = vpack.c.b16 %v1041, %v1032
        %v1321 = vpack.c.b16 %v1042, %v1033
        %v1322 = vpack.c.b16 %v1043, %v1034
        %v1323 = vpack.c.b16 %v1044, %v1035
        %v1324 = vpack.c.b16 %v1045, %v1036
        %v1325 = vpack.c.b16 %v1046, %v1037
        %v1326 = vpack.c.b16 %v1047, %v1038
        %v1327 = vpack.c.b16 %v1048, %v1039
        %v1328 = vpack.c.b16 %v1058, %v1049
        %v1329 = vpack.c.b16 %v1059, %v1050
        %v1330 = vpack.c.b16 %v1060, %v1051
        %v1331 = vpack.c.b16 %v1061, %v1052
        %v1332 = vpack.c.b16 %v1062, %v1053
        %v1333 = vpack.c.b16 %v1063, %v1054
        %v1334 = vpack.c.b16 %v1064, %v1055
        %v1335 = vpack.c.b16 %v1065, %v1056
        %v1336 = vpack.c.b16 %v1066, %v1057
        %v1337 = vpack.c.b16 %v1076, %v1067
        %v1338 = vpack.c.b16 %v1077, %v1068
        %v1339 = vpack.c.b16 %v1078, %v1069
        %v1340 = vpack.c.b16 %v1079, %v1070
        %v1341 = vpack.c.b16 %v1080, %v1071
        %v1342 = vpack.c.b16 %v1081, %v1072
        %v1343 = vpack.c.b16 %v1082, %v1073
        %v1344 = vpack.c.b16 %v1083, %v1074
        %v1345 = vpack.c.b16 %v1084, %v1075
        %v1346 = vpack.c.b16 %v1094, %v1085
        %v1347 = vpack.c.b16 %v1095, %v1086
        %v1348 = vpack.c.b16 %v1096, %v1087
        %v1349 = vpack.c.b16 %v1097, %v1088
        %v1350 = vpack.c.b16 %v1098, %v1089
        %v1351 = vpack.c.b16 %v1099, %v1090
        %v1352 = vpack.c.b16 %v1100, %v1091
        %v1353 = vpack.c.b16 %v1101, %v1092
        %v1354 = vpack.c.b16 %v1102, %v1093
        %v1355 = vpack.c.b16 %v1112, %v1103
        %v1356 = vpack.c.b16 %v1113, %v1104
        %v1357 = vpack.c.b16 %v1114, %v1105
        %v1358 = vpack.c.b16 %v1115, %v1106
        %v1359 = vpack.c.b16 %v1116, %v1107
        %v1360 = vpack.c.b16 %v1117, %v1108
        %v1361 = vpack.c.b16 %v1118, %v1109
        %v1362 = vpack.c.b16 %v1119, %v1110
        %v1363 = vpack.c.b16 %v1120, %v1111
        %v1364 = vpack.c.b16 %v1130, %v1121
        %v1365 = vpack.c.b16 %v1131, %v1122
        %v1366 = vpack.c.b16 %v1132, %v1123
        %v1367 = vpack.c.b16 %v1133, %v1124
        %v1368 = vpack.c.b16 %v1134, %v1125
        %v1369 = vpack.c.b16 %v1135, %v1126
        %v1370 = vpack.c.b16 %v1136, %v1127
        %v1371 = vpack.c.b16 %v1137, %v1128
        %v1372 = vpack.c.b16 %v1138, %v1129
        %v1373 = vpack.c.b16 %v1148, %v1139
        %v1374 = vpack.c.b16 %v1149, %v1140
        %v1375 = vpack.c.b16 %v1150, %v1141
        %v1376 = vpack.c.b16 %v1151, %v1142
        %v1377 = vpack.c.b16 %v1152, %v1143
        %v1378 = vpack.c.b16 %v1153, %v1144
        %v1379 = vpack.c.b16 %v1154, %v1145
        %v1380 = vpack.c.b16 %v1155, %v1146
        %v1381 = vpack.c.b16 %v1156, %v1147
        %v1382 = vpack.c.b16 %v1166, %v1157
        %v1383 = vpack.c.b16 %v1167, %v1158
        %v1384 = vpack.c.b16 %v1168, %v1159
        %v1385 = vpack.c.b16 %v1169, %v1160
        %v1386 = vpack.c.b16 %v1170, %v1161
        %v1387 = vpack.c.b16 %v1171, %v1162
        %v1388 = vpack.c.b16 %v1172, %v1163
        %v1389 = vpack.c.b16 %v1173, %v1164
        %v1390 = vpack.c.b16 %v1174, %v1165
        %1607 = vmatprep.subr.bf16.mxu0 %v1176
        %1608 = vmatpush1.bf16.msra.mxu0 %v1175
        %1609 = vmatprep.subr.bf16.mxu0 %v1185
        %1610 = vmatpush1.bf16.msra.mxu0 %v1184
        %1611 = vmatprep.subr.bf16.mxu0 %v1194
        %1612 = vmatpush1.bf16.msra.mxu0 %v1193
        %1613 = vmatprep.subr.bf16.mxu0 %v1203
        %1614 = vmatpush1.bf16.msra.mxu0 %v1202
        %1615 = vmatprep.subr.bf16.mxu0 %v1212
        %1616 = vmatpush1.bf16.msra.mxu0 %v1211
        %1617 = vmatprep.subr.bf16.mxu0 %v1221
        %1618 = vmatpush1.bf16.msra.mxu0 %v1220
        %1619 = vmatprep.subr.bf16.mxu0 %v1230
        %1620 = vmatpush1.bf16.msra.mxu0 %v1229
        %1621 = vmatprep.subr.bf16.mxu0 %v1239
        %1622 = vmatpush1.bf16.msra.mxu0 %v1238
        %1623 = vmatprep.subr.bf16.mxu0 %v1248
        %1624 = vmatpush1.bf16.msra.mxu0 %v1247
        %1625 = vmatprep.subr.bf16.mxu0 %v1257
        %1626 = vmatpush1.bf16.msra.mxu0 %v1256
        %1627 = vmatprep.subr.bf16.mxu0 %v1266
        %1628 = vmatpush1.bf16.msra.mxu0 %v1265
        %1629 = vmatprep.subr.bf16.mxu0 %v1275
        %1630 = vmatpush1.bf16.msra.mxu0 %v1274
        %1631 = vmatprep.subr.bf16.mxu0 %v1284
        %1632 = vmatpush1.bf16.msra.mxu0 %v1283
        %1633 = vmatprep.subr.bf16.mxu0 %v1293
        %1634 = vmatpush1.bf16.msra.mxu0 %v1292
        %1635 = vmatprep.subr.bf16.mxu0 %v1302
        %1636 = vmatpush1.bf16.msra.mxu0 %v1301
        %1637 = vmatprep.subr.bf16.mxu0 %v1311
        %1638 = vmatpush1.bf16.msra.mxu0 %v1310
        %1639 = vmatprep.mubr.bf16.mxu0 %v261
        %1640 = vmatmul.mubr.bf16.gmra.mrb[0].mxu0 %v260
        %v1641 = vpop.f32.mrb[0].mxu0
        %v1642 = vadd.f32 0.0, %v1641
        %v1643 = vpop.f32.mrb[0].mxu0
        %v1644 = vadd.f32 0.0, %v1643
        %v1645 = vpop.f32.mrb[0].mxu0
        %v1646 = vpop.f32.mrb[0].mxu0
        %1647 = vdwg.mxu0
        %1648 = vmatprep.subr.bf16.mxu0 %v1320
        %1649 = vmatpush1.bf16.msra.mxu0 %v1319
        %1650 = vmatprep.subr.bf16.mxu0 %v1329
        %1651 = vmatpush1.bf16.msra.mxu0 %v1328
        %1652 = vmatprep.subr.bf16.mxu0 %v1338
        %1653 = vmatpush1.bf16.msra.mxu0 %v1337
        %1654 = vmatprep.subr.bf16.mxu0 %v1347
        %1655 = vmatpush1.bf16.msra.mxu0 %v1346
        %1656 = vmatprep.subr.bf16.mxu0 %v1356
        %1657 = vmatpush1.bf16.msra.mxu0 %v1355
        %1658 = vmatprep.subr.bf16.mxu0 %v1365
        %1659 = vmatpush1.bf16.msra.mxu0 %v1364
        %1660 = vmatprep.subr.bf16.mxu0 %v1374
        %1661 = vmatpush1.bf16.msra.mxu0 %v1373
        %1662 = vmatprep.subr.bf16.mxu0 %v1383
        %1663 = vmatpush1.bf16.msra.mxu0 %v1382
        %1664 = vmatprep.subr.bf16.mxu0 0
        %1665 = vmatpush1.bf16.msra.mxu0 0
        %1666 = vmatprep.subr.bf16.mxu0 0
        %1667 = vmatpush1.bf16.msra.mxu0 0
        %1668 = vmatprep.subr.bf16.mxu0 0
        %1669 = vmatpush1.bf16.msra.mxu0 0
        %1670 = vmatprep.subr.bf16.mxu0 0
        %1671 = vmatpush1.bf16.msra.mxu0 0
        %1672 = vmatprep.subr.bf16.mxu0 0
        %1673 = vmatpush1.bf16.msra.mxu0 0
        %1674 = vmatprep.subr.bf16.mxu0 0
        %1675 = vmatpush1.bf16.msra.mxu0 0
        %1676 = vmatprep.subr.bf16.mxu0 0
        %1677 = vmatpush1.bf16.msra.mxu0 0
        %1678 = vmatprep.subr.bf16.mxu0 0
        %1679 = vmatpush1.bf16.msra.mxu0 0
        %1680 = vmatprep.mubr.bf16.mxu0 0
        %1681 = vmatmul.mubr.bf16.gmra.mrb[0].mxu0 %v262
        %v1682 = vpop.f32.mrb[0].mxu0
        %v1683 = vadd.f32 %v1642, %v1682
        %v1684 = vpop.f32.mrb[0].mxu0
        %v1685 = vadd.f32 %v1644, %v1684
        %v1686 = vpop.f32.mrb[0].mxu0
        %v1687 = vpop.f32.mrb[0].mxu0
        %1688 = vdwg.mxu0
        %1689 = vmatprep.subr.bf16.mxu0 %v1178
        %1690 = vmatpush1.bf16.msra.mxu0 %v1177
        %1691 = vmatprep.subr.bf16.mxu0 %v1187
        %1692 = vmatpush1.bf16.msra.mxu0 %v1186
        %1693 = vmatprep.subr.bf16.mxu0 %v1196
        %1694 = vmatpush1.bf16.msra.mxu0 %v1195
        %1695 = vmatprep.subr.bf16.mxu0 %v1205
        %1696 = vmatpush1.bf16.msra.mxu0 %v1204
        %1697 = vmatprep.subr.bf16.mxu0 %v1214
        %1698 = vmatpush1.bf16.msra.mxu0 %v1213
        %1699 = vmatprep.subr.bf16.mxu0 %v1223
        %1700 = vmatpush1.bf16.msra.mxu0 %v1222
        %1701 = vmatprep.subr.bf16.mxu0 %v1232
        %1702 = vmatpush1.bf16.msra.mxu0 %v1231
        %1703 = vmatprep.subr.bf16.mxu0 %v1241
        %1704 = vmatpush1.bf16.msra.mxu0 %v1240
        %1705 = vmatprep.subr.bf16.mxu0 %v1250
        %1706 = vmatpush1.bf16.msra.mxu0 %v1249
        %1707 = vmatprep.subr.bf16.mxu0 %v1259
        %1708 = vmatpush1.bf16.msra.mxu0 %v1258
        %1709 = vmatprep.subr.bf16.mxu0 %v1268
        %1710 = vmatpush1.bf16.msra.mxu0 %v1267
        %1711 = vmatprep.subr.bf16.mxu0 %v1277
        %1712 = vmatpush1.bf16.msra.mxu0 %v1276
        %1713 = vmatprep.subr.bf16.mxu0 %v1286
        %1714 = vmatpush1.bf16.msra.mxu0 %v1285
        %1715 = vmatprep.subr.bf16.mxu0 %v1295
        %1716 = vmatpush1.bf16.msra.mxu0 %v1294
        %1717 = vmatprep.subr.bf16.mxu0 %v1304
        %1718 = vmatpush1.bf16.msra.mxu0 %v1303
        %1719 = vmatprep.subr.bf16.mxu0 %v1313
        %1720 = vmatpush1.bf16.msra.mxu0 %v1312
        %1721 = vmatprep.mubr.bf16.mxu0 %v261
        %1722 = vmatmul.mubr.bf16.gmra.mrb[0].mxu0 %v260
        %v1723 = vpop.f32.mrb[0].mxu0
        %v1724 = vadd.f32 0.0, %v1723
        %v1725 = vpop.f32.mrb[0].mxu0
        %v1726 = vadd.f32 0.0, %v1725
        %v1727 = vpop.f32.mrb[0].mxu0
        %v1728 = vpop.f32.mrb[0].mxu0
        %1729 = vdwg.mxu0
        %1730 = vmatprep.subr.bf16.mxu0 %v1322
        %1731 = vmatpush1.bf16.msra.mxu0 %v1321
        %1732 = vmatprep.subr.bf16.mxu0 %v1331
        %1733 = vmatpush1.bf16.msra.mxu0 %v1330
        %1734 = vmatprep.subr.bf16.mxu0 %v1340
        %1735 = vmatpush1.bf16.msra.mxu0 %v1339
        %1736 = vmatprep.subr.bf16.mxu0 %v1349
        %1737 = vmatpush1.bf16.msra.mxu0 %v1348
        %1738 = vmatprep.subr.bf16.mxu0 %v1358
        %1739 = vmatpush1.bf16.msra.mxu0 %v1357
        %1740 = vmatprep.subr.bf16.mxu0 %v1367
        %1741 = vmatpush1.bf16.msra.mxu0 %v1366
        %1742 = vmatprep.subr.bf16.mxu0 %v1376
        %1743 = vmatpush1.bf16.msra.mxu0 %v1375
        %1744 = vmatprep.subr.bf16.mxu0 %v1385
        %1745 = vmatpush1.bf16.msra.mxu0 %v1384
        %1746 = vmatprep.subr.bf16.mxu0 0
        %1747 = vmatpush1.bf16.msra.mxu0 0
        %1748 = vmatprep.subr.bf16.mxu0 0
        %1749 = vmatpush1.bf16.msra.mxu0 0
        %1750 = vmatprep.subr.bf16.mxu0 0
        %1751 = vmatpush1.bf16.msra.mxu0 0
        %1752 = vmatprep.subr.bf16.mxu0 0
        %1753 = vmatpush1.bf16.msra.mxu0 0
        %1754 = vmatprep.subr.bf16.mxu0 0
        %1755 = vmatpush1.bf16.msra.mxu0 0
        %1756 = vmatprep.subr.bf16.mxu0 0
        %1757 = vmatpush1.bf16.msra.mxu0 0
        %1758 = vmatprep.subr.bf16.mxu0 0
        %1759 = vmatpush1.bf16.msra.mxu0 0
        %1760 = vmatprep.subr.bf16.mxu0 0
        %1761 = vmatpush1.bf16.msra.mxu0 0
        %1762 = vmatprep.mubr.bf16.mxu0 0
        %1763 = vmatmul.mubr.bf16.gmra.mrb[0].mxu0 %v262
        %v1764 = vpop.f32.mrb[0].mxu0
        %v1765 = vadd.f32 %v1724, %v1764
        %v1766 = vpop.f32.mrb[0].mxu0
        %v1767 = vadd.f32 %v1726, %v1766
        %v1768 = vpop.f32.mrb[0].mxu0
        %v1769 = vpop.f32.mrb[0].mxu0
        %1770 = vdwg.mxu0
        %1771 = vmatprep.subr.bf16.mxu0 %v1180
        %1772 = vmatpush1.bf16.msra.mxu0 %v1179
        %1773 = vmatprep.subr.bf16.mxu0 %v1189
        %1774 = vmatpush1.bf16.msra.mxu0 %v1188
        %1775 = vmatprep.subr.bf16.mxu0 %v1198
        %1776 = vmatpush1.bf16.msra.mxu0 %v1197
        %1777 = vmatprep.subr.bf16.mxu0 %v1207
        %1778 = vmatpush1.bf16.msra.mxu0 %v1206
        %1779 = vmatprep.subr.bf16.mxu0 %v1216
        %1780 = vmatpush1.bf16.msra.mxu0 %v1215
        %1781 = vmatprep.subr.bf16.mxu0 %v1225
        %1782 = vmatpush1.bf16.msra.mxu0 %v1224
        %1783 = vmatprep.subr.bf16.mxu0 %v1234
        %1784 = vmatpush1.bf16.msra.mxu0 %v1233
        %1785 = vmatprep.subr.bf16.mxu0 %v1243
        %1786 = vmatpush1.bf16.msra.mxu0 %v1242
        %1787 = vmatprep.subr.bf16.mxu0 %v1252
        %1788 = vmatpush1.bf16.msra.mxu0 %v1251
        %1789 = vmatprep.subr.bf16.mxu0 %v1261
        %1790 = vmatpush1.bf16.msra.mxu0 %v1260
        %1791 = vmatprep.subr.bf16.mxu0 %v1270
        %1792 = vmatpush1.bf16.msra.mxu0 %v1269
        %1793 = vmatprep.subr.bf16.mxu0 %v1279
        %1794 = vmatpush1.bf16.msra.mxu0 %v1278
        %1795 = vmatprep.subr.bf16.mxu0 %v1288
        %1796 = vmatpush1.bf16.msra.mxu0 %v1287
        %1797 = vmatprep.subr.bf16.mxu0 %v1297
        %1798 = vmatpush1.bf16.msra.mxu0 %v1296
        %1799 = vmatprep.subr.bf16.mxu0 %v1306
        %1800 = vmatpush1.bf16.msra.mxu0 %v1305
        %1801 = vmatprep.subr.bf16.mxu0 %v1315
        %1802 = vmatpush1.bf16.msra.mxu0 %v1314
        %1803 = vmatprep.mubr.bf16.mxu0 %v261
        %1804 = vmatmul.mubr.bf16.gmra.mrb[0].mxu0 %v260
        %v1805 = vpop.f32.mrb[0].mxu0
        %v1806 = vadd.f32 0.0, %v1805
        %v1807 = vpop.f32.mrb[0].mxu0
        %v1808 = vadd.f32 0.0, %v1807
        %v1809 = vpop.f32.mrb[0].mxu0
        %v1810 = vpop.f32.mrb[0].mxu0
        %1811 = vdwg.mxu0
        %1812 = vmatprep.subr.bf16.mxu0 %v1324
        %1813 = vmatpush1.bf16.msra.mxu0 %v1323
        %1814 = vmatprep.subr.bf16.mxu0 %v1333
        %1815 = vmatpush1.bf16.msra.mxu0 %v1332
        %1816 = vmatprep.subr.bf16.mxu0 %v1342
        %1817 = vmatpush1.bf16.msra.mxu0 %v1341
        %1818 = vmatprep.subr.bf16.mxu0 %v1351
        %1819 = vmatpush1.bf16.msra.mxu0 %v1350
        %1820 = vmatprep.subr.bf16.mxu0 %v1360
        %1821 = vmatpush1.bf16.msra.mxu0 %v1359
        %1822 = vmatprep.subr.bf16.mxu0 %v1369
        %1823 = vmatpush1.bf16.msra.mxu0 %v1368
        %1824 = vmatprep.subr.bf16.mxu0 %v1378
        %1825 = vmatpush1.bf16.msra.mxu0 %v1377
        %1826 = vmatprep.subr.bf16.mxu0 %v1387
        %1827 = vmatpush1.bf16.msra.mxu0 %v1386
        %1828 = vmatprep.subr.bf16.mxu0 0
        %1829 = vmatpush1.bf16.msra.mxu0 0
        %1830 = vmatprep.subr.bf16.mxu0 0
        %1831 = vmatpush1.bf16.msra.mxu0 0
        %1832 = vmatprep.subr.bf16.mxu0 0
        %1833 = vmatpush1.bf16.msra.mxu0 0
        %1834 = vmatprep.subr.bf16.mxu0 0
        %1835 = vmatpush1.bf16.msra.mxu0 0
        %1836 = vmatprep.subr.bf16.mxu0 0
        %1837 = vmatpush1.bf16.msra.mxu0 0
        %1838 = vmatprep.subr.bf16.mxu0 0
        %1839 = vmatpush1.bf16.msra.mxu0 0
        %1840 = vmatprep.subr.bf16.mxu0 0
        %1841 = vmatpush1.bf16.msra.mxu0 0
        %1842 = vmatprep.subr.bf16.mxu0 0
        %1843 = vmatpush1.bf16.msra.mxu0 0
        %1844 = vmatprep.mubr.bf16.mxu0 0
        %1845 = vmatmul.mubr.bf16.gmra.mrb[0].mxu0 %v262
        %v1846 = vpop.f32.mrb[0].mxu0
        %v1847 = vadd.f32 %v1806, %v1846
        %v1848 = vpop.f32.mrb[0].mxu0
        %v1849 = vadd.f32 %v1808, %v1848
        %v1850 = vpop.f32.mrb[0].mxu0
        %v1851 = vpop.f32.mrb[0].mxu0
        %1852 = vdwg.mxu0
        %1853 = vmatprep.subr.bf16.mxu0 %v1182
        %1854 = vmatpush1.bf16.msra.mxu0 %v1181
        %1855 = vmatprep.subr.bf16.mxu0 %v1191
        %1856 = vmatpush1.bf16.msra.mxu0 %v1190
        %1857 = vmatprep.subr.bf16.mxu0 %v1200
        %1858 = vmatpush1.bf16.msra.mxu0 %v1199
        %1859 = vmatprep.subr.bf16.mxu0 %v1209
        %1860 = vmatpush1.bf16.msra.mxu0 %v1208
        %1861 = vmatprep.subr.bf16.mxu0 %v1218
        %1862 = vmatpush1.bf16.msra.mxu0 %v1217
        %1863 = vmatprep.subr.bf16.mxu0 %v1227
        %1864 = vmatpush1.bf16.msra.mxu0 %v1226
        %1865 = vmatprep.subr.bf16.mxu0 %v1236
        %1866 = vmatpush1.bf16.msra.mxu0 %v1235
        %1867 = vmatprep.subr.bf16.mxu0 %v1245
        %1868 = vmatpush1.bf16.msra.mxu0 %v1244
        %1869 = vmatprep.subr.bf16.mxu0 %v1254
        %1870 = vmatpush1.bf16.msra.mxu0 %v1253
        %1871 = vmatprep.subr.bf16.mxu0 %v1263
        %1872 = vmatpush1.bf16.msra.mxu0 %v1262
        %1873 = vmatprep.subr.bf16.mxu0 %v1272
        %1874 = vmatpush1.bf16.msra.mxu0 %v1271
        %1875 = vmatprep.subr.bf16.mxu0 %v1281
        %1876 = vmatpush1.bf16.msra.mxu0 %v1280
        %1877 = vmatprep.subr.bf16.mxu0 %v1290
        %1878 = vmatpush1.bf16.msra.mxu0 %v1289
        %1879 = vmatprep.subr.bf16.mxu0 %v1299
        %1880 = vmatpush1.bf16.msra.mxu0 %v1298
        %1881 = vmatprep.subr.bf16.mxu0 %v1308
        %1882 = vmatpush1.bf16.msra.mxu0 %v1307
        %1883 = vmatprep.subr.bf16.mxu0 %v1317
        %1884 = vmatpush1.bf16.msra.mxu0 %v1316
        %1885 = vmatprep.mubr.bf16.mxu0 %v261
        %1886 = vmatmul.mubr.bf16.gmra.mrb[0].mxu0 %v260
        %v1887 = vpop.f32.mrb[0].mxu0
        %v1888 = vadd.f32 0.0, %v1887
        %v1889 = vpop.f32.mrb[0].mxu0
        %v1890 = vadd.f32 0.0, %v1889
        %v1891 = vpop.f32.mrb[0].mxu0
        %v1892 = vpop.f32.mrb[0].mxu0
        %1893 = vdwg.mxu0
        %1894 = vmatprep.subr.bf16.mxu0 %v1326
        %1895 = vmatpush1.bf16.msra.mxu0 %v1325
        %1896 = vmatprep.subr.bf16.mxu0 %v1335
        %1897 = vmatpush1.bf16.msra.mxu0 %v1334
        %1898 = vmatprep.subr.bf16.mxu0 %v1344
        %1899 = vmatpush1.bf16.msra.mxu0 %v1343
        %1900 = vmatprep.subr.bf16.mxu0 %v1353
        %1901 = vmatpush1.bf16.msra.mxu0 %v1352
        %1902 = vmatprep.subr.bf16.mxu0 %v1362
        %1903 = vmatpush1.bf16.msra.mxu0 %v1361
        %1904 = vmatprep.subr.bf16.mxu0 %v1371
        %1905 = vmatpush1.bf16.msra.mxu0 %v1370
        %1906 = vmatprep.subr.bf16.mxu0 %v1380
        %1907 = vmatpush1.bf16.msra.mxu0 %v1379
        %1908 = vmatprep.subr.bf16.mxu0 %v1389
        %1909 = vmatpush1.bf16.msra.mxu0 %v1388
        %1910 = vmatprep.subr.bf16.mxu0 0
        %1911 = vmatpush1.bf16.msra.mxu0 0
        %1912 = vmatprep.subr.bf16.mxu0 0
        %1913 = vmatpush1.bf16.msra.mxu0 0
        %1914 = vmatprep.subr.bf16.mxu0 0
        %1915 = vmatpush1.bf16.msra.mxu0 0
        %1916 = vmatprep.subr.bf16.mxu0 0
        %1917 = vmatpush1.bf16.msra.mxu0 0
        %1918 = vmatprep.subr.bf16.mxu0 0
        %1919 = vmatpush1.bf16.msra.mxu0 0
        %1920 = vmatprep.subr.bf16.mxu0 0
        %1921 = vmatpush1.bf16.msra.mxu0 0
        %1922 = vmatprep.subr.bf16.mxu0 0
        %1923 = vmatpush1.bf16.msra.mxu0 0
        %1924 = vmatprep.subr.bf16.mxu0 0
        %1925 = vmatpush1.bf16.msra.mxu0 0
        %1926 = vmatprep.mubr.bf16.mxu0 0
        %1927 = vmatmul.mubr.bf16.gmra.mrb[0].mxu0 %v262
        %v1928 = vpop.f32.mrb[0].mxu0
        %v1929 = vadd.f32 %v1888, %v1928
        %v1930 = vpop.f32.mrb[0].mxu0
        %v1931 = vadd.f32 %v1890, %v1930
        %v1932 = vpop.f32.mrb[0].mxu0
        %v1933 = vpop.f32.mrb[0].mxu0
        %1934 = vdwg.mxu0
        %1935 = vmatprep.subr.bf16.mxu0 0
        %1936 = vmatpush1.bf16.msra.mxu0 %v1183
        %1937 = vmatprep.subr.bf16.mxu0 0
        %1938 = vmatpush1.bf16.msra.mxu0 %v1192
        %1939 = vmatprep.subr.bf16.mxu0 0
        %1940 = vmatpush1.bf16.msra.mxu0 %v1201
        %1941 = vmatprep.subr.bf16.mxu0 0
        %1942 = vmatpush1.bf16.msra.mxu0 %v1210
        %1943 = vmatprep.subr.bf16.mxu0 0
        %1944 = vmatpush1.bf16.msra.mxu0 %v1219
        %1945 = vmatprep.subr.bf16.mxu0 0
        %1946 = vmatpush1.bf16.msra.mxu0 %v1228
        %1947 = vmatprep.subr.bf16.mxu0 0
        %1948 = vmatpush1.bf16.msra.mxu0 %v1237
        %1949 = vmatprep.subr.bf16.mxu0 0
        %1950 = vmatpush1.bf16.msra.mxu0 %v1246
        %1951 = vmatprep.subr.bf16.mxu0 0
        %1952 = vmatpush1.bf16.msra.mxu0 %v1255
        %1953 = vmatprep.subr.bf16.mxu0 0
        %1954 = vmatpush1.bf16.msra.mxu0 %v1264
        %1955 = vmatprep.subr.bf16.mxu0 0
        %1956 = vmatpush1.bf16.msra.mxu0 %v1273
        %1957 = vmatprep.subr.bf16.mxu0 0
        %1958 = vmatpush1.bf16.msra.mxu0 %v1282
        %1959 = vmatprep.subr.bf16.mxu0 0
        %1960 = vmatpush1.bf16.msra.mxu0 %v1291
        %1961 = vmatprep.subr.bf16.mxu0 0
        %1962 = vmatpush1.bf16.msra.mxu0 %v1300
        %1963 = vmatprep.subr.bf16.mxu0 0
        %1964 = vmatpush1.bf16.msra.mxu0 %v1309
        %1965 = vmatprep.subr.bf16.mxu0 0
        %1966 = vmatpush1.bf16.msra.mxu0 %v1318
        %1967 = vmatprep.mubr.bf16.mxu0 %v261
        %1968 = vmatmul.mubr.bf16.gmra.mrb[0].mxu0 %v260
        %v1969 = vpop.f32.mrb[0].mxu0
        %v1970 = vadd.f32 0.0, %v1969
        %v1971 = vpop.f32.mrb[0].mxu0
        %v1972 = vpop.f32.mrb[0].mxu0
        %v1973 = vpop.f32.mrb[0].mxu0
        %1974 = vdwg.mxu0
        %1975 = vmatprep.subr.bf16.mxu0 0
        %1976 = vmatpush1.bf16.msra.mxu0 %v1327
        %1977 = vmatprep.subr.bf16.mxu0 0
        %1978 = vmatpush1.bf16.msra.mxu0 %v1336
        %1979 = vmatprep.subr.bf16.mxu0 0
        %1980 = vmatpush1.bf16.msra.mxu0 %v1345
        %1981 = vmatprep.subr.bf16.mxu0 0
        %1982 = vmatpush1.bf16.msra.mxu0 %v1354
        %1983 = vmatprep.subr.bf16.mxu0 0
        %1984 = vmatpush1.bf16.msra.mxu0 %v1363
        %1985 = vmatprep.subr.bf16.mxu0 0
        %1986 = vmatpush1.bf16.msra.mxu0 %v1372
        %1987 = vmatprep.subr.bf16.mxu0 0
        %1988 = vmatpush1.bf16.msra.mxu0 %v1381
        %1989 = vmatprep.subr.bf16.mxu0 0
        %1990 = vmatpush1.bf16.msra.mxu0 %v1390
        %1991 = vmatprep.subr.bf16.mxu0 0
        %1992 = vmatpush1.bf16.msra.mxu0 0
        %1993 = vmatprep.subr.bf16.mxu0 0
        %1994 = vmatpush1.bf16.msra.mxu0 0
        %1995 = vmatprep.subr.bf16.mxu0 0
        %1996 = vmatpush1.bf16.msra.mxu0 0
        %1997 = vmatprep.subr.bf16.mxu0 0
        %1998 = vmatpush1.bf16.msra.mxu0 0
        %1999 = vmatprep.subr.bf16.mxu0 0
        %2000 = vmatpush1.bf16.msra.mxu0 0
        %2001 = vmatprep.subr.bf16.mxu0 0
        %2002 = vmatpush1.bf16.msra.mxu0 0
        %2003 = vmatprep.subr.bf16.mxu0 0
        %2004 = vmatpush1.bf16.msra.mxu0 0
        %2005 = vmatprep.subr.bf16.mxu0 0
        %2006 = vmatpush1.bf16.msra.mxu0 0
        %2007 = vmatprep.mubr.bf16.mxu0 0
        %2008 = vmatmul.mubr.bf16.gmra.mrb[0].mxu0 %v262
        %v2009 = vpop.f32.mrb[0].mxu0
        %v2010 = vadd.f32 %v1970, %v2009
        %v2011 = vpop.f32.mrb[0].mxu0
        %v2012 = vpop.f32.mrb[0].mxu0
        %v2013 = vpop.f32.mrb[0].mxu0
        %2014 = vdwg.mxu0
        %v2015 = vpack.c.bf16 %v1683, %v1683
        %v2016 = vpack.c.bf16 %v1685, %v1685
        %v2017 = vpack.c.bf16 %v1765, %v1765
        %v2018 = vpack.c.bf16 %v1767, %v1767
        %v2019 = vpack.c.bf16 %v1847, %v1847
        %v2020 = vpack.c.bf16 %v1849, %v1849
        %v2021 = vpack.c.bf16 %v1929, %v1929
        %v2022 = vpack.c.bf16 %v1931, %v1931
        %v2023 = vpack.c.bf16 %v2010, %v2010
        %v2033 = vunpack.c.l.b16 %v2015
        %v2034 = vunpack.c.l.b16 %v2016
        %v2035 = vunpack.c.l.b16 %v2017
        %v2036 = vunpack.c.l.b16 %v2018
        %v2037 = vunpack.c.l.b16 %v2019
        %v2038 = vunpack.c.l.b16 %v2020
        %v2039 = vunpack.c.l.b16 %v2021
        %v2040 = vunpack.c.l.b16 %v2022
        %v2041 = vunpack.c.l.b16 %v2023
        %v2042 = vpack.c.b16 %v2034, %v2033
        %v2043 = vpack.c.b16 %v2036, %v2035
        %v2044 = vpack.c.b16 %v2038, %v2037
        %v2045 = vpack.c.b16 %v2040, %v2039
        %v2046 = vpack.c.b16 %v2041, %v2041
        %2052 = vst [vmem:[#allocation2] sm:$0xff] %v2042
        %2053 = vst [vmem:[#allocation2 + $0x8] sm:$0xff] %v2043
        %2054 = vst [vmem:[#allocation2 + $0x10] sm:$0xff] %v2044
        %2055 = vst [vmem:[#allocation2 + $0x18] sm:$0xff] %v2045
        %2056 = vst [vmem:[#allocation2 + $0x20] sm:$0xf] %v2046
        %v2057 = vlaneseq
        %v2058 = vshrl.u32 %v2057, 7
        %v2059 = vlaneseq
        %v2060 = vand.u32 %v2059, 127
        %vm2061 = vcmp.le.s32.totalorder %v2060, %v2058
        %v2062 = vsel %vm2061, 0.0, -1e+30
        %v2063 = vld [vmem:[#allocation2] sm:$0xf]
        %v2064 = vld [vmem:[#allocation2 + $0xc] sm:$0xf]
        %v2065 = vld [vmem:[#allocation2 + $0x18] sm:$0xf]
        %vm2066 = vcmask 523264
        %v2068 = vsel %vm2066, %v2063, 0
        %v2071 = vsel %vm2066, %v2064, 0
        %2073 = vmatprep.subr.bf16.mxu0 0
        %2074 = vmatpush1.bf16.xpose.msra.mxu0 %v2071
        %2075 = vmatprep.subr.bf16.mxu0 0
        %2076 = vmatpush1.bf16.xpose.msra.mxu0 0
        %2077 = vmatprep.subr.bf16.mxu0 0
        %2078 = vmatpush1.bf16.xpose.msra.mxu0 0
        %2079 = vmatprep.subr.bf16.mxu0 0
        %2080 = vmatpush1.bf16.xpose.msra.mxu0 0
        %2081 = vmatprep.subr.bf16.mxu0 0
        %2082 = vmatpush1.bf16.xpose.msra.mxu0 0
        %2083 = vmatprep.subr.bf16.mxu0 0
        %2084 = vmatpush1.bf16.xpose.msra.mxu0 0
        %2085 = vmatprep.subr.bf16.mxu0 0
        %2086 = vmatpush1.bf16.xpose.msra.mxu0 0
        %2087 = vmatprep.subr.bf16.mxu0 0
        %2088 = vmatpush1.bf16.xpose.msra.mxu0 0
        %2089 = vmatprep.subr.bf16.mxu0 0
        %2090 = vmatpush1.bf16.xpose.msra.mxu0 0
        %2091 = vmatprep.subr.bf16.mxu0 0
        %2092 = vmatpush1.bf16.xpose.msra.mxu0 0
        %2093 = vmatprep.subr.bf16.mxu0 0
        %2094 = vmatpush1.bf16.xpose.msra.mxu0 0
        %2095 = vmatprep.subr.bf16.mxu0 0
        %2096 = vmatpush1.bf16.xpose.msra.mxu0 0
        %2097 = vmatprep.subr.bf16.mxu0 0
        %2098 = vmatpush1.bf16.xpose.msra.mxu0 0
        %2099 = vmatprep.subr.bf16.mxu0 0
        %2100 = vmatpush1.bf16.xpose.msra.mxu0 0
        %2101 = vmatprep.subr.bf16.mxu0 0
        %2102 = vmatpush1.bf16.xpose.msra.mxu0 0
        %2103 = vmatprep.subr.bf16.mxu0 0
        %2104 = vmatpush1.bf16.xpose.msra.mxu0 0
        %2105 = vmatprep.mubr.bf16.mxu0 0
        %2106 = vmatmul.mubr.bf16.gmra.mrb[0].mxu0 %v2068
        %v2107 = vpop.f32.mrb[0].mxu0
        %v2108 = vadd.f32 %v2062, %v2107
        %v2109 = vpop.f32.mrb[0].mxu0
        %v2110 = vpop.f32.mrb[0].mxu0
        %v2111 = vpop.f32.mrb[0].mxu0
        %2112 = vdwg.mxu0
        %vm2113 = vcmask 64512
        %v2114 = vsel %vm2113, %v2108, -inf
        %2115 = vmax.xlane.f32.xlu0 %v2114
        %v2116 = vpop.xlane.xlu0 %2115
        %v2117 = vsub.f32 %v2108, %v2116
        %v2118 = vpack.c.bf16 %v2117, %v2117
        %v2120 = vmul.bf16 %v2118, 1069105081
        %v2121 = vpow.bf16.pop %v2120
        %v2122 = vunpack.c.l.bf16 %v2121
        %v2123 = vsel %vm2113, %v2122, 0.0
        %2124 = vadd.xlane.f32.xlu0 %v2123
        %v2125 = vpop.xlane.xlu0 %2124
        %v2127 = vsel %vm2113, %v2121, 0
        %vm2129 = vcmask 1043456
        %v2131 = vsel %vm2129, %v2065, 0
        %2133 = vmatprep.subr.bf16.mxu0 0
        %2134 = vmatpush1.bf16.msra.mxu0 %v2131
        %2135 = vmatprep.subr.bf16.mxu0 0
        %2136 = vmatpush1.bf16.msra.mxu0 0
        %2137 = vmatprep.subr.bf16.mxu0 0
        %2138 = vmatpush1.bf16.msra.mxu0 0
        %2139 = vmatprep.subr.bf16.mxu0 0
        %2140 = vmatpush1.bf16.msra.mxu0 0
        %2141 = vmatprep.subr.bf16.mxu0 0
        %2142 = vmatpush1.bf16.msra.mxu0 0
        %2143 = vmatprep.subr.bf16.mxu0 0
        %2144 = vmatpush1.bf16.msra.mxu0 0
        %2145 = vmatprep.subr.bf16.mxu0 0
        %2146 = vmatpush1.bf16.msra.mxu0 0
        %2147 = vmatprep.subr.bf16.mxu0 0
        %2148 = vmatpush1.bf16.msra.mxu0 0
        %2149 = vmatprep.subr.bf16.mxu0 0
        %2150 = vmatpush1.bf16.msra.mxu0 0
        %2151 = vmatprep.subr.bf16.mxu0 0
        %2152 = vmatpush1.bf16.msra.mxu0 0
        %2153 = vmatprep.subr.bf16.mxu0 0
        %2154 = vmatpush1.bf16.msra.mxu0 0
        %2155 = vmatprep.subr.bf16.mxu0 0
        %2156 = vmatpush1.bf16.msra.mxu0 0
        %2157 = vmatprep.subr.bf16.mxu0 0
        %2158 = vmatpush1.bf16.msra.mxu0 0
        %2159 = vmatprep.subr.bf16.mxu0 0
        %2160 = vmatpush1.bf16.msra.mxu0 0
        %2161 = vmatprep.subr.bf16.mxu0 0
        %2162 = vmatpush1.bf16.msra.mxu0 0
        %2163 = vmatprep.subr.bf16.mxu0 0
        %2164 = vmatpush1.bf16.msra.mxu0 0
        %2165 = vmatprep.mubr.bf16.mxu0 0
        %2166 = vmatmul.mubr.bf16.gmra.mrb[0].mxu0 %v2127
        %v2167 = vpop.f32.mrb[0].mxu0
        %v2168 = vadd.f32 0.0, %v2167
        %v2169 = vpop.f32.mrb[0].mxu0
        %v2170 = vpop.f32.mrb[0].mxu0
        %v2171 = vpop.f32.mrb[0].mxu0
        %2172 = vdwg.mxu0
        %v2173 = vrcp.pop %v2125
        %v2174 = vmul.f32 %v2168, %v2173
        %v2176 = vunpack.c.l.b16 %v2063
        %v2177 = vpack.c.b16 %v2176, %v2176
        %2178 = vrot.lane.b32.xlu0 %v2177, 64
        %v2179 = vpop.permute.xlu0 %2178
        %v2181 = vunpack.c.l.b16 %v2064
        %v2182 = vpack.c.b16 %v2181, %v2181
        %2183 = vrot.lane.b32.xlu0 %v2182, 64
        %v2184 = vpop.permute.xlu0 %2183
        %v2186 = vsel %vm2066, %v2179, 0
        %v2189 = vsel %vm2066, %v2184, 0
        %2191 = vmatprep.subr.bf16.mxu0 0
        %2192 = vmatpush1.bf16.xpose.msra.mxu0 %v2189
        %2193 = vmatprep.subr.bf16.mxu0 0
        %2194 = vmatpush1.bf16.xpose.msra.mxu0 0
        %2195 = vmatprep.subr.bf16.mxu0 0
        %2196 = vmatpush1.bf16.xpose.msra.mxu0 0
        %2197 = vmatprep.subr.bf16.mxu0 0
        %2198 = vmatpush1.bf16.xpose.msra.mxu0 0
        %2199 = vmatprep.subr.bf16.mxu0 0
        %2200 = vmatpush1.bf16.xpose.msra.mxu0 0
        %2201 = vmatprep.subr.bf16.mxu0 0
        %2202 = vmatpush1.bf16.xpose.msra.mxu0 0
        %2203 = vmatprep.subr.bf16.mxu0 0
        %2204 = vmatpush1.bf16.xpose.msra.mxu0 0
        %2205 = vmatprep.subr.bf16.mxu0 0
        %2206 = vmatpush1.bf16.xpose.msra.mxu0 0
        %2207 = vmatprep.subr.bf16.mxu0 0
        %2208 = vmatpush1.bf16.xpose.msra.mxu0 0
        %2209 = vmatprep.subr.bf16.mxu0 0
        %2210 = vmatpush1.bf16.xpose.msra.mxu0 0
        %2211 = vmatprep.subr.bf16.mxu0 0
        %2212 = vmatpush1.bf16.xpose.msra.mxu0 0
        %2213 = vmatprep.subr.bf16.mxu0 0
        %2214 = vmatpush1.bf16.xpose.msra.mxu0 0
        %2215 = vmatprep.subr.bf16.mxu0 0
        %2216 = vmatpush1.bf16.xpose.msra.mxu0 0
        %2217 = vmatprep.subr.bf16.mxu0 0
        %2218 = vmatpush1.bf16.xpose.msra.mxu0 0
        %2219 = vmatprep.subr.bf16.mxu0 0
        %2220 = vmatpush1.bf16.xpose.msra.mxu0 0
        %2221 = vmatprep.subr.bf16.mxu0 0
        %2222 = vmatpush1.bf16.xpose.msra.mxu0 0
        %2223 = vmatprep.mubr.bf16.mxu0 0
        %2224 = vmatmul.mubr.bf16.gmra.mrb[0].mxu0 %v2186
        %v2225 = vpop.f32.mrb[0].mxu0
        %v2226 = vadd.f32 %v2062, %v2225
        %v2227 = vpop.f32.mrb[0].mxu0
        %v2228 = vpop.f32.mrb[0].mxu0
        %v2229 = vpop.f32.mrb[0].mxu0
        %2230 = vdwg.mxu0
        %v2231 = vsel %vm2113, %v2226, -inf
        %2232 = vmax.xlane.f32.xlu0 %v2231
        %v2233 = vpop.xlane.xlu0 %2232
        %v2234 = vsub.f32 %v2226, %v2233
        %v2235 = vpack.c.bf16 %v2234, %v2234
        %v2237 = vmul.bf16 %v2235, 1069105081
        %v2238 = vpow.bf16.pop %v2237
        %v2239 = vunpack.c.l.bf16 %v2238
        %v2240 = vsel %vm2113, %v2239, 0.0
        %2241 = vadd.xlane.f32.xlu0 %v2240
        %v2242 = vpop.xlane.xlu0 %2241
        %v2244 = vunpack.c.l.b16 %v2065
        %v2245 = vpack.c.b16 %v2244, %v2244
        %2246 = vrot.lane.b32.xlu0 %v2245, 64
        %v2247 = vpop.permute.xlu0 %2246
        %v2249 = vsel %vm2113, %v2238, 0
        %v2252 = vsel %vm2129, %v2247, 0
        %2254 = vmatprep.subr.bf16.mxu0 0
        %2255 = vmatpush1.bf16.msra.mxu0 %v2252
        %2256 = vmatprep.subr.bf16.mxu0 0
        %2257 = vmatpush1.bf16.msra.mxu0 0
        %2258 = vmatprep.subr.bf16.mxu0 0
        %2259 = vmatpush1.bf16.msra.mxu0 0
        %2260 = vmatprep.subr.bf16.mxu0 0
        %2261 = vmatpush1.bf16.msra.mxu0 0
        %2262 = vmatprep.subr.bf16.mxu0 0
        %2263 = vmatpush1.bf16.msra.mxu0 0
        %2264 = vmatprep.subr.bf16.mxu0 0
        %2265 = vmatpush1.bf16.msra.mxu0 0
        %2266 = vmatprep.subr.bf16.mxu0 0
        %2267 = vmatpush1.bf16.msra.mxu0 0
        %2268 = vmatprep.subr.bf16.mxu0 0
        %2269 = vmatpush1.bf16.msra.mxu0 0
        %2270 = vmatprep.subr.bf16.mxu0 0
        %2271 = vmatpush1.bf16.msra.mxu0 0
        %2272 = vmatprep.subr.bf16.mxu0 0
        %2273 = vmatpush1.bf16.msra.mxu0 0
        %2274 = vmatprep.subr.bf16.mxu0 0
        %2275 = vmatpush1.bf16.msra.mxu0 0
        %2276 = vmatprep.subr.bf16.mxu0 0
        %2277 = vmatpush1.bf16.msra.mxu0 0
        %2278 = vmatprep.subr.bf16.mxu0 0
        %2279 = vmatpush1.bf16.msra.mxu0 0
        %2280 = vmatprep.subr.bf16.mxu0 0
        %2281 = vmatpush1.bf16.msra.mxu0 0
        %2282 = vmatprep.subr.bf16.mxu0 0
        %2283 = vmatpush1.bf16.msra.mxu0 0
        %2284 = vmatprep.subr.bf16.mxu0 0
        %2285 = vmatpush1.bf16.msra.mxu0 0
        %2286 = vmatprep.mubr.bf16.mxu0 0
        %2287 = vmatmul.mubr.bf16.gmra.mrb[0].mxu0 %v2249
        %v2288 = vpop.f32.mrb[0].mxu0
        %v2289 = vadd.f32 0.0, %v2288
        %v2290 = vpop.f32.mrb[0].mxu0
        %v2291 = vpop.f32.mrb[0].mxu0
        %v2292 = vpop.f32.mrb[0].mxu0
        %2293 = vdwg.mxu0
        %v2294 = vrcp.pop %v2242
        %v2295 = vmul.f32 %v2289, %v2294
        %2297 = vrot.lane.b32.xlu0 %v2295, 64
        %v2298 = vpop.permute.xlu0 %2297
        %v2300 = vsel %vm2066, %v2174, %v2298
        %v2301 = vpack.c.bf16 %v2300, %v2300
        %2302 = vst [vmem:[#allocation3] sm:$0xf] %v2301
        %v2303 = vld [vmem:[#allocation2 + $0x4] sm:$0xf]
        %v2304 = vld [vmem:[#allocation2 + $0x10] sm:$0xf]
        %v2305 = vld [vmem:[#allocation2 + $0x1c] sm:$0xf]
        %v2307 = vsel %vm2066, %v2303, 0
        %v2310 = vsel %vm2066, %v2304, 0
        %2312 = vmatprep.subr.bf16.mxu0 0
        %2313 = vmatpush1.bf16.xpose.msra.mxu0 %v2310
        %2314 = vmatprep.subr.bf16.mxu0 0
        %2315 = vmatpush1.bf16.xpose.msra.mxu0 0
        %2316 = vmatprep.subr.bf16.mxu0 0
        %2317 = vmatpush1.bf16.xpose.msra.mxu0 0
        %2318 = vmatprep.subr.bf16.mxu0 0
        %2319 = vmatpush1.bf16.xpose.msra.mxu0 0
        %2320 = vmatprep.subr.bf16.mxu0 0
        %2321 = vmatpush1.bf16.xpose.msra.mxu0 0
        %2322 = vmatprep.subr.bf16.mxu0 0
        %2323 = vmatpush1.bf16.xpose.msra.mxu0 0
        %2324 = vmatprep.subr.bf16.mxu0 0
        %2325 = vmatpush1.bf16.xpose.msra.mxu0 0
        %2326 = vmatprep.subr.bf16.mxu0 0
        %2327 = vmatpush1.bf16.xpose.msra.mxu0 0
        %2328 = vmatprep.subr.bf16.mxu0 0
        %2329 = vmatpush1.bf16.xpose.msra.mxu0 0
        %2330 = vmatprep.subr.bf16.mxu0 0
        %2331 = vmatpush1.bf16.xpose.msra.mxu0 0
        %2332 = vmatprep.subr.bf16.mxu0 0
        %2333 = vmatpush1.bf16.xpose.msra.mxu0 0
        %2334 = vmatprep.subr.bf16.mxu0 0
        %2335 = vmatpush1.bf16.xpose.msra.mxu0 0
        %2336 = vmatprep.subr.bf16.mxu0 0
        %2337 = vmatpush1.bf16.xpose.msra.mxu0 0
        %2338 = vmatprep.subr.bf16.mxu0 0
        %2339 = vmatpush1.bf16.xpose.msra.mxu0 0
        %2340 = vmatprep.subr.bf16.mxu0 0
        %2341 = vmatpush1.bf16.xpose.msra.mxu0 0
        %2342 = vmatprep.subr.bf16.mxu0 0
        %2343 = vmatpush1.bf16.xpose.msra.mxu0 0
        %2344 = vmatprep.mubr.bf16.mxu0 0
        %2345 = vmatmul.mubr.bf16.gmra.mrb[0].mxu0 %v2307
        %v2346 = vpop.f32.mrb[0].mxu0
        %v2347 = vadd.f32 %v2062, %v2346
        %v2348 = vpop.f32.mrb[0].mxu0
        %v2349 = vpop.f32.mrb[0].mxu0
        %v2350 = vpop.f32.mrb[0].mxu0
        %2351 = vdwg.mxu0
        %v2352 = vsel %vm2113, %v2347, -inf
        %2353 = vmax.xlane.f32.xlu0 %v2352
        %v2354 = vpop.xlane.xlu0 %2353
        %v2355 = vsub.f32 %v2347, %v2354
        %v2356 = vpack.c.bf16 %v2355, %v2355
        %v2358 = vmul.bf16 %v2356, 1069105081
        %v2359 = vpow.bf16.pop %v2358
        %v2360 = vunpack.c.l.bf16 %v2359
        %v2361 = vsel %vm2113, %v2360, 0.0
        %2362 = vadd.xlane.f32.xlu0 %v2361
        %v2363 = vpop.xlane.xlu0 %2362
        %v2365 = vsel %vm2113, %v2359, 0
        %v2368 = vsel %vm2129, %v2305, 0
        %2370 = vmatprep.subr.bf16.mxu0 0
        %2371 = vmatpush1.bf16.msra.mxu0 %v2368
        %2372 = vmatprep.subr.bf16.mxu0 0
        %2373 = vmatpush1.bf16.msra.mxu0 0
        %2374 = vmatprep.subr.bf16.mxu0 0
        %2375 = vmatpush1.bf16.msra.mxu0 0
        %2376 = vmatprep.subr.bf16.mxu0 0
        %2377 = vmatpush1.bf16.msra.mxu0 0
        %2378 = vmatprep.subr.bf16.mxu0 0
        %2379 = vmatpush1.bf16.msra.mxu0 0
        %2380 = vmatprep.subr.bf16.mxu0 0
        %2381 = vmatpush1.bf16.msra.mxu0 0
        %2382 = vmatprep.subr.bf16.mxu0 0
        %2383 = vmatpush1.bf16.msra.mxu0 0
        %2384 = vmatprep.subr.bf16.mxu0 0
        %2385 = vmatpush1.bf16.msra.mxu0 0
        %2386 = vmatprep.subr.bf16.mxu0 0
        %2387 = vmatpush1.bf16.msra.mxu0 0
        %2388 = vmatprep.subr.bf16.mxu0 0
        %2389 = vmatpush1.bf16.msra.mxu0 0
        %2390 = vmatprep.subr.bf16.mxu0 0
        %2391 = vmatpush1.bf16.msra.mxu0 0
        %2392 = vmatprep.subr.bf16.mxu0 0
        %2393 = vmatpush1.bf16.msra.mxu0 0
        %2394 = vmatprep.subr.bf16.mxu0 0
        %2395 = vmatpush1.bf16.msra.mxu0 0
        %2396 = vmatprep.subr.bf16.mxu0 0
        %2397 = vmatpush1.bf16.msra.mxu0 0
        %2398 = vmatprep.subr.bf16.mxu0 0
        %2399 = vmatpush1.bf16.msra.mxu0 0
        %2400 = vmatprep.subr.bf16.mxu0 0
        %2401 = vmatpush1.bf16.msra.mxu0 0
        %2402 = vmatprep.mubr.bf16.mxu0 0
        %2403 = vmatmul.mubr.bf16.gmra.mrb[0].mxu0 %v2365
        %v2404 = vpop.f32.mrb[0].mxu0
        %v2405 = vadd.f32 0.0, %v2404
        %v2406 = vpop.f32.mrb[0].mxu0
        %v2407 = vpop.f32.mrb[0].mxu0
        %v2408 = vpop.f32.mrb[0].mxu0
        %2409 = vdwg.mxu0
        %v2410 = vrcp.pop %v2363
        %v2411 = vmul.f32 %v2405, %v2410
        %v2413 = vunpack.c.l.b16 %v2303
        %v2414 = vpack.c.b16 %v2413, %v2413
        %2415 = vrot.lane.b32.xlu0 %v2414, 64
        %v2416 = vpop.permute.xlu0 %2415
        %v2418 = vunpack.c.l.b16 %v2304
        %v2419 = vpack.c.b16 %v2418, %v2418
        %2420 = vrot.lane.b32.xlu0 %v2419, 64
        %v2421 = vpop.permute.xlu0 %2420
        %v2423 = vsel %vm2066, %v2416, 0
        %v2426 = vsel %vm2066, %v2421, 0
        %2428 = vmatprep.subr.bf16.mxu0 0
        %2429 = vmatpush1.bf16.xpose.msra.mxu0 %v2426
        %2430 = vmatprep.subr.bf16.mxu0 0
        %2431 = vmatpush1.bf16.xpose.msra.mxu0 0
        %2432 = vmatprep.subr.bf16.mxu0 0
        %2433 = vmatpush1.bf16.xpose.msra.mxu0 0
        %2434 = vmatprep.subr.bf16.mxu0 0
        %2435 = vmatpush1.bf16.xpose.msra.mxu0 0
        %2436 = vmatprep.subr.bf16.mxu0 0
        %2437 = vmatpush1.bf16.xpose.msra.mxu0 0
        %2438 = vmatprep.subr.bf16.mxu0 0
        %2439 = vmatpush1.bf16.xpose.msra.mxu0 0
        %2440 = vmatprep.subr.bf16.mxu0 0
        %2441 = vmatpush1.bf16.xpose.msra.mxu0 0
        %2442 = vmatprep.subr.bf16.mxu0 0
        %2443 = vmatpush1.bf16.xpose.msra.mxu0 0
        %2444 = vmatprep.subr.bf16.mxu0 0
        %2445 = vmatpush1.bf16.xpose.msra.mxu0 0
        %2446 = vmatprep.subr.bf16.mxu0 0
        %2447 = vmatpush1.bf16.xpose.msra.mxu0 0
        %2448 = vmatprep.subr.bf16.mxu0 0
        %2449 = vmatpush1.bf16.xpose.msra.mxu0 0
        %2450 = vmatprep.subr.bf16.mxu0 0
        %2451 = vmatpush1.bf16.xpose.msra.mxu0 0
        %2452 = vmatprep.subr.bf16.mxu0 0
        %2453 = vmatpush1.bf16.xpose.msra.mxu0 0
        %2454 = vmatprep.subr.bf16.mxu0 0
        %2455 = vmatpush1.bf16.xpose.msra.mxu0 0
        %2456 = vmatprep.subr.bf16.mxu0 0
        %2457 = vmatpush1.bf16.xpose.msra.mxu0 0
        %2458 = vmatprep.subr.bf16.mxu0 0
        %2459 = vmatpush1.bf16.xpose.msra.mxu0 0
        %2460 = vmatprep.mubr.bf16.mxu0 0
        %2461 = vmatmul.mubr.bf16.gmra.mrb[0].mxu0 %v2423
        %v2462 = vpop.f32.mrb[0].mxu0
        %v2463 = vadd.f32 %v2062, %v2462
        %v2464 = vpop.f32.mrb[0].mxu0
        %v2465 = vpop.f32.mrb[0].mxu0
        %v2466 = vpop.f32.mrb[0].mxu0
        %2467 = vdwg.mxu0
        %v2468 = vsel %vm2113, %v2463, -inf
        %2469 = vmax.xlane.f32.xlu0 %v2468
        %v2470 = vpop.xlane.xlu0 %2469
        %v2471 = vsub.f32 %v2463, %v2470
        %v2472 = vpack.c.bf16 %v2471, %v2471
        %v2474 = vmul.bf16 %v2472, 1069105081
        %v2475 = vpow.bf16.pop %v2474
        %v2476 = vunpack.c.l.bf16 %v2475
        %v2477 = vsel %vm2113, %v2476, 0.0
        %2478 = vadd.xlane.f32.xlu0 %v2477
        %v2479 = vpop.xlane.xlu0 %2478
        %v2481 = vunpack.c.l.b16 %v2305
        %v2482 = vpack.c.b16 %v2481, %v2481
        %2483 = vrot.lane.b32.xlu0 %v2482, 64
        %v2484 = vpop.permute.xlu0 %2483
        %v2486 = vsel %vm2113, %v2475, 0
        %v2489 = vsel %vm2129, %v2484, 0
        %2491 = vmatprep.subr.bf16.mxu0 0
        %2492 = vmatpush1.bf16.msra.mxu0 %v2489
        %2493 = vmatprep.subr.bf16.mxu0 0
        %2494 = vmatpush1.bf16.msra.mxu0 0
        %2495 = vmatprep.subr.bf16.mxu0 0
        %2496 = vmatpush1.bf16.msra.mxu0 0
        %2497 = vmatprep.subr.bf16.mxu0 0
        %2498 = vmatpush1.bf16.msra.mxu0 0
        %2499 = vmatprep.subr.bf16.mxu0 0
        %2500 = vmatpush1.bf16.msra.mxu0 0
        %2501 = vmatprep.subr.bf16.mxu0 0
        %2502 = vmatpush1.bf16.msra.mxu0 0
        %2503 = vmatprep.subr.bf16.mxu0 0
        %2504 = vmatpush1.bf16.msra.mxu0 0
        %2505 = vmatprep.subr.bf16.mxu0 0
        %2506 = vmatpush1.bf16.msra.mxu0 0
        %2507 = vmatprep.subr.bf16.mxu0 0
        %2508 = vmatpush1.bf16.msra.mxu0 0
        %2509 = vmatprep.subr.bf16.mxu0 0
        %2510 = vmatpush1.bf16.msra.mxu0 0
        %2511 = vmatprep.subr.bf16.mxu0 0
        %2512 = vmatpush1.bf16.msra.mxu0 0
        %2513 = vmatprep.subr.bf16.mxu0 0
        %2514 = vmatpush1.bf16.msra.mxu0 0
        %2515 = vmatprep.subr.bf16.mxu0 0
        %2516 = vmatpush1.bf16.msra.mxu0 0
        %2517 = vmatprep.subr.bf16.mxu0 0
        %2518 = vmatpush1.bf16.msra.mxu0 0
        %2519 = vmatprep.subr.bf16.mxu0 0
        %2520 = vmatpush1.bf16.msra.mxu0 0
        %2521 = vmatprep.subr.bf16.mxu0 0
        %2522 = vmatpush1.bf16.msra.mxu0 0
        %2523 = vmatprep.mubr.bf16.mxu0 0
        %2524 = vmatmul.mubr.bf16.gmra.mrb[0].mxu0 %v2486
        %v2525 = vpop.f32.mrb[0].mxu0
        %v2526 = vadd.f32 0.0, %v2525
        %v2527 = vpop.f32.mrb[0].mxu0
        %v2528 = vpop.f32.mrb[0].mxu0
        %v2529 = vpop.f32.mrb[0].mxu0
        %2530 = vdwg.mxu0
        %v2531 = vrcp.pop %v2479
        %v2532 = vmul.f32 %v2526, %v2531
        %2534 = vrot.lane.b32.xlu0 %v2532, 64
        %v2535 = vpop.permute.xlu0 %2534
        %v2537 = vsel %vm2066, %v2411, %v2535
        %v2538 = vpack.c.bf16 %v2537, %v2537
        %2539 = vst [vmem:[#allocation3 + $0x4] sm:$0xf] %v2538
        %v2540 = vld [vmem:[#allocation2 + $0x8] sm:$0xf]
        %v2541 = vld [vmem:[#allocation2 + $0x14] sm:$0xf]
        %v2542 = vld [vmem:[#allocation2 + $0x20] sm:$0xf]
        %v2544 = vsel %vm2066, %v2540, 0
        %v2547 = vsel %vm2066, %v2541, 0
        %2549 = vmatprep.subr.bf16.mxu0 0
        %2550 = vmatpush1.bf16.xpose.msra.mxu0 %v2547
        %2551 = vmatprep.subr.bf16.mxu0 0
        %2552 = vmatpush1.bf16.xpose.msra.mxu0 0
        %2553 = vmatprep.subr.bf16.mxu0 0
        %2554 = vmatpush1.bf16.xpose.msra.mxu0 0
        %2555 = vmatprep.subr.bf16.mxu0 0
        %2556 = vmatpush1.bf16.xpose.msra.mxu0 0
        %2557 = vmatprep.subr.bf16.mxu0 0
        %2558 = vmatpush1.bf16.xpose.msra.mxu0 0
        %2559 = vmatprep.subr.bf16.mxu0 0
        %2560 = vmatpush1.bf16.xpose.msra.mxu0 0
        %2561 = vmatprep.subr.bf16.mxu0 0
        %2562 = vmatpush1.bf16.xpose.msra.mxu0 0
        %2563 = vmatprep.subr.bf16.mxu0 0
        %2564 = vmatpush1.bf16.xpose.msra.mxu0 0
        %2565 = vmatprep.subr.bf16.mxu0 0
        %2566 = vmatpush1.bf16.xpose.msra.mxu0 0
        %2567 = vmatprep.subr.bf16.mxu0 0
        %2568 = vmatpush1.bf16.xpose.msra.mxu0 0
        %2569 = vmatprep.subr.bf16.mxu0 0
        %2570 = vmatpush1.bf16.xpose.msra.mxu0 0
        %2571 = vmatprep.subr.bf16.mxu0 0
        %2572 = vmatpush1.bf16.xpose.msra.mxu0 0
        %2573 = vmatprep.subr.bf16.mxu0 0
        %2574 = vmatpush1.bf16.xpose.msra.mxu0 0
        %2575 = vmatprep.subr.bf16.mxu0 0
        %2576 = vmatpush1.bf16.xpose.msra.mxu0 0
        %2577 = vmatprep.subr.bf16.mxu0 0
        %2578 = vmatpush1.bf16.xpose.msra.mxu0 0
        %2579 = vmatprep.subr.bf16.mxu0 0
        %2580 = vmatpush1.bf16.xpose.msra.mxu0 0
        %2581 = vmatprep.mubr.bf16.mxu0 0
        %2582 = vmatmul.mubr.bf16.gmra.mrb[0].mxu0 %v2544
        %v2583 = vpop.f32.mrb[0].mxu0
        %v2584 = vadd.f32 %v2062, %v2583
        %v2585 = vpop.f32.mrb[0].mxu0
        %v2586 = vpop.f32.mrb[0].mxu0
        %v2587 = vpop.f32.mrb[0].mxu0
        %2588 = vdwg.mxu0
        %v2589 = vsel %vm2113, %v2584, -inf
        %2590 = vmax.xlane.f32.xlu0 %v2589
        %v2591 = vpop.xlane.xlu0 %2590
        %v2592 = vsub.f32 %v2584, %v2591
        %v2593 = vpack.c.bf16 %v2592, %v2592
        %v2595 = vmul.bf16 %v2593, 1069105081
        %v2596 = vpow.bf16.pop %v2595
        %v2597 = vunpack.c.l.bf16 %v2596
        %v2598 = vsel %vm2113, %v2597, 0.0
        %2599 = vadd.xlane.f32.xlu0 %v2598
        %v2600 = vpop.xlane.xlu0 %2599
        %v2602 = vsel %vm2113, %v2596, 0
        %v2605 = vsel %vm2129, %v2542, 0
        %2607 = vmatprep.subr.bf16.mxu0 0
        %2608 = vmatpush1.bf16.msra.mxu0 %v2605
        %2609 = vmatprep.subr.bf16.mxu0 0
        %2610 = vmatpush1.bf16.msra.mxu0 0
        %2611 = vmatprep.subr.bf16.mxu0 0
        %2612 = vmatpush1.bf16.msra.mxu0 0
        %2613 = vmatprep.subr.bf16.mxu0 0
        %2614 = vmatpush1.bf16.msra.mxu0 0
        %2615 = vmatprep.subr.bf16.mxu0 0
        %2616 = vmatpush1.bf16.msra.mxu0 0
        %2617 = vmatprep.subr.bf16.mxu0 0
        %2618 = vmatpush1.bf16.msra.mxu0 0
        %2619 = vmatprep.subr.bf16.mxu0 0
        %2620 = vmatpush1.bf16.msra.mxu0 0
        %2621 = vmatprep.subr.bf16.mxu0 0
        %2622 = vmatpush1.bf16.msra.mxu0 0
        %2623 = vmatprep.subr.bf16.mxu0 0
        %2624 = vmatpush1.bf16.msra.mxu0 0
        %2625 = vmatprep.subr.bf16.mxu0 0
        %2626 = vmatpush1.bf16.msra.mxu0 0
        %2627 = vmatprep.subr.bf16.mxu0 0
        %2628 = vmatpush1.bf16.msra.mxu0 0
        %2629 = vmatprep.subr.bf16.mxu0 0
        %2630 = vmatpush1.bf16.msra.mxu0 0
        %2631 = vmatprep.subr.bf16.mxu0 0
        %2632 = vmatpush1.bf16.msra.mxu0 0
        %2633 = vmatprep.subr.bf16.mxu0 0
        %2634 = vmatpush1.bf16.msra.mxu0 0
        %2635 = vmatprep.subr.bf16.mxu0 0
        %2636 = vmatpush1.bf16.msra.mxu0 0
        %2637 = vmatprep.subr.bf16.mxu0 0
        %2638 = vmatpush1.bf16.msra.mxu0 0
        %2639 = vmatprep.mubr.bf16.mxu0 0
        %2640 = vmatmul.mubr.bf16.gmra.mrb[0].mxu0 %v2602
        %v2641 = vpop.f32.mrb[0].mxu0
        %v2642 = vadd.f32 0.0, %v2641
        %v2643 = vpop.f32.mrb[0].mxu0
        %v2644 = vpop.f32.mrb[0].mxu0
        %v2645 = vpop.f32.mrb[0].mxu0
        %2646 = vdwg.mxu0
        %v2647 = vrcp.pop %v2600
        %v2648 = vmul.f32 %v2642, %v2647
        %v2650 = vunpack.c.l.b16 %v2540
        %v2651 = vpack.c.b16 %v2650, %v2650
        %2652 = vrot.lane.b32.xlu0 %v2651, 64
        %v2653 = vpop.permute.xlu0 %2652
        %v2655 = vunpack.c.l.b16 %v2541
        %v2656 = vpack.c.b16 %v2655, %v2655
        %2657 = vrot.lane.b32.xlu0 %v2656, 64
        %v2658 = vpop.permute.xlu0 %2657
        %v2660 = vsel %vm2066, %v2653, 0
        %v2663 = vsel %vm2066, %v2658, 0
        %2665 = vmatprep.subr.bf16.mxu0 0
        %2666 = vmatpush1.bf16.xpose.msra.mxu0 %v2663
        %2667 = vmatprep.subr.bf16.mxu0 0
        %2668 = vmatpush1.bf16.xpose.msra.mxu0 0
        %2669 = vmatprep.subr.bf16.mxu0 0
        %2670 = vmatpush1.bf16.xpose.msra.mxu0 0
        %2671 = vmatprep.subr.bf16.mxu0 0
        %2672 = vmatpush1.bf16.xpose.msra.mxu0 0
        %2673 = vmatprep.subr.bf16.mxu0 0
        %2674 = vmatpush1.bf16.xpose.msra.mxu0 0
        %2675 = vmatprep.subr.bf16.mxu0 0
        %2676 = vmatpush1.bf16.xpose.msra.mxu0 0
        %2677 = vmatprep.subr.bf16.mxu0 0
        %2678 = vmatpush1.bf16.xpose.msra.mxu0 0
        %2679 = vmatprep.subr.bf16.mxu0 0
        %2680 = vmatpush1.bf16.xpose.msra.mxu0 0
        %2681 = vmatprep.subr.bf16.mxu0 0
        %2682 = vmatpush1.bf16.xpose.msra.mxu0 0
        %2683 = vmatprep.subr.bf16.mxu0 0
        %2684 = vmatpush1.bf16.xpose.msra.mxu0 0
        %2685 = vmatprep.subr.bf16.mxu0 0
        %2686 = vmatpush1.bf16.xpose.msra.mxu0 0
        %2687 = vmatprep.subr.bf16.mxu0 0
        %2688 = vmatpush1.bf16.xpose.msra.mxu0 0
        %2689 = vmatprep.subr.bf16.mxu0 0
        %2690 = vmatpush1.bf16.xpose.msra.mxu0 0
        %2691 = vmatprep.subr.bf16.mxu0 0
        %2692 = vmatpush1.bf16.xpose.msra.mxu0 0
        %2693 = vmatprep.subr.bf16.mxu0 0
        %2694 = vmatpush1.bf16.xpose.msra.mxu0 0
        %2695 = vmatprep.subr.bf16.mxu0 0
        %2696 = vmatpush1.bf16.xpose.msra.mxu0 0
        %2697 = vmatprep.mubr.bf16.mxu0 0
        %2698 = vmatmul.mubr.bf16.gmra.mrb[0].mxu0 %v2660
        %v2699 = vpop.f32.mrb[0].mxu0
        %v2700 = vadd.f32 %v2062, %v2699
        %v2701 = vpop.f32.mrb[0].mxu0
        %v2702 = vpop.f32.mrb[0].mxu0
        %v2703 = vpop.f32.mrb[0].mxu0
        %2704 = vdwg.mxu0
        %v2705 = vsel %vm2113, %v2700, -inf
        %2706 = vmax.xlane.f32.xlu0 %v2705
        %v2707 = vpop.xlane.xlu0 %2706
        %v2708 = vsub.f32 %v2700, %v2707
        %v2709 = vpack.c.bf16 %v2708, %v2708
        %v2711 = vmul.bf16 %v2709, 1069105081
        %v2712 = vpow.bf16.pop %v2711
        %v2713 = vunpack.c.l.bf16 %v2712
        %v2714 = vsel %vm2113, %v2713, 0.0
        %2715 = vadd.xlane.f32.xlu0 %v2714
        %v2716 = vpop.xlane.xlu0 %2715
        %v2718 = vunpack.c.l.b16 %v2542
        %v2719 = vpack.c.b16 %v2718, %v2718
        %2720 = vrot.lane.b32.xlu0 %v2719, 64
        %v2721 = vpop.permute.xlu0 %2720
        %v2723 = vsel %vm2113, %v2712, 0
        %v2726 = vsel %vm2129, %v2721, 0
        %2728 = vmatprep.subr.bf16.mxu0 0
        %2729 = vmatpush1.bf16.msra.mxu0 %v2726
        %2730 = vmatprep.subr.bf16.mxu0 0
        %2731 = vmatpush1.bf16.msra.mxu0 0
        %2732 = vmatprep.subr.bf16.mxu0 0
        %2733 = vmatpush1.bf16.msra.mxu0 0
        %2734 = vmatprep.subr.bf16.mxu0 0
        %2735 = vmatpush1.bf16.msra.mxu0 0
        %2736 = vmatprep.subr.bf16.mxu0 0
        %2737 = vmatpush1.bf16.msra.mxu0 0
        %2738 = vmatprep.subr.bf16.mxu0 0
        %2739 = vmatpush1.bf16.msra.mxu0 0
        %2740 = vmatprep.subr.bf16.mxu0 0
        %2741 = vmatpush1.bf16.msra.mxu0 0
        %2742 = vmatprep.subr.bf16.mxu0 0
        %2743 = vmatpush1.bf16.msra.mxu0 0
        %2744 = vmatprep.subr.bf16.mxu0 0
        %2745 = vmatpush1.bf16.msra.mxu0 0
        %2746 = vmatprep.subr.bf16.mxu0 0
        %2747 = vmatpush1.bf16.msra.mxu0 0
        %2748 = vmatprep.subr.bf16.mxu0 0
        %2749 = vmatpush1.bf16.msra.mxu0 0
        %2750 = vmatprep.subr.bf16.mxu0 0
        %2751 = vmatpush1.bf16.msra.mxu0 0
        %2752 = vmatprep.subr.bf16.mxu0 0
        %2753 = vmatpush1.bf16.msra.mxu0 0
        %2754 = vmatprep.subr.bf16.mxu0 0
        %2755 = vmatpush1.bf16.msra.mxu0 0
        %2756 = vmatprep.subr.bf16.mxu0 0
        %2757 = vmatpush1.bf16.msra.mxu0 0
        %2758 = vmatprep.subr.bf16.mxu0 0
        %2759 = vmatpush1.bf16.msra.mxu0 0
        %2760 = vmatprep.mubr.bf16.mxu0 0
        %2761 = vmatmul.mubr.bf16.gmra.mrb[0].mxu0 %v2723
        %v2762 = vpop.f32.mrb[0].mxu0
        %v2763 = vadd.f32 0.0, %v2762
        %v2764 = vpop.f32.mrb[0].mxu0
        %v2765 = vpop.f32.mrb[0].mxu0
        %v2766 = vpop.f32.mrb[0].mxu0
        %2767 = vdwg.mxu0
        %v2768 = vrcp.pop %v2716
        %v2769 = vmul.f32 %v2763, %v2768
        %2771 = vrot.lane.b32.xlu0 %v2769, 64
        %v2772 = vpop.permute.xlu0 %2771
        %v2774 = vsel %vm2066, %v2648, %v2772
        %v2775 = vpack.c.bf16 %v2774, %v2774
        %2776 = vst [vmem:[#allocation3 + $0x8] sm:$0xf] %v2775
        %v2777 = vld [vmem:[#allocation3] sm:$0xff]
        %v2778 = vld [vmem:[#allocation3 + $0x8] sm:$0xf]
        %v2779 = vld [vmem:[#allocation9] sm:$0xff]
        %v2780 = vld [vmem:[#allocation9 + $0x8] sm:$0xf]
        %v2781 = vld [vmem:[#allocation9 + $0xc] sm:$0xff]
        %v2782 = vld [vmem:[#allocation9 + $0x14] sm:$0xf]
        %v2783 = vld [vmem:[#allocation9 + $0x18] sm:$0xff]
        %v2784 = vld [vmem:[#allocation9 + $0x20] sm:$0xf]
        %v2785 = vld [vmem:[#allocation9 + $0x24] sm:$0xff]
        %v2786 = vld [vmem:[#allocation9 + $0x2c] sm:$0xf]
        %v2787 = vld [vmem:[#allocation9 + $0x30] sm:$0xff]
        %v2788 = vld [vmem:[#allocation9 + $0x38] sm:$0xf]
        %v2789 = vld [vmem:[#allocation9 + $0x3c] sm:$0xff]
        %v2790 = vld [vmem:[#allocation9 + $0x44] sm:$0xf]
        %v2791 = vld [vmem:[#allocation9 + $0x48] sm:$0xff]
        %v2792 = vld [vmem:[#allocation9 + $0x50] sm:$0xf]
        %v2793 = vld [vmem:[#allocation9 + $0x54] sm:$0xff]
        %v2794 = vld [vmem:[#allocation9 + $0x5c] sm:$0xf]
        %v2795 = vld [vmem:[#allocation9 + $0x60] sm:$0xff]
        %v2796 = vld [vmem:[#allocation9 + $0x68] sm:$0xf]
        %v2797 = vld [vmem:[#allocation9 + $0x6c] sm:$0xff]
        %v2798 = vld [vmem:[#allocation9 + $0x74] sm:$0xf]
        %v2799 = vld [vmem:[#allocation9 + $0x78] sm:$0xff]
        %v2800 = vld [vmem:[#allocation9 + $0x80] sm:$0xf]
        %v2801 = vld [vmem:[#allocation9 + $0x84] sm:$0xff]
        %v2802 = vld [vmem:[#allocation9 + $0x8c] sm:$0xf]
        %v2803 = vld [vmem:[#allocation9 + $0x90] sm:$0xff]
        %v2804 = vld [vmem:[#allocation9 + $0x98] sm:$0xf]
        %v2805 = vld [vmem:[#allocation9 + $0x9c] sm:$0xff]
        %v2806 = vld [vmem:[#allocation9 + $0xa4] sm:$0xf]
        %v2807 = vld [vmem:[#allocation9 + $0xa8] sm:$0xff]
        %v2808 = vld [vmem:[#allocation9 + $0xb0] sm:$0xf]
        %v2809 = vld [vmem:[#allocation9 + $0xb4] sm:$0xff]
        %v2810 = vld [vmem:[#allocation9 + $0xbc] sm:$0xf]
        %v2811 = vld [vmem:[#allocation9 + $0xc0] sm:$0xff]
        %v2812 = vld [vmem:[#allocation9 + $0xc8] sm:$0xf]
        %v2813 = vld [vmem:[#allocation9 + $0xcc] sm:$0xff]
        %v2814 = vld [vmem:[#allocation9 + $0xd4] sm:$0xf]
        %v2815 = vld [vmem:[#allocation9 + $0xd8] sm:$0xff]
        %v2816 = vld [vmem:[#allocation9 + $0xe0] sm:$0xf]
        %v2817 = vld [vmem:[#allocation9 + $0xe4] sm:$0xff]
        %v2818 = vld [vmem:[#allocation9 + $0xec] sm:$0xf]
        %v2819 = vld [vmem:[#allocation9 + $0xf0] sm:$0xff]
        %v2820 = vld [vmem:[#allocation9 + $0xf8] sm:$0xf]
        %v2821 = vld [vmem:[#allocation9 + $0xfc] sm:$0xff]
        %v2822 = vld [vmem:[#allocation9 + $0x104] sm:$0xf]
        %v2823 = vld [vmem:[#allocation9 + $0x108] sm:$0xff]
        %v2824 = vld [vmem:[#allocation9 + $0x110] sm:$0xf]
        %v2825 = vld [vmem:[#allocation9 + $0x114] sm:$0xff]
        %v2826 = vld [vmem:[#allocation9 + $0x11c] sm:$0xf]
        %v2827 = vld [vmem:[#allocation9 + $0x120] sm:$0xff]
        %v2828 = vld [vmem:[#allocation9 + $0x128] sm:$0xf]
        %v2829 = vld [vmem:[#allocation9 + $0x12c] sm:$0xff]
        %v2830 = vld [vmem:[#allocation9 + $0x134] sm:$0xf]
        %v2831 = vld [vmem:[#allocation9 + $0x138] sm:$0xff]
        %v2832 = vld [vmem:[#allocation9 + $0x140] sm:$0xf]
        %v2833 = vld [vmem:[#allocation9 + $0x144] sm:$0xff]
        %v2834 = vld [vmem:[#allocation9 + $0x14c] sm:$0xf]
        %v2835 = vld [vmem:[#allocation9 + $0x150] sm:$0xff]
        %v2836 = vld [vmem:[#allocation9 + $0x158] sm:$0xf]
        %v2837 = vld [vmem:[#allocation9 + $0x15c] sm:$0xff]
        %v2838 = vld [vmem:[#allocation9 + $0x164] sm:$0xf]
        %v2839 = vld [vmem:[#allocation9 + $0x168] sm:$0xff]
        %v2840 = vld [vmem:[#allocation9 + $0x170] sm:$0xf]
        %v2841 = vld [vmem:[#allocation9 + $0x174] sm:$0xff]
        %v2842 = vld [vmem:[#allocation9 + $0x17c] sm:$0xf]
        %v2843 = vld [vmem:[#allocation9 + $0x180] sm:$0xff]
        %v2844 = vld [vmem:[#allocation9 + $0x188] sm:$0xf]
        %v2845 = vld [vmem:[#allocation9 + $0x18c] sm:$0xff]
        %v2846 = vld [vmem:[#allocation9 + $0x194] sm:$0xf]
        %v2847 = vld [vmem:[#allocation9 + $0x198] sm:$0xff]
        %v2848 = vld [vmem:[#allocation9 + $0x1a0] sm:$0xf]
        %v2849 = vld [vmem:[#allocation9 + $0x1a4] sm:$0xff]
        %v2850 = vld [vmem:[#allocation9 + $0x1ac] sm:$0xf]
        %v2851 = vld [vmem:[#allocation9 + $0x1b0] sm:$0xff]
        %v2852 = vld [vmem:[#allocation9 + $0x1b8] sm:$0xf]
        %v2853 = vld [vmem:[#allocation9 + $0x1bc] sm:$0xff]
        %v2854 = vld [vmem:[#allocation9 + $0x1c4] sm:$0xf]
        %v2855 = vld [vmem:[#allocation9 + $0x1c8] sm:$0xff]
        %v2856 = vld [vmem:[#allocation9 + $0x1d0] sm:$0xf]
        %v2857 = vld [vmem:[#allocation9 + $0x1d4] sm:$0xff]
        %v2858 = vld [vmem:[#allocation9 + $0x1dc] sm:$0xf]
        %v2859 = vld [vmem:[#allocation9 + $0x1e0] sm:$0xff]
        %v2860 = vld [vmem:[#allocation9 + $0x1e8] sm:$0xf]
        %v2861 = vld [vmem:[#allocation9 + $0x1ec] sm:$0xff]
        %v2862 = vld [vmem:[#allocation9 + $0x1f4] sm:$0xf]
        %v2863 = vld [vmem:[#allocation9 + $0x1f8] sm:$0xff]
        %v2864 = vld [vmem:[#allocation9 + $0x200] sm:$0xf]
        %v2865 = vld [vmem:[#allocation9 + $0x204] sm:$0xff]
        %v2866 = vld [vmem:[#allocation9 + $0x20c] sm:$0xf]
        %v2867 = vld [vmem:[#allocation9 + $0x210] sm:$0xff]
        %v2868 = vld [vmem:[#allocation9 + $0x218] sm:$0xf]
        %v2869 = vld [vmem:[#allocation9 + $0x21c] sm:$0xff]
        %v2870 = vld [vmem:[#allocation9 + $0x224] sm:$0xf]
        %v2871 = vld [vmem:[#allocation9 + $0x228] sm:$0xff]
        %v2872 = vld [vmem:[#allocation9 + $0x230] sm:$0xf]
        %v2873 = vld [vmem:[#allocation9 + $0x234] sm:$0xff]
        %v2874 = vld [vmem:[#allocation9 + $0x23c] sm:$0xf]
        %v2875 = vld [vmem:[#allocation10] sm:$0x7]
        %v2877 = vlaneseq
        %v2878 = vshrl.u32 %v2877, 7
        %v2879 = vsub.s32 0, %v2878
        %v2880 = vrot.slane %v2875, %v2879
        %v2881 = vlaneseq
        %v2882 = vshrl.u32 %v2881, 7
        %v2883 = vsub.s32 1, %v2882
        %v2884 = vrot.slane %v2875, %v2883
        %v2885 = vlaneseq
        %v2886 = vshrl.u32 %v2885, 7
        %v2887 = vsub.s32 2, %v2886
        %v2888 = vrot.slane %v2875, %v2887
        %v2894 = vunpack.c.l.b16 %v2777
        %v2895 = vunpack.c.h.b16 %v2777
        %v2896 = vunpack.c.l.b16 %v2778
        %v2897 = vpack.c.b16 %v2894, %v2894
        %v2898 = vpack.c.b16 %v2895, %v2895
        %v2899 = vpack.c.b16 %v2896, %v2896
        %v2999 = vunpack.c.l.b16 %v2779
        %v3000 = vunpack.c.h.b16 %v2779
        %v3001 = vunpack.c.l.b16 %v2780
        %v3002 = vunpack.c.l.b16 %v2781
        %v3003 = vunpack.c.h.b16 %v2781
        %v3004 = vunpack.c.l.b16 %v2782
        %v3005 = vunpack.c.l.b16 %v2783
        %v3006 = vunpack.c.h.b16 %v2783
        %v3007 = vunpack.c.l.b16 %v2784
        %v3008 = vunpack.c.l.b16 %v2785
        %v3009 = vunpack.c.h.b16 %v2785
        %v3010 = vunpack.c.l.b16 %v2786
        %v3011 = vunpack.c.l.b16 %v2787
        %v3012 = vunpack.c.h.b16 %v2787
        %v3013 = vunpack.c.l.b16 %v2788
        %v3014 = vunpack.c.l.b16 %v2789
        %v3015 = vunpack.c.h.b16 %v2789
        %v3016 = vunpack.c.l.b16 %v2790
        %v3017 = vunpack.c.l.b16 %v2791
        %v3018 = vunpack.c.h.b16 %v2791
        %v3019 = vunpack.c.l.b16 %v2792
        %v3020 = vunpack.c.l.b16 %v2793
        %v3021 = vunpack.c.h.b16 %v2793
        %v3022 = vunpack.c.l.b16 %v2794
        %v3023 = vunpack.c.l.b16 %v2795
        %v3024 = vunpack.c.h.b16 %v2795
        %v3025 = vunpack.c.l.b16 %v2796
        %v3026 = vunpack.c.l.b16 %v2797
        %v3027 = vunpack.c.h.b16 %v2797
        %v3028 = vunpack.c.l.b16 %v2798
        %v3029 = vunpack.c.l.b16 %v2799
        %v3030 = vunpack.c.h.b16 %v2799
        %v3031 = vunpack.c.l.b16 %v2800
        %v3032 = vunpack.c.l.b16 %v2801
        %v3033 = vunpack.c.h.b16 %v2801
        %v3034 = vunpack.c.l.b16 %v2802
        %v3035 = vunpack.c.l.b16 %v2803
        %v3036 = vunpack.c.h.b16 %v2803
        %v3037 = vunpack.c.l.b16 %v2804
        %v3038 = vunpack.c.l.b16 %v2805
        %v3039 = vunpack.c.h.b16 %v2805
        %v3040 = vunpack.c.l.b16 %v2806
        %v3041 = vunpack.c.l.b16 %v2807
        %v3042 = vunpack.c.h.b16 %v2807
        %v3043 = vunpack.c.l.b16 %v2808
        %v3044 = vunpack.c.l.b16 %v2809
        %v3045 = vunpack.c.h.b16 %v2809
        %v3046 = vunpack.c.l.b16 %v2810
        %v3047 = vunpack.c.l.b16 %v2811
        %v3048 = vunpack.c.h.b16 %v2811
        %v3049 = vunpack.c.l.b16 %v2812
        %v3050 = vunpack.c.l.b16 %v2813
        %v3051 = vunpack.c.h.b16 %v2813
        %v3052 = vunpack.c.l.b16 %v2814
        %v3053 = vunpack.c.l.b16 %v2815
        %v3054 = vunpack.c.h.b16 %v2815
        %v3055 = vunpack.c.l.b16 %v2816
        %v3056 = vunpack.c.l.b16 %v2817
        %v3057 = vunpack.c.h.b16 %v2817
        %v3058 = vunpack.c.l.b16 %v2818
        %v3059 = vunpack.c.l.b16 %v2819
        %v3060 = vunpack.c.h.b16 %v2819
        %v3061 = vunpack.c.l.b16 %v2820
        %v3062 = vunpack.c.l.b16 %v2821
        %v3063 = vunpack.c.h.b16 %v2821
        %v3064 = vunpack.c.l.b16 %v2822
        %v3065 = vunpack.c.l.b16 %v2823
        %v3066 = vunpack.c.h.b16 %v2823
        %v3067 = vunpack.c.l.b16 %v2824
        %v3068 = vunpack.c.l.b16 %v2825
        %v3069 = vunpack.c.h.b16 %v2825
        %v3070 = vunpack.c.l.b16 %v2826
        %v3071 = vunpack.c.l.b16 %v2827
        %v3072 = vunpack.c.h.b16 %v2827
        %v3073 = vunpack.c.l.b16 %v2828
        %v3074 = vunpack.c.l.b16 %v2829
        %v3075 = vunpack.c.h.b16 %v2829
        %v3076 = vunpack.c.l.b16 %v2830
        %v3077 = vunpack.c.l.b16 %v2831
        %v3078 = vunpack.c.h.b16 %v2831
        %v3079 = vunpack.c.l.b16 %v2832
        %v3080 = vunpack.c.l.b16 %v2833
        %v3081 = vunpack.c.h.b16 %v2833
        %v3082 = vunpack.c.l.b16 %v2834
        %v3083 = vunpack.c.l.b16 %v2835
        %v3084 = vunpack.c.h.b16 %v2835
        %v3085 = vunpack.c.l.b16 %v2836
        %v3086 = vunpack.c.l.b16 %v2837
        %v3087 = vunpack.c.h.b16 %v2837
        %v3088 = vunpack.c.l.b16 %v2838
        %v3089 = vunpack.c.l.b16 %v2839
        %v3090 = vunpack.c.h.b16 %v2839
        %v3091 = vunpack.c.l.b16 %v2840
        %v3092 = vunpack.c.l.b16 %v2841
        %v3093 = vunpack.c.h.b16 %v2841
        %v3094 = vunpack.c.l.b16 %v2842
        %v3095 = vunpack.c.l.b16 %v2843
        %v3096 = vunpack.c.h.b16 %v2843
        %v3097 = vunpack.c.l.b16 %v2844
        %v3098 = vunpack.c.l.b16 %v2845
        %v3099 = vunpack.c.h.b16 %v2845
        %v3100 = vunpack.c.l.b16 %v2846
        %v3101 = vunpack.c.l.b16 %v2847
        %v3102 = vunpack.c.h.b16 %v2847
        %v3103 = vunpack.c.l.b16 %v2848
        %v3104 = vunpack.c.l.b16 %v2849
        %v3105 = vunpack.c.h.b16 %v2849
        %v3106 = vunpack.c.l.b16 %v2850
        %v3107 = vunpack.c.l.b16 %v2851
        %v3108 = vunpack.c.h.b16 %v2851
        %v3109 = vunpack.c.l.b16 %v2852
        %v3110 = vunpack.c.l.b16 %v2853
        %v3111 = vunpack.c.h.b16 %v2853
        %v3112 = vunpack.c.l.b16 %v2854
        %v3113 = vunpack.c.l.b16 %v2855
        %v3114 = vunpack.c.h.b16 %v2855
        %v3115 = vunpack.c.l.b16 %v2856
        %v3116 = vunpack.c.l.b16 %v2857
        %v3117 = vunpack.c.h.b16 %v2857
        %v3118 = vunpack.c.l.b16 %v2858
        %v3119 = vunpack.c.l.b16 %v2859
        %v3120 = vunpack.c.h.b16 %v2859
        %v3121 = vunpack.c.l.b16 %v2860
        %v3122 = vunpack.c.l.b16 %v2861
        %v3123 = vunpack.c.h.b16 %v2861
        %v3124 = vunpack.c.l.b16 %v2862
        %v3125 = vunpack.c.l.b16 %v2863
        %v3126 = vunpack.c.h.b16 %v2863
        %v3127 = vunpack.c.l.b16 %v2864
        %v3128 = vunpack.c.l.b16 %v2865
        %v3129 = vunpack.c.h.b16 %v2865
        %v3130 = vunpack.c.l.b16 %v2866
        %v3131 = vunpack.c.l.b16 %v2867
        %v3132 = vunpack.c.h.b16 %v2867
        %v3133 = vunpack.c.l.b16 %v2868
        %v3134 = vunpack.c.l.b16 %v2869
        %v3135 = vunpack.c.h.b16 %v2869
        %v3136 = vunpack.c.l.b16 %v2870
        %v3137 = vunpack.c.l.b16 %v2871
        %v3138 = vunpack.c.h.b16 %v2871
        %v3139 = vunpack.c.l.b16 %v2872
        %v3140 = vunpack.c.l.b16 %v2873
        %v3141 = vunpack.c.h.b16 %v2873
        %v3142 = vunpack.c.l.b16 %v2874
        %v3143 = vpack.c.b16 %v3002, %v2999
        %v3144 = vpack.c.b16 %v3003, %v3000
        %v3145 = vpack.c.b16 %v3004, %v3001
        %v3146 = vpack.c.b16 %v3008, %v3005
        %v3147 = vpack.c.b16 %v3009, %v3006
        %v3148 = vpack.c.b16 %v3010, %v3007
        %v3149 = vpack.c.b16 %v3014, %v3011
        %v3150 = vpack.c.b16 %v3015, %v3012
        %v3151 = vpack.c.b16 %v3016, %v3013
        %v3152 = vpack.c.b16 %v3020, %v3017
        %v3153 = vpack.c.b16 %v3021, %v3018
        %v3154 = vpack.c.b16 %v3022, %v3019
        %v3155 = vpack.c.b16 %v3026, %v3023
        %v3156 = vpack.c.b16 %v3027, %v3024
        %v3157 = vpack.c.b16 %v3028, %v3025
        %v3158 = vpack.c.b16 %v3032, %v3029
        %v3159 = vpack.c.b16 %v3033, %v3030
        %v3160 = vpack.c.b16 %v3034, %v3031
        %v3161 = vpack.c.b16 %v3038, %v3035
        %v3162 = vpack.c.b16 %v3039, %v3036
        %v3163 = vpack.c.b16 %v3040, %v3037
        %v3164 = vpack.c.b16 %v3044, %v3041
        %v3165 = vpack.c.b16 %v3045, %v3042
        %v3166 = vpack.c.b16 %v3046, %v3043
        %v3167 = vpack.c.b16 %v3050, %v3047
        %v3168 = vpack.c.b16 %v3051, %v3048
        %v3169 = vpack.c.b16 %v3052, %v3049
        %v3170 = vpack.c.b16 %v3056, %v3053
        %v3171 = vpack.c.b16 %v3057, %v3054
        %v3172 = vpack.c.b16 %v3058, %v3055
        %v3173 = vpack.c.b16 %v3062, %v3059
        %v3174 = vpack.c.b16 %v3063, %v3060
        %v3175 = vpack.c.b16 %v3064, %v3061
        %v3176 = vpack.c.b16 %v3068, %v3065
        %v3177 = vpack.c.b16 %v3069, %v3066
        %v3178 = vpack.c.b16 %v3070, %v3067
        %v3179 = vpack.c.b16 %v3074, %v3071
        %v3180 = vpack.c.b16 %v3075, %v3072
        %v3181 = vpack.c.b16 %v3076, %v3073
        %v3182 = vpack.c.b16 %v3080, %v3077
        %v3183 = vpack.c.b16 %v3081, %v3078
        %v3184 = vpack.c.b16 %v3082, %v3079
        %v3185 = vpack.c.b16 %v3086, %v3083
        %v3186 = vpack.c.b16 %v3087, %v3084
        %v3187 = vpack.c.b16 %v3088, %v3085
        %v3188 = vpack.c.b16 %v3092, %v3089
        %v3189 = vpack.c.b16 %v3093, %v3090
        %v3190 = vpack.c.b16 %v3094, %v3091
        %v3191 = vpack.c.b16 %v3098, %v3095
        %v3192 = vpack.c.b16 %v3099, %v3096
        %v3193 = vpack.c.b16 %v3100, %v3097
        %v3194 = vpack.c.b16 %v3104, %v3101
        %v3195 = vpack.c.b16 %v3105, %v3102
        %v3196 = vpack.c.b16 %v3106, %v3103
        %v3197 = vpack.c.b16 %v3110, %v3107
        %v3198 = vpack.c.b16 %v3111, %v3108
        %v3199 = vpack.c.b16 %v3112, %v3109
        %v3200 = vpack.c.b16 %v3116, %v3113
        %v3201 = vpack.c.b16 %v3117, %v3114
        %v3202 = vpack.c.b16 %v3118, %v3115
        %v3203 = vpack.c.b16 %v3122, %v3119
        %v3204 = vpack.c.b16 %v3123, %v3120
        %v3205 = vpack.c.b16 %v3124, %v3121
        %v3206 = vpack.c.b16 %v3128, %v3125
        %v3207 = vpack.c.b16 %v3129, %v3126
        %v3208 = vpack.c.b16 %v3130, %v3127
        %v3209 = vpack.c.b16 %v3134, %v3131
        %v3210 = vpack.c.b16 %v3135, %v3132
        %v3211 = vpack.c.b16 %v3136, %v3133
        %v3212 = vpack.c.b16 %v3140, %v3137
        %v3213 = vpack.c.b16 %v3141, %v3138
        %v3214 = vpack.c.b16 %v3142, %v3139
        %3287 = vmatprep.subr.bf16.mxu0 %v3144
        %3288 = vmatpush1.bf16.msra.mxu0 %v3143
        %3289 = vmatprep.subr.bf16.mxu0 %v3147
        %3290 = vmatpush1.bf16.msra.mxu0 %v3146
        %3291 = vmatprep.subr.bf16.mxu0 %v3150
        %3292 = vmatpush1.bf16.msra.mxu0 %v3149
        %3293 = vmatprep.subr.bf16.mxu0 %v3153
        %3294 = vmatpush1.bf16.msra.mxu0 %v3152
        %3295 = vmatprep.subr.bf16.mxu0 %v3156
        %3296 = vmatpush1.bf16.msra.mxu0 %v3155
        %3297 = vmatprep.subr.bf16.mxu0 %v3159
        %3298 = vmatpush1.bf16.msra.mxu0 %v3158
        %3299 = vmatprep.subr.bf16.mxu0 %v3162
        %3300 = vmatpush1.bf16.msra.mxu0 %v3161
        %3301 = vmatprep.subr.bf16.mxu0 %v3165
        %3302 = vmatpush1.bf16.msra.mxu0 %v3164
        %3303 = vmatprep.subr.bf16.mxu0 %v3168
        %3304 = vmatpush1.bf16.msra.mxu0 %v3167
        %3305 = vmatprep.subr.bf16.mxu0 %v3171
        %3306 = vmatpush1.bf16.msra.mxu0 %v3170
        %3307 = vmatprep.subr.bf16.mxu0 %v3174
        %3308 = vmatpush1.bf16.msra.mxu0 %v3173
        %3309 = vmatprep.subr.bf16.mxu0 %v3177
        %3310 = vmatpush1.bf16.msra.mxu0 %v3176
        %3311 = vmatprep.subr.bf16.mxu0 %v3180
        %3312 = vmatpush1.bf16.msra.mxu0 %v3179
        %3313 = vmatprep.subr.bf16.mxu0 %v3183
        %3314 = vmatpush1.bf16.msra.mxu0 %v3182
        %3315 = vmatprep.subr.bf16.mxu0 %v3186
        %3316 = vmatpush1.bf16.msra.mxu0 %v3185
        %3317 = vmatprep.subr.bf16.mxu0 %v3189
        %3318 = vmatpush1.bf16.msra.mxu0 %v3188
        %3319 = vmatprep.mubr.bf16.mxu0 %v2898
        %3320 = vmatmul.mubr.bf16.gmra.mrb[0].mxu0 %v2897
        %v3321 = vpop.f32.mrb[0].mxu0
        %v3322 = vadd.f32 %v2880, %v3321
        %v3323 = vpop.f32.mrb[0].mxu0
        %v3324 = vadd.f32 %v2884, %v3323
        %v3325 = vpop.f32.mrb[0].mxu0
        %v3326 = vpop.f32.mrb[0].mxu0
        %3327 = vdwg.mxu0
        %3328 = vmatprep.subr.bf16.mxu0 %v3192
        %3329 = vmatpush1.bf16.msra.mxu0 %v3191
        %3330 = vmatprep.subr.bf16.mxu0 %v3195
        %3331 = vmatpush1.bf16.msra.mxu0 %v3194
        %3332 = vmatprep.subr.bf16.mxu0 %v3198
        %3333 = vmatpush1.bf16.msra.mxu0 %v3197
        %3334 = vmatprep.subr.bf16.mxu0 %v3201
        %3335 = vmatpush1.bf16.msra.mxu0 %v3200
        %3336 = vmatprep.subr.bf16.mxu0 %v3204
        %3337 = vmatpush1.bf16.msra.mxu0 %v3203
        %3338 = vmatprep.subr.bf16.mxu0 %v3207
        %3339 = vmatpush1.bf16.msra.mxu0 %v3206
        %3340 = vmatprep.subr.bf16.mxu0 %v3210
        %3341 = vmatpush1.bf16.msra.mxu0 %v3209
        %3342 = vmatprep.subr.bf16.mxu0 %v3213
        %3343 = vmatpush1.bf16.msra.mxu0 %v3212
        %3344 = vmatprep.subr.bf16.mxu0 0
        %3345 = vmatpush1.bf16.msra.mxu0 0
        %3346 = vmatprep.subr.bf16.mxu0 0
        %3347 = vmatpush1.bf16.msra.mxu0 0
        %3348 = vmatprep.subr.bf16.mxu0 0
        %3349 = vmatpush1.bf16.msra.mxu0 0
        %3350 = vmatprep.subr.bf16.mxu0 0
        %3351 = vmatpush1.bf16.msra.mxu0 0
        %3352 = vmatprep.subr.bf16.mxu0 0
        %3353 = vmatpush1.bf16.msra.mxu0 0
        %3354 = vmatprep.subr.bf16.mxu0 0
        %3355 = vmatpush1.bf16.msra.mxu0 0
        %3356 = vmatprep.subr.bf16.mxu0 0
        %3357 = vmatpush1.bf16.msra.mxu0 0
        %3358 = vmatprep.subr.bf16.mxu0 0
        %3359 = vmatpush1.bf16.msra.mxu0 0
        %3360 = vmatprep.mubr.bf16.mxu0 0
        %3361 = vmatmul.mubr.bf16.gmra.mrb[0].mxu0 %v2899
        %v3362 = vpop.f32.mrb[0].mxu0
        %v3363 = vadd.f32 %v3322, %v3362
        %v3364 = vpop.f32.mrb[0].mxu0
        %v3365 = vadd.f32 %v3324, %v3364
        %v3366 = vpop.f32.mrb[0].mxu0
        %v3367 = vpop.f32.mrb[0].mxu0
        %3368 = vdwg.mxu0
        %3369 = vmatprep.subr.bf16.mxu0 0
        %3370 = vmatpush1.bf16.msra.mxu0 %v3145
        %3371 = vmatprep.subr.bf16.mxu0 0
        %3372 = vmatpush1.bf16.msra.mxu0 %v3148
        %3373 = vmatprep.subr.bf16.mxu0 0
        %3374 = vmatpush1.bf16.msra.mxu0 %v3151
        %3375 = vmatprep.subr.bf16.mxu0 0
        %3376 = vmatpush1.bf16.msra.mxu0 %v3154
        %3377 = vmatprep.subr.bf16.mxu0 0
        %3378 = vmatpush1.bf16.msra.mxu0 %v3157
        %3379 = vmatprep.subr.bf16.mxu0 0
        %3380 = vmatpush1.bf16.msra.mxu0 %v3160
        %3381 = vmatprep.subr.bf16.mxu0 0
        %3382 = vmatpush1.bf16.msra.mxu0 %v3163
        %3383 = vmatprep.subr.bf16.mxu0 0
        %3384 = vmatpush1.bf16.msra.mxu0 %v3166
        %3385 = vmatprep.subr.bf16.mxu0 0
        %3386 = vmatpush1.bf16.msra.mxu0 %v3169
        %3387 = vmatprep.subr.bf16.mxu0 0
        %3388 = vmatpush1.bf16.msra.mxu0 %v3172
        %3389 = vmatprep.subr.bf16.mxu0 0
        %3390 = vmatpush1.bf16.msra.mxu0 %v3175
        %3391 = vmatprep.subr.bf16.mxu0 0
        %3392 = vmatpush1.bf16.msra.mxu0 %v3178
        %3393 = vmatprep.subr.bf16.mxu0 0
        %3394 = vmatpush1.bf16.msra.mxu0 %v3181
        %3395 = vmatprep.subr.bf16.mxu0 0
        %3396 = vmatpush1.bf16.msra.mxu0 %v3184
        %3397 = vmatprep.subr.bf16.mxu0 0
        %3398 = vmatpush1.bf16.msra.mxu0 %v3187
        %3399 = vmatprep.subr.bf16.mxu0 0
        %3400 = vmatpush1.bf16.msra.mxu0 %v3190
        %3401 = vmatprep.mubr.bf16.mxu0 %v2898
        %3402 = vmatmul.mubr.bf16.gmra.mrb[0].mxu0 %v2897
        %v3403 = vpop.f32.mrb[0].mxu0
        %v3404 = vadd.f32 %v2888, %v3403
        %v3405 = vpop.f32.mrb[0].mxu0
        %v3406 = vpop.f32.mrb[0].mxu0
        %v3407 = vpop.f32.mrb[0].mxu0
        %3408 = vdwg.mxu0
        %3409 = vmatprep.subr.bf16.mxu0 0
        %3410 = vmatpush1.bf16.msra.mxu0 %v3193
        %3411 = vmatprep.subr.bf16.mxu0 0
        %3412 = vmatpush1.bf16.msra.mxu0 %v3196
        %3413 = vmatprep.subr.bf16.mxu0 0
        %3414 = vmatpush1.bf16.msra.mxu0 %v3199
        %3415 = vmatprep.subr.bf16.mxu0 0
        %3416 = vmatpush1.bf16.msra.mxu0 %v3202
        %3417 = vmatprep.subr.bf16.mxu0 0
        %3418 = vmatpush1.bf16.msra.mxu0 %v3205
        %3419 = vmatprep.subr.bf16.mxu0 0
        %3420 = vmatpush1.bf16.msra.mxu0 %v3208
        %3421 = vmatprep.subr.bf16.mxu0 0
        %3422 = vmatpush1.bf16.msra.mxu0 %v3211
        %3423 = vmatprep.subr.bf16.mxu0 0
        %3424 = vmatpush1.bf16.msra.mxu0 %v3214
        %3425 = vmatprep.subr.bf16.mxu0 0
        %3426 = vmatpush1.bf16.msra.mxu0 0
        %3427 = vmatprep.subr.bf16.mxu0 0
        %3428 = vmatpush1.bf16.msra.mxu0 0
        %3429 = vmatprep.subr.bf16.mxu0 0
        %3430 = vmatpush1.bf16.msra.mxu0 0
        %3431 = vmatprep.subr.bf16.mxu0 0
        %3432 = vmatpush1.bf16.msra.mxu0 0
        %3433 = vmatprep.subr.bf16.mxu0 0
        %3434 = vmatpush1.bf16.msra.mxu0 0
        %3435 = vmatprep.subr.bf16.mxu0 0
        %3436 = vmatpush1.bf16.msra.mxu0 0
        %3437 = vmatprep.subr.bf16.mxu0 0
        %3438 = vmatpush1.bf16.msra.mxu0 0
        %3439 = vmatprep.subr.bf16.mxu0 0
        %3440 = vmatpush1.bf16.msra.mxu0 0
        %3441 = vmatprep.mubr.bf16.mxu0 0
        %3442 = vmatmul.mubr.bf16.gmra.mrb[0].mxu0 %v2899
        %v3443 = vpop.f32.mrb[0].mxu0
        %v3444 = vadd.f32 %v3404, %v3443
        %v3445 = vpop.f32.mrb[0].mxu0
        %v3446 = vpop.f32.mrb[0].mxu0
        %v3447 = vpop.f32.mrb[0].mxu0
        %3448 = vdwg.mxu0
        %3449 = vst [vmem:[%s255] sm:$0xff] %v3363
        %3450 = vst [vmem:[%s255 + $0x8] sm:$0xff] %v3365
        %3451 = vst [vmem:[%s255 + $0x10] sm:$0xff] %v3444
        %s3452 = sand.u32 %s120, 1
        %s3453 = scalar_lea.sflag [#allocation6], %s3452
        %s3454 = sand.u32 %s120, 1
        %s3455 = smul.addr %s3454, 24
        %s3456 = scalar_lea.vmem [#allocation12], %s3455
        // Predicated region
        $region53: #{tpu_custom_call.1} parent=35 // pred_check
          %p3457 = pneg %p130
        $region54: #{tpu_custom_call.1} parent=35 // pred_check_branch
          %3459 = sbr.rel (%p3457) target = $region56
        $region55: #{tpu_custom_call.1} parent=35 // pred_region
          %s3461 = ssub.s32 384, 384
          %3462 = vsyncadd %s3453, %s3461
          %s3463 = smul.addr %s23, 3
          %s3464 = smul.addr %s3463, 128
          %s3465 = scalar_lea.hbm %s4, %s3464
          %s3467 = sshll.u32 %s3456, 4
          %s3468 = int_to_ptr.vmem [resolvable:$true] %s3467
          %3470 = dma.vmem_to_hbm [thread:$0]  %s3468, 384, %s3465, %s3453
        $region56: #{tpu_custom_call.1} parent=35 // pred_fallthru
          _
      $region36: #{tpu_custom_call.1} parent=5 // pred_fallthru
        _
      %p3471 = scmp.le.s32.totalorder 2, %s18
      // Predicated region
      $region57: #{tpu_custom_call.1} parent=5 // pred_check
        %p3472 = pneg %p3471
      $region58: #{tpu_custom_call.1} parent=5 // pred_check_branch
        %3474 = sbr.rel (%p3472) target = $region60
      $region59: #{tpu_custom_call.1} parent=5 // pred_region
        %s3475 = ssub.s32 %s18, 2
        // Predicated region
        $region61: #{tpu_custom_call.1} parent=59 // pred_check
          %p3476 = pneg %p136
        $region62: #{tpu_custom_call.1} parent=59 // pred_check_branch
          %3478 = sbr.rel (%p3476) target = $region64
        $region63: #{tpu_custom_call.1} parent=59 // pred_region
          %s3479 = sand.u32 %s121, 1
          %s3480 = scalar_lea.sflag [#allocation6], %s3479
          %s3481 = sand.u32 %s121, 1
          %s3482 = smul.addr %s3481, 24
          %s3483 = scalar_lea.vmem [#allocation12], %s3482
          %3484 = dma.done %s3480, 384
        $region64: #{tpu_custom_call.1} parent=59 // pred_fallthru
          _
      $region60: #{tpu_custom_call.1} parent=5 // pred_fallthru
        _
    $region6: #{tpu_custom_call.1} parent=1 // loop_footer
      %s22 = sadd.s32 1, %s18
    $region7: #{tpu_custom_call.1} parent=1 // loop_footer_branch
      %17 = sbr.rel target = $region3
    $region8: #{tpu_custom_call.1} parent=1 // loop_exit
      _
    %3485 = vsyncpa [#allocation5], 1
    %s3486 = scalar_lea.sflag [#allocation5], 1
    %3487 = vsyncpa %s3486, 1
    %3488 = vsyncpa [#allocation8], 1
    %3489 = vsyncpa [#allocation11], 1
    %3490 = vsyncpa [#allocation6], 1
    %s3491 = scalar_lea.sflag [#allocation6], 1
    %3492 = vsyncpa %s3491, 1

</llo_original>
